<compile_context>
chip_gen: v5e
topology: v5e:2x2
jax: 0.10.0
libtpu: 0.0.40
codegen_flags: <defaults>
</compile_context>

<pallas_src>
import functools

import jax
import jax.numpy as jnp
from jax import lax
from jax.experimental import pallas as pl
from jax.experimental.pallas import tpu as pltpu


# ----------------------------------------------------------------------------
# VMEM budgeting / tiling helpers
# ----------------------------------------------------------------------------

_VMEM_BUDGET = 40 * 1024 * 1024   # target working-set budget for block selection
_VMEM_LIMIT = 48 * 1024 * 1024    # scoped VMEM limit handed to Mosaic (< 64 MiB v7x)


def _cp(*sem):
    return pltpu.CompilerParams(dimension_semantics=tuple(sem),
                                vmem_limit_bytes=_VMEM_LIMIT)


def _pick_tile(dim, pref, quantum):
    """Largest tile <= pref that divides `dim` and is a multiple of `quantum`."""
    if dim <= pref:
        return dim
    t = (pref // quantum) * quantum
    while t >= quantum:
        if dim % t == 0:
            return t
        t -= quantum
    return dim


def _pick_spatial(HW, col_bytes, batch=1):
    """Pick (HW_padded, tile) for kernels with spatial on the lane axis.

    `col_bytes` = bytes of VMEM working set per spatial column (all blocks,
    double buffers).  Pads HW to a multiple of 128 only when tiling is needed."""
    max_cols = max(128, _VMEM_BUDGET // max(col_bytes, 1))
    if batch < 2 and HW >= 256:
        # keep >=2 grid steps so both v7x TensorCores get work
        max_cols = min(max_cols, -(-HW // 2))
    if HW <= max_cols:
        return HW, HW
    HWp = -(-HW // 128) * 128
    ts = max(128, (max_cols // 128) * 128)
    while HWp % ts:
        ts -= 128
    return HWp, ts


def _ln_row_tile(R, N, nbufs):
    """Row tile for LayerNorm so nbufs * tr * N * 4B stays under budget."""
    pref = max(8, _VMEM_BUDGET // (nbufs * N * 4))
    if R >= 16:
        pref = min(pref, R // 2)          # >=2 grid steps (v7x megacore)
    return _pick_tile(R, pref, 8)


# ----------------------------------------------------------------------------
# Patch embed: z = W @ patches + b + pos_embed   (fused, W·X orientation)
# ----------------------------------------------------------------------------

def _patch_embed_kernel(xp_ref, w_ref, b_ref, pos_ref, o_ref):
    x = xp_ref[0].astype(jnp.bfloat16)                              # (K, ts)
    z = jnp.dot(w_ref[...], x, preferred_element_type=jnp.float32)  # (D, ts)
    o_ref[0] = z + b_ref[...] + pos_ref[0]


def patch_embed_forward(x, w, b, pos_embed, patch_size):
    """nn.Conv2d(C, D, kernel=patch, stride=patch) + flatten(2) + pos_embed."""
    B, C, H, W = x.shape
    p0, p1 = patch_size
    h, wn = H // p0, W // p1
    P = h * wn
    D = w.shape[0]
    K = C * p0 * p1

    xp = (x.reshape(B, C, h, p0, wn, p1)
            .transpose(0, 1, 3, 5, 2, 4)            # (B, C, p0, p1, h, w)
            .reshape(B, K, P)).astype(jnp.float32)
    wk = w.reshape(D, K).astype(jnp.bfloat16)
    b2 = b.reshape(D, 1).astype(jnp.float32)
    pos = pos_embed.reshape(1, D, P).astype(jnp.float32)

    col_bytes = 4 * (2 * K + 2 * D + 2 * D)
    Pp, ts = _pick_spatial(P, col_bytes, batch=B)
    if Pp != P:
        xp = jnp.pad(xp, ((0, 0), (0, 0), (0, Pp - P)))
        pos = jnp.pad(pos, ((0, 0), (0, 0), (0, Pp - P)))

    out = pl.pallas_call(
        _patch_embed_kernel,
        out_shape=jax.ShapeDtypeStruct((B, D, Pp), jnp.float32),
        grid=(B, Pp // ts),
        in_specs=[
            pl.BlockSpec((1, K, ts), lambda bi, s: (bi, 0, s)),
            pl.BlockSpec((D, K), lambda bi, s: (0, 0)),
            pl.BlockSpec((D, 1), lambda bi, s: (0, 0)),
            pl.BlockSpec((1, D, ts), lambda bi, s: (0, 0, s)),
        ],
        out_specs=pl.BlockSpec((1, D, ts), lambda bi, s: (bi, 0, s)),
        compiler_params=_cp("parallel", "parallel"),
    )(xp, wk, b2, pos)
    if Pp != P:
        out = out[:, :, :P]
    return out                                                      # (B, D, P)


# ----------------------------------------------------------------------------
# LayerNorm over (h, w) — row-tiled; variant with fused 3-way residual add
# ----------------------------------------------------------------------------

def _ln_kernel(x_ref, g_ref, b_ref, o_ref, *, eps):
    x = x_ref[...]
    mean = jnp.mean(x, axis=-1, keepdims=True)
    xc = x - mean
    var = jnp.mean(xc * xc, axis=-1, keepdims=True)   # biased var (torch LN)
    o_ref[...] = xc * lax.rsqrt(var + eps) * g_ref[...] + b_ref[...]


def _ln_add2_kernel(x_ref, a_ref, b_ref, g_ref, bt_ref, ln_ref, s_ref, *, eps):
    s = x_ref[...] + a_ref[...] + b_ref[...]
    s_ref[...] = s
    mean = jnp.mean(s, axis=-1, keepdims=True)
    sc = s - mean
    var = jnp.mean(sc * sc, axis=-1, keepdims=True)
    ln_ref[...] = sc * lax.rsqrt(var + eps) * g_ref[...] + bt_ref[...]


def pallas_layernorm(x_bcn, gamma_hw, beta_hw, eps=1e-6):
    """LayerNorm over the (h*w) axis of (B, C, N)."""
    B, C, N = x_bcn.shape
    R = B * C
    x2 = x_bcn.reshape(R, N).astype(jnp.float32)
    g = gamma_hw.reshape(1, N).astype(jnp.float32)
    bt = beta_hw.reshape(1, N).astype(jnp.float32)

    tr = _ln_row_tile(R, N, nbufs=4)
    row = pl.BlockSpec((tr, N), lambda i: (i, 0))
    par = pl.BlockSpec((1, N), lambda i: (0, 0))
    out = pl.pallas_call(
        functools.partial(_ln_kernel, eps=eps),
        out_shape=jax.ShapeDtypeStruct((R, N), jnp.float32),
        grid=(R // tr,),
        in_specs=[row, par, par],
        out_specs=row,
        compiler_params=_cp("parallel"),
    )(x2, g, bt)
    return out.reshape(B, C, N)


def pallas_layernorm_add2(x_bcn, a_bcn, r_bcn, gamma_hw, beta_hw, eps=1e-6):
    """s = x + a + r; returns (LayerNorm_{(h,w)}(s), s) — AFNO bias + double-skip fused."""
    B, C, N = x_bcn.shape
    R = B * C
    x2 = x_bcn.reshape(R, N).astype(jnp.float32)
    a2 = a_bcn.reshape(R, N).astype(jnp.float32)
    r2 = r_bcn.reshape(R, N).astype(jnp.float32)
    g = gamma_hw.reshape(1, N).astype(jnp.float32)
    bt = beta_hw.reshape(1, N).astype(jnp.float32)

    tr = _ln_row_tile(R, N, nbufs=10)
    row = pl.BlockSpec((tr, N), lambda i: (i, 0))
    par = pl.BlockSpec((1, N), lambda i: (0, 0))
    ln, s = pl.pallas_call(
        functools.partial(_ln_add2_kernel, eps=eps),
        out_shape=(jax.ShapeDtypeStruct((R, N), jnp.float32),
                   jax.ShapeDtypeStruct((R, N), jnp.float32)),
        grid=(R // tr,),
        in_specs=[row, row, row, par, par],
        out_specs=(row, row),
        compiler_params=_cp("parallel"),
    )(x2, a2, r2, g, bt)
    return ln.reshape(B, C, N), s.reshape(B, C, N)


# ----------------------------------------------------------------------------
# AFNO spectral filter — complex block-MLP as batched real matmuls (bf16 MXU)
# ----------------------------------------------------------------------------

def _afno_filter_kernel(x_ref, w1_ref, b1_ref, w2_ref, b2_ref, o_ref, *, lambd):
    # x: (K, 2*bs, tr) — per block [real chans; imag chans], freq rows on lanes.
    x = x_ref[0].astype(jnp.bfloat16)
    h = lax.dot_general(w1_ref[...], x,
                        dimension_numbers=(((2,), (1,)), ((0,), (0,))),
                        preferred_element_type=jnp.float32)   # (K, 2*hid, tr)
    h = jnp.maximum(h + b1_ref[...], 0.0)                     # ReLU (real & imag)
    o = lax.dot_general(w2_ref[...], h.astype(jnp.bfloat16),
                        dimension_numbers=(((2,), (1,)), ((0,), (0,))),
                        preferred_element_type=jnp.float32)   # (K, 2*bs, tr)
    o = o + b2_ref[...]
    # softshrink
    o_ref[0] = jnp.where(o > lambd, o - lambd,
                         jnp.where(o < -lambd, o + lambd, 0.0))


def pallas_afno_filter(xk, fparams, lambd):
    """xk: (B, K, 2*bs, R) f32 — per block [real chans; imag chans] x freq rows."""
    B, K, C2, R = xk.shape
    w1, b1, w2, b2 = fparams["w1"], fparams["b1"], fparams["w2"], fparams["b2"]
    bs, hid = w1.shape[1], w1.shape[2]

    w1r, w1i = w1[..., 0], w1[..., 1]              # (K, bs, hid)
    w2r, w2i = w2[..., 0], w2[..., 1]              # (K, hid, bs)
    # Real 2x2 block form, pre-transposed so the kernel does W @ X:
    #   [h_r; h_i] = [[w1r^T, -w1i^T], [w1i^T, w1r^T]] @ [x_r; x_i] + [b1r; b1i]
    w1blk = jnp.concatenate([
        jnp.concatenate([jnp.swapaxes(w1r, 1, 2), -jnp.swapaxes(w1i, 1, 2)], axis=2),
        jnp.concatenate([jnp.swapaxes(w1i, 1, 2),  jnp.swapaxes(w1r, 1, 2)], axis=2),
    ], axis=1).astype(jnp.bfloat16)                # (K, 2*hid, 2*bs)
    w2blk = jnp.concatenate([
        jnp.concatenate([jnp.swapaxes(w2r, 1, 2), -jnp.swapaxes(w2i, 1, 2)], axis=2),
        jnp.concatenate([jnp.swapaxes(w2i, 1, 2),  jnp.swapaxes(w2r, 1, 2)], axis=2),
    ], axis=1).astype(jnp.bfloat16)                # (K, 2*bs, 2*hid)
    b1blk = jnp.concatenate([b1[..., 0].reshape(K, hid), b1[..., 1].reshape(K, hid)],
                            axis=1).reshape(K, 2 * hid, 1).astype(jnp.float32)
    b2blk = jnp.concatenate([b2[..., 0].reshape(K, bs), b2[..., 1].reshape(K, bs)],
                            axis=1).reshape(K, 2 * bs, 1).astype(jnp.float32)

    col_bytes = 4 * (2 * K * C2 + 2 * K * C2 + K * 2 * hid)
    Rp, tr = _pick_spatial(R, col_bytes, batch=B)
    xkp = jnp.pad(xk, ((0, 0), (0, 0), (0, 0), (0, Rp - R))) if Rp != R else xk

    out = pl.pallas_call(
        functools.partial(_afno_filter_kernel, lambd=lambd),
        out_shape=jax.ShapeDtypeStruct((B, K, C2, Rp), jnp.float32),
        grid=(B, Rp // tr),
        in_specs=[
            pl.BlockSpec((1, K, C2, tr), lambda bi, s: (bi, 0, 0, s)),
            pl.BlockSpec(w1blk.shape, lambda bi, s: (0, 0, 0)),     # weights resident
            pl.BlockSpec(b1blk.shape, lambda bi, s: (0, 0, 0)),
            pl.BlockSpec(w2blk.shape, lambda bi, s: (0, 0, 0)),
            pl.BlockSpec(b2blk.shape, lambda bi, s: (0, 0, 0)),
        ],
        out_specs=pl.BlockSpec((1, K, C2, tr), lambda bi, s: (bi, 0, 0, s)),
        compiler_params=_cp("parallel", "parallel"),
    )(xkp.astype(jnp.float32), w1blk, b1blk, w2blk, b2blk)
    return out[:, :, :, :R] if Rp != R else out


def afno2d_filter(x_bcn, H, W, fparams, num_blocks, lambd, hard_frac):
    """DistributedAFNO2D.forward (world_size=1) WITHOUT the final '+ bias'
    (that add is fused into the following LayerNorm kernel).  Returns (B, C, H*W) f32."""
    B, C, _ = x_bcn.shape
    x = x_bcn.reshape(B, C, H, W).astype(jnp.float32)
    bs = C // num_blocks
    total_modes = H // 2 + 1
    kept = int(total_modes * hard_frac)
    Wf = W // 2 + 1

    # TODO(synk): rfft2/irfft2 have no Pallas primitive; computed with jnp.fft (XLA FFT).
    xf = jnp.fft.rfft2(x, s=(H, W), axes=(-2, -1), norm="ortho")    # (B, C, H, Wf)

    lo, hi = total_modes - kept, total_modes + kept
    lo_c, hi_c = max(lo, 0), min(hi, H)                             # PyTorch slice clipping
    ws_c = min(kept, Wf)
    xs = xf[:, :, lo_c:hi_c, :ws_c]                                 # (B, C, Hs, Ws)
    Hs, Ws = xs.shape[2], xs.shape[3]
    R = Hs * Ws

    xs = xs.reshape(B, num_blocks, bs, R)
    xk = jnp.concatenate([jnp.real(xs), jnp.imag(xs)], axis=2)      # (B, K, 2bs, R)

    o = pallas_afno_filter(xk, fparams, lambd)                      # (B, K, 2bs, R)

    oc = lax.complex(o[:, :, :bs, :], o[:, :, bs:, :]).reshape(B, C, Hs, Ws)
    full = jnp.zeros((B, C, H, Wf), dtype=jnp.complex64)
    full = lax.dynamic_update_slice(full, oc, (0, 0, lo_c, 0))

    out = jnp.fft.irfft2(full, s=(H, W), axes=(-2, -1), norm="ortho")
    return out.reshape(B, C, H * W)


# ----------------------------------------------------------------------------
# Fused MLP in W·X orientation: matmul -> GELU -> matmul -> +bias -> +residual
# ----------------------------------------------------------------------------

def _mlp_kernel(x_ref, w1_ref, b1_ref, w2_ref, b2_ref, r_ref, o_ref):
    x = x_ref[0].astype(jnp.bfloat16)                               # (C, ts)
    h = jnp.dot(w1_ref[...], x, preferred_element_type=jnp.float32) + b1_ref[...]
    # TODO(synk): nn.GELU() is the exact erf GELU; tanh-approx used (EUP tanh).
    c = 0.7978845608028654  # sqrt(2/pi)
    h = 0.5 * h * (1.0 + jnp.tanh(c * (h + 0.044715 * h * h * h)))
    y = jnp.dot(w2_ref[...], h.astype(jnp.bfloat16),
                preferred_element_type=jnp.float32) + b2_ref[...]
    o_ref[0] = y + r_ref[0]


def pallas_mlp(x_bcn, res_bcn, w1, b1, w2, b2):
    """y = W2 @ gelu(W1 @ x + b1) + b2 + res, all in (B, C, H*W) layout."""
    B, C, HW = x_bcn.shape
    Dh = w1.shape[0]
    w1b = w1.reshape(Dh, C).astype(jnp.bfloat16)
    w2b = w2.reshape(C, Dh).astype(jnp.bfloat16)
    b1r = b1.reshape(Dh, 1).astype(jnp.float32)
    b2r = b2.reshape(C, 1).astype(jnp.float32)

    col_bytes = 4 * (2 * C + 2 * C + 2 * C + Dh)   # x,res,out (dbl) f32 + h value f32
    HWp, ts = _pick_spatial(HW, col_bytes, batch=B)
    xp, rp = x_bcn.astype(jnp.float32), res_bcn.astype(jnp.float32)
    if HWp != HW:
        pad = ((0, 0), (0, 0), (0, HWp - HW))
        xp, rp = jnp.pad(xp, pad), jnp.pad(rp, pad)

    out = pl.pallas_call(
        _mlp_kernel,
        out_shape=jax.ShapeDtypeStruct((B, C, HWp), jnp.float32),
        grid=(B, HWp // ts),
        in_specs=[
            pl.BlockSpec((1, C, ts), lambda bi, s: (bi, 0, s)),
            pl.BlockSpec((Dh, C), lambda bi, s: (0, 0)),
            pl.BlockSpec((Dh, 1), lambda bi, s: (0, 0)),
            pl.BlockSpec((C, Dh), lambda bi, s: (0, 0)),
            pl.BlockSpec((C, 1), lambda bi, s: (0, 0)),
            pl.BlockSpec((1, C, ts), lambda bi, s: (bi, 0, s)),
        ],
        out_specs=pl.BlockSpec((1, C, ts), lambda bi, s: (bi, 0, s)),
        compiler_params=_cp("parallel", "parallel"),
        cost_estimate=pl.CostEstimate(
            flops=4 * B * HW * C * Dh,
            transcendentals=B * HW * Dh,
            bytes_accessed=4 * 3 * B * C * HW + 4 * C * Dh),
    )(xp, w1b, b1r, w2b, b2r, rp)
    return out[:, :, :HW] if HWp != HW else out


# ----------------------------------------------------------------------------
# Head: 1x1 conv (no bias) in W·X orientation
# ----------------------------------------------------------------------------

def _head_kernel(x_ref, w_ref, o_ref):
    x = x_ref[0].astype(jnp.bfloat16)                               # (D, ts)
    o_ref[0] = jnp.dot(w_ref[...], x, preferred_element_type=jnp.float32)


def pallas_head(x_bcn, w_head):
    B, D, HW = x_bcn.shape
    Co = w_head.shape[0]
    wb = w_head.reshape(Co, D).astype(jnp.bfloat16)

    col_bytes = 4 * (2 * D + 2 * Co)
    HWp, ts = _pick_spatial(HW, col_bytes, batch=B)
    xp = x_bcn.astype(jnp.float32)
    if HWp != HW:
        xp = jnp.pad(xp, ((0, 0), (0, 0), (0, HWp - HW)))

    out = pl.pallas_call(
        _head_kernel,
        out_shape=jax.ShapeDtypeStruct((B, Co, HWp), jnp.float32),
        grid=(B, HWp // ts),
        in_specs=[pl.BlockSpec((1, D, ts), lambda bi, s: (bi, 0, s)),
                  pl.BlockSpec((Co, D), lambda bi, s: (0, 0))],
        out_specs=pl.BlockSpec((1, Co, ts), lambda bi, s: (bi, 0, s)),
        compiler_params=_cp("parallel", "parallel"),
    )(xp, wb)
    return out[:, :, :HW] if HWp != HW else out


# ----------------------------------------------------------------------------
# Full network forward (glue in plain JAX, hot paths in Pallas)
# ----------------------------------------------------------------------------

def afnonet_forward(x, params, cfg):
    B = x.shape[0]
    p0, p1 = cfg["patch_size"]
    h, w = cfg["h"], cfg["w"]
    oc = cfg["out_chans"]

    # forward_features: patch embed fused with bias + pos_embed -> (B, D, h*w)
    z = patch_embed_forward(x, params["patch_w"], params["patch_b"],
                            params["pos_embed"], cfg["patch_size"])

    for blk in params["blocks"]:
        residual = z
        zn = pallas_layernorm(z, blk["norm1_w"], blk["norm1_b"], eps=1e-6)
        zf = afno2d_filter(zn, h, w, blk["filter"], cfg["num_blocks"],
                           cfg["sparsity_threshold"], cfg["hard_frac"])
        # AFNO's "+ bias" (bias = zn) and double_skip residual fused into LN2:
        #   s = zf + zn + residual ; zn2 = LN2(s)
        zn2, s = pallas_layernorm_add2(zf, zn, residual,
                                       blk["norm2_w"], blk["norm2_b"], eps=1e-6)
        # MLP fused with +b2 and the final residual add (DropPath identity)
        z = pallas_mlp(zn2, s, blk["mlp_w1"], blk["mlp_b1"],
                       blk["mlp_w2"], blk["mlp_b2"])

    # head + pixel-unshuffle rearrange
    y = pallas_head(z, params["head_w"])                            # (B, oc*p0*p1, h*w)
    y = (y.reshape(B, p0, p1, oc, h, w)
         .transpose(0, 3, 4, 1, 5, 2)
         .reshape(B, oc, h * p0, w * p1))
    return y


# ----------------------------------------------------------------------------
# Deterministic parameter init (shapes from the PyTorch __init__, world_size=1)
# ----------------------------------------------------------------------------

def init_params(key, cfg):
    D = cfg["embed_dim"]
    C = cfg["in_chans"]
    p0, p1 = cfg["patch_size"]
    h, w = cfg["h"], cfg["w"]
    P = h * w
    nb = cfg["num_blocks"]
    bs = D // nb
    hid_f = bs * 1                                    # hidden_size_factor = 1
    mlp_hidden = int(D * cfg["mlp_ratio"])
    oc = cfg["out_chans"]
    std = 0.02

    keys = jax.random.split(key, 4 + cfg["depth"])
    params = {
        "patch_w": std * jax.random.normal(keys[0], (D, C, p0, p1), jnp.float32),
        "patch_b": jnp.zeros((D,), jnp.float32),
        "pos_embed": std * jax.random.normal(keys[1], (1, D, P), jnp.float32),
        "head_w": std * jax.random.normal(keys[2], (oc * p0 * p1, D), jnp.float32),
        "blocks": [],
    }
    for i in range(cfg["depth"]):
        bk = jax.random.split(keys[4 + i], 6)
        blk = {
            "norm1_w": jnp.ones((h, w), jnp.float32),
            "norm1_b": jnp.zeros((h, w), jnp.float32),
            "norm2_w": jnp.ones((h, w), jnp.float32),
            "norm2_b": jnp.zeros((h, w), jnp.float32),
            "filter": {
                "w1": std * jax.random.normal(bk[0], (nb, bs, hid_f, 2), jnp.float32),
                "b1": std * jax.random.normal(bk[1], (nb, hid_f, 1, 1, 2), jnp.float32),
                "w2": std * jax.random.normal(bk[2], (nb, hid_f, bs, 2), jnp.float32),
                "b2": std * jax.random.normal(bk[3], (nb, bs, 1, 1, 2), jnp.float32),
            },
            "mlp_w1": std * jax.random.normal(bk[4], (mlp_hidden, D), jnp.float32),
            "mlp_b1": jnp.zeros((mlp_hidden,), jnp.float32),
            "mlp_w2": std * jax.random.normal(bk[5], (D, mlp_hidden), jnp.float32),
            "mlp_b2": jnp.zeros((D,), jnp.float32),
        }
        params["blocks"].append(blk)
    return params


# ----------------------------------------------------------------------------

if __name__ == "__main__":
    cfg = dict(
        inp_shape=(32, 32),
        patch_size=(4, 4),
        in_chans=2,
        out_chans=2,
        embed_dim=32,
        depth=2,
        mlp_ratio=2.0,
        num_blocks=4,
        sparsity_threshold=0.01,
        hard_frac=1.0,
    )
    cfg["h"] = cfg["inp_shape"][0] // cfg["patch_size"][0]   # 8
    cfg["w"] = cfg["inp_shape"][1] // cfg["patch_size"][1]   # 8

    key = jax.random.PRNGKey(0)
    kp, kx = jax.random.split(key)
    params = init_params(kp, cfg)
    x = jax.random.normal(kx, (2, cfg["in_chans"], *cfg["inp_shape"]), jnp.float32)

    fwd = jax.jit(lambda xx, pp: afnonet_forward(xx, pp, cfg))
    y = fwd(x, params)
    jax.block_until_ready(y)

    expected = (2, cfg["out_chans"], cfg["inp_shape"][0], cfg["inp_shape"][1])
    assert y.shape == expected, (y.shape, expected)
    assert bool(jnp.all(jnp.isfinite(y)))
    print("KERNEL_OK")
</pallas_src>

<mosaic_0001>
module attributes {stable_mosaic.version = 11 : i64} {
  func.func @_ln_kernel(%arg0: i32, %arg1: memref<32x64xf32, #tpu.memory_space<vmem>>, %arg2: memref<1x64xf32, #tpu.memory_space<vmem>>, %arg3: memref<1x64xf32, #tpu.memory_space<vmem>>, %arg4: memref<32x64xf32, #tpu.memory_space<vmem>>) attributes {dimension_semantics = [#tpu.dimension_semantics<parallel>], iteration_bounds = array<i64: 2>, scalar_prefetch = 0 : i64, scratch_operands = 0 : i64, tpu.core_type = #tpu.core_type<tc>, window_params = [{transform_indices = @transform_0, window_bounds = array<i64: 32, 64>}, {pipeline_mode = #tpu.pipeline_mode<synchronous>, transform_indices = @transform_1, window_bounds = array<i64: 1, 64>}, {pipeline_mode = #tpu.pipeline_mode<synchronous>, transform_indices = @transform_2, window_bounds = array<i64: 1, 64>}, {transform_indices = @transform_3, window_bounds = array<i64: 32, 64>}]} {
    %c0 = arith.constant 0 : index
    %c0_0 = arith.constant 0 : index
    %0 = vector.load %arg1[%c0, %c0_0] : memref<32x64xf32, #tpu.memory_space<vmem>>, vector<32x64xf32>
    %cst = arith.constant dense<0.000000e+00> : vector<32xf32>
    %1 = vector.multi_reduction <add>, %0, %cst [1] : vector<32x64xf32> to vector<32xf32>
    %2 = vector.shape_cast %1 : vector<32xf32> to vector<32x1xf32>
    %cst_1 = arith.constant 6.400000e+01 : f32
    %3 = vector.broadcast %cst_1 : f32 to vector<32x1xf32>
    %4 = arith.divf %2, %3 : vector<32x1xf32>
    %5 = vector.broadcast %4 : vector<32x1xf32> to vector<32x64xf32>
    %6 = arith.subf %0, %5 : vector<32x64xf32>
    %7 = arith.mulf %6, %6 : vector<32x64xf32>
    %cst_2 = arith.constant dense<0.000000e+00> : vector<32xf32>
    %8 = vector.multi_reduction <add>, %7, %cst_2 [1] : vector<32x64xf32> to vector<32xf32>
    %9 = vector.shape_cast %8 : vector<32xf32> to vector<32x1xf32>
    %cst_3 = arith.constant 6.400000e+01 : f32
    %10 = vector.broadcast %cst_3 : f32 to vector<32x1xf32>
    %11 = arith.divf %9, %10 : vector<32x1xf32>
    %cst_4 = arith.constant 9.99999997E-7 : f32
    %12 = vector.broadcast %cst_4 : f32 to vector<32x1xf32>
    %13 = arith.addf %11, %12 : vector<32x1xf32>
    %14 = math.rsqrt %13 : vector<32x1xf32>
    %15 = vector.broadcast %14 : vector<32x1xf32> to vector<32x64xf32>
    %16 = arith.mulf %6, %15 : vector<32x64xf32>
    %c0_5 = arith.constant 0 : index
    %c0_6 = arith.constant 0 : index
    %17 = vector.load %arg2[%c0_5, %c0_6] : memref<1x64xf32, #tpu.memory_space<vmem>>, vector<1x64xf32>
    %18 = vector.broadcast %17 : vector<1x64xf32> to vector<32x64xf32>
    %19 = arith.mulf %16, %18 : vector<32x64xf32>
    %c0_7 = arith.constant 0 : index
    %c0_8 = arith.constant 0 : index
    %20 = vector.load %arg3[%c0_7, %c0_8] : memref<1x64xf32, #tpu.memory_space<vmem>>, vector<1x64xf32>
    %21 = vector.broadcast %20 : vector<1x64xf32> to vector<32x64xf32>
    %22 = arith.addf %19, %21 : vector<32x64xf32>
    %c0_9 = arith.constant 0 : index
    %c0_10 = arith.constant 0 : index
    %23 = vector.load %arg4[%c0_9, %c0_10] : memref<32x64xf32, #tpu.memory_space<vmem>>, vector<32x64xf32>
    tpu.vector_store %arg4[%c0_9, %c0_10], %22 {strides = array<i32>} : memref<32x64xf32, #tpu.memory_space<vmem>>, vector<32x64xf32>,
    return
  }
  func.func @transform_0(%arg0: i32) -> (i32, i32) {
    %c0_i32 = arith.constant 0 : i32
    %c0_i32_0 = arith.constant 0 : i32
    return %arg0, %c0_i32 : i32, i32
  }
  func.func @transform_1(%arg0: i32) -> (i32, i32) {
    %c0_i32 = arith.constant 0 : i32
    %c0_i32_0 = arith.constant 0 : i32
    %c0_i32_1 = arith.constant 0 : i32
    return %c0_i32, %c0_i32_0 : i32, i32
  }
  func.func @transform_2(%arg0: i32) -> (i32, i32) {
    %c0_i32 = arith.constant 0 : i32
    %c0_i32_0 = arith.constant 0 : i32
    %c0_i32_1 = arith.constant 0 : i32
    return %c0_i32, %c0_i32_0 : i32, i32
  }
  func.func @transform_3(%arg0: i32) -> (i32, i32) {
    %c0_i32 = arith.constant 0 : i32
    %c0_i32_0 = arith.constant 0 : i32
    return %arg0, %c0_i32 : i32, i32
  }
}

module attributes {stable_mosaic.version = 11 : i64} {
  func.func @_patch_embed_kernel(%arg0: i32, %arg1: i32, %arg2: memref<1x32x64xf32, #tpu.memory_space<vmem>>, %arg3: memref<32x32xbf16, #tpu.memory_space<vmem>>, %arg4: memref<32x1xf32, #tpu.memory_space<vmem>>, %arg5: memref<1x32x64xf32, #tpu.memory_space<vmem>>, %arg6: memref<1x32x64xf32, #tpu.memory_space<vmem>>) attributes {dimension_semantics = [#tpu.dimension_semantics<parallel>, #tpu.dimension_semantics<parallel>], iteration_bounds = array<i64: 2, 1>, scalar_prefetch = 0 : i64, scratch_operands = 0 : i64, tpu.core_type = #tpu.core_type<tc>, window_params = [{transform_indices = @transform_0, window_bounds = array<i64: 1, 32, 64>}, {pipeline_mode = #tpu.pipeline_mode<synchronous>, transform_indices = @transform_1, window_bounds = array<i64: 32, 32>}, {pipeline_mode = #tpu.pipeline_mode<synchronous>, transform_indices = @transform_2, window_bounds = array<i64: 32, 1>}, {transform_indices = @transform_3, window_bounds = array<i64: 1, 32, 64>}, {transform_indices = @transform_4, window_bounds = array<i64: 1, 32, 64>}]} {
    %c0 = arith.constant 0 : index
    %c0_0 = arith.constant 0 : index
    %c0_1 = arith.constant 0 : index
    %0 = vector.load %arg2[%c0, %c0_0, %c0_1] : memref<1x32x64xf32, #tpu.memory_space<vmem>>, vector<1x32x64xf32>
    %1 = vector.shape_cast %0 : vector<1x32x64xf32> to vector<32x64xf32>
    %2 = arith.truncf %1 : vector<32x64xf32> to vector<32x64xbf16>
    %c0_2 = arith.constant 0 : index
    %c0_3 = arith.constant 0 : index
    %3 = vector.load %arg3[%c0_2, %c0_3] : memref<32x32xbf16, #tpu.memory_space<vmem>>, vector<32x32xbf16>
    %cst = arith.constant dense<0.000000e+00> : vector<32x64xf32>
    %4 = tpu.matmul %3, %2, %cst {dimension_numbers = #tpu.dot_dimension_numbers<[1], [0], [0], [1], [0, 0, 1, 1], [], []>} : vector<32x32xbf16>, vector<32x64xbf16>, vector<32x64xf32> -> vector<32x64xf32>
    %c0_4 = arith.constant 0 : index
    %c0_5 = arith.constant 0 : index
    %5 = vector.load %arg4[%c0_4, %c0_5] : memref<32x1xf32, #tpu.memory_space<vmem>>, vector<32x1xf32>
    %6 = vector.broadcast %5 : vector<32x1xf32> to vector<32x64xf32>
    %7 = arith.addf %4, %6 : vector<32x64xf32>
    %c0_6 = arith.constant 0 : index
    %c0_7 = arith.constant 0 : index
    %c0_8 = arith.constant 0 : index
    %8 = vector.load %arg5[%c0_6, %c0_7, %c0_8] : memref<1x32x64xf32, #tpu.memory_space<vmem>>, vector<1x32x64xf32>
    %9 = vector.shape_cast %8 : vector<1x32x64xf32> to vector<32x64xf32>
    %10 = arith.addf %7, %9 : vector<32x64xf32>
    %c0_9 = arith.constant 0 : index
    %c0_10 = arith.constant 0 : index
    %c0_11 = arith.constant 0 : index
    %11 = vector.load %arg6[%c0_9, %c0_10, %c0_11] : memref<1x32x64xf32, #tpu.memory_space<vmem>>, vector<1x32x64xf32>
    %12 = vector.shape_cast %11 : vector<1x32x64xf32> to vector<32x64xf32>
    %13 = vector.shape_cast %10 : vector<32x64xf32> to vector<1x32x64xf32>
    tpu.vector_store %arg6[%c0_9, %c0_10, %c0_11], %13 {strides = array<i32>} : memref<1x32x64xf32, #tpu.memory_space<vmem>>, vector<1x32x64xf32>,
    return
  }
  func.func @transform_0(%arg0: i32, %arg1: i32) -> (i32, i32, i32) {
    %c0_i32 = arith.constant 0 : i32
    %c0_i32_0 = arith.constant 0 : i32
    return %arg0, %c0_i32, %arg1 : i32, i32, i32
  }
  func.func @transform_1(%arg0: i32, %arg1: i32) -> (i32, i32) {
    %c0_i32 = arith.constant 0 : i32
    %c0_i32_0 = arith.constant 0 : i32
    %c0_i32_1 = arith.constant 0 : i32
    return %c0_i32, %c0_i32_0 : i32, i32
  }
  func.func @transform_2(%arg0: i32, %arg1: i32) -> (i32, i32) {
    %c0_i32 = arith.constant 0 : i32
    %c0_i32_0 = arith.constant 0 : i32
    %c0_i32_1 = arith.constant 0 : i32
    return %c0_i32, %c0_i32_0 : i32, i32
  }
  func.func @transform_3(%arg0: i32, %arg1: i32) -> (i32, i32, i32) {
    %c0_i32 = arith.constant 0 : i32
    %c0_i32_0 = arith.constant 0 : i32
    %c0_i32_1 = arith.constant 0 : i32
    return %c0_i32, %c0_i32_0, %arg1 : i32, i32, i32
  }
  func.func @transform_4(%arg0: i32, %arg1: i32) -> (i32, i32, i32) {
    %c0_i32 = arith.constant 0 : i32
    %c0_i32_0 = arith.constant 0 : i32
    return %arg0, %c0_i32, %arg1 : i32, i32, i32
  }
}

module attributes {stable_mosaic.version = 11 : i64} {
  func.func @_afno_filter_kernel(%arg0: i32, %arg1: i32, %arg2: memref<1x4x16x40xf32, #tpu.memory_space<vmem>>, %arg3: memref<4x16x16xbf16, #tpu.memory_space<vmem>>, %arg4: memref<4x16x1xf32, #tpu.memory_space<vmem>>, %arg5: memref<4x16x16xbf16, #tpu.memory_space<vmem>>, %arg6: memref<4x16x1xf32, #tpu.memory_space<vmem>>, %arg7: memref<1x4x16x40xf32, #tpu.memory_space<vmem>>) attributes {dimension_semantics = [#tpu.dimension_semantics<parallel>, #tpu.dimension_semantics<parallel>], iteration_bounds = array<i64: 2, 1>, scalar_prefetch = 0 : i64, scratch_operands = 0 : i64, tpu.core_type = #tpu.core_type<tc>, window_params = [{transform_indices = @transform_0, window_bounds = array<i64: 1, 4, 16, 40>}, {pipeline_mode = #tpu.pipeline_mode<synchronous>, transform_indices = @transform_1, window_bounds = array<i64: 4, 16, 16>}, {pipeline_mode = #tpu.pipeline_mode<synchronous>, transform_indices = @transform_2, window_bounds = array<i64: 4, 16, 1>}, {pipeline_mode = #tpu.pipeline_mode<synchronous>, transform_indices = @transform_3, window_bounds = array<i64: 4, 16, 16>}, {pipeline_mode = #tpu.pipeline_mode<synchronous>, transform_indices = @transform_4, window_bounds = array<i64: 4, 16, 1>}, {transform_indices = @transform_5, window_bounds = array<i64: 1, 4, 16, 40>}]} {
    %c0 = arith.constant 0 : index
    %c0_0 = arith.constant 0 : index
    %c0_1 = arith.constant 0 : index
    %c0_2 = arith.constant 0 : index
    %0 = vector.load %arg2[%c0, %c0_0, %c0_1, %c0_2] : memref<1x4x16x40xf32, #tpu.memory_space<vmem>>, vector<1x4x16x40xf32>
    %1 = vector.shape_cast %0 : vector<1x4x16x40xf32> to vector<4x16x40xf32>
    %2 = arith.truncf %1 : vector<4x16x40xf32> to vector<4x16x40xbf16>
    %c0_3 = arith.constant 0 : index
    %c0_4 = arith.constant 0 : index
    %c0_5 = arith.constant 0 : index
    %3 = vector.load %arg3[%c0_3, %c0_4, %c0_5] : memref<4x16x16xbf16, #tpu.memory_space<vmem>>, vector<4x16x16xbf16>
    %cst = arith.constant dense<0.000000e+00> : vector<4x16x40xf32>
    %4 = tpu.matmul %3, %2, %cst {dimension_numbers = #tpu.dot_dimension_numbers<[2], [1], [1], [2], [0, 0, 0, 1, 1, 2], [0], [0]>} : vector<4x16x16xbf16>, vector<4x16x40xbf16>, vector<4x16x40xf32> -> vector<4x16x40xf32>
    %c0_6 = arith.constant 0 : index
    %c0_7 = arith.constant 0 : index
    %c0_8 = arith.constant 0 : index
    %5 = vector.load %arg4[%c0_6, %c0_7, %c0_8] : memref<4x16x1xf32, #tpu.memory_space<vmem>>, vector<4x16x1xf32>
    %6 = vector.broadcast %5 : vector<4x16x1xf32> to vector<4x16x40xf32>
    %7 = arith.addf %4, %6 : vector<4x16x40xf32>
    %cst_9 = arith.constant 0.000000e+00 : f32
    %8 = vector.broadcast %cst_9 : f32 to vector<4x16x40xf32>
    %9 = arith.maximumf %7, %8 : vector<4x16x40xf32>
    %c0_10 = arith.constant 0 : index
    %c0_11 = arith.constant 0 : index
    %c0_12 = arith.constant 0 : index
    %10 = vector.load %arg5[%c0_10, %c0_11, %c0_12] : memref<4x16x16xbf16, #tpu.memory_space<vmem>>, vector<4x16x16xbf16>
    %11 = arith.truncf %9 : vector<4x16x40xf32> to vector<4x16x40xbf16>
    %cst_13 = arith.constant dense<0.000000e+00> : vector<4x16x40xf32>
    %12 = tpu.matmul %10, %11, %cst_13 {dimension_numbers = #tpu.dot_dimension_numbers<[2], [1], [1], [2], [0, 0, 0, 1, 1, 2], [0], [0]>} : vector<4x16x16xbf16>, vector<4x16x40xbf16>, vector<4x16x40xf32> -> vector<4x16x40xf32>
    %c0_14 = arith.constant 0 : index
    %c0_15 = arith.constant 0 : index
    %c0_16 = arith.constant 0 : index
    %13 = vector.load %arg6[%c0_14, %c0_15, %c0_16] : memref<4x16x1xf32, #tpu.memory_space<vmem>>, vector<4x16x1xf32>
    %14 = vector.broadcast %13 : vector<4x16x1xf32> to vector<4x16x40xf32>
    %15 = arith.addf %12, %14 : vector<4x16x40xf32>
    %cst_17 = arith.constant 0.00999999977 : f32
    %16 = vector.broadcast %cst_17 : f32 to vector<4x16x40xf32>
    %17 = arith.cmpf ogt, %15, %16 : vector<4x16x40xf32>
    %cst_18 = arith.constant 0.00999999977 : f32
    %18 = vector.broadcast %cst_18 : f32 to vector<4x16x40xf32>
    %19 = arith.subf %15, %18 : vector<4x16x40xf32>
    %cst_19 = arith.constant -0.00999999977 : f32
    %20 = vector.broadcast %cst_19 : f32 to vector<4x16x40xf32>
    %21 = arith.cmpf olt, %15, %20 : vector<4x16x40xf32>
    %cst_20 = arith.constant 0.00999999977 : f32
    %22 = vector.broadcast %cst_20 : f32 to vector<4x16x40xf32>
    %23 = arith.addf %15, %22 : vector<4x16x40xf32>
    %cst_21 = arith.constant 0.000000e+00 : f32
    %24 = vector.broadcast %cst_21 : f32 to vector<4x16x40xf32>
    %25 = arith.select %21, %23, %24 : vector<4x16x40xi1>, vector<4x16x40xf32>
    %26 = arith.select %17, %19, %25 : vector<4x16x40xi1>, vector<4x16x40xf32>
    %c0_22 = arith.constant 0 : index
    %c0_23 = arith.constant 0 : index
    %c0_24 = arith.constant 0 : index
    %c0_25 = arith.constant 0 : index
    %27 = vector.load %arg7[%c0_22, %c0_23, %c0_24, %c0_25] : memref<1x4x16x40xf32, #tpu.memory_space<vmem>>, vector<1x4x16x40xf32>
    %28 = vector.shape_cast %27 : vector<1x4x16x40xf32> to vector<4x16x40xf32>
    %29 = vector.shape_cast %26 : vector<4x16x40xf32> to vector<1x4x16x40xf32>
    tpu.vector_store %arg7[%c0_22, %c0_23, %c0_24, %c0_25], %29 {strides = array<i32>} : memref<1x4x16x40xf32, #tpu.memory_space<vmem>>, vector<1x4x16x40xf32>,
    return
  }
  func.func @transform_0(%arg0: i32, %arg1: i32) -> (i32, i32, i32, i32) {
    %c0_i32 = arith.constant 0 : i32
    %c0_i32_0 = arith.constant 0 : i32
    %c0_i32_1 = arith.constant 0 : i32
    return %arg0, %c0_i32, %c0_i32_0, %arg1 : i32, i32, i32, i32
  }
  func.func @transform_1(%arg0: i32, %arg1: i32) -> (i32, i32, i32) {
    %c0_i32 = arith.constant 0 : i32
    %c0_i32_0 = arith.constant 0 : i32
    %c0_i32_1 = arith.constant 0 : i32
    %c0_i32_2 = arith.constant 0 : i32
    return %c0_i32, %c0_i32_0, %c0_i32_1 : i32, i32, i32
  }
  func.func @transform_2(%arg0: i32, %arg1: i32) -> (i32, i32, i32) {
    %c0_i32 = arith.constant 0 : i32
    %c0_i32_0 = arith.constant 0 : i32
    %c0_i32_1 = arith.constant 0 : i32
    %c0_i32_2 = arith.constant 0 : i32
    return %c0_i32, %c0_i32_0, %c0_i32_1 : i32, i32, i32
  }
  func.func @transform_3(%arg0: i32, %arg1: i32) -> (i32, i32, i32) {
    %c0_i32 = arith.constant 0 : i32
    %c0_i32_0 = arith.constant 0 : i32
    %c0_i32_1 = arith.constant 0 : i32
    %c0_i32_2 = arith.constant 0 : i32
    return %c0_i32, %c0_i32_0, %c0_i32_1 : i32, i32, i32
  }
  func.func @transform_4(%arg0: i32, %arg1: i32) -> (i32, i32, i32) {
    %c0_i32 = arith.constant 0 : i32
    %c0_i32_0 = arith.constant 0 : i32
    %c0_i32_1 = arith.constant 0 : i32
    %c0_i32_2 = arith.constant 0 : i32
    return %c0_i32, %c0_i32_0, %c0_i32_1 : i32, i32, i32
  }
  func.func @transform_5(%arg0: i32, %arg1: i32) -> (i32, i32, i32, i32) {
    %c0_i32 = arith.constant 0 : i32
    %c0_i32_0 = arith.constant 0 : i32
    %c0_i32_1 = arith.constant 0 : i32
    return %arg0, %c0_i32, %c0_i32_0, %arg1 : i32, i32, i32, i32
  }
}

module attributes {stable_mosaic.version = 11 : i64} {
  func.func @_mlp_kernel(%arg0: i32, %arg1: i32, %arg2: memref<1x32x64xf32, #tpu.memory_space<vmem>>, %arg3: memref<64x32xbf16, #tpu.memory_space<vmem>>, %arg4: memref<64x1xf32, #tpu.memory_space<vmem>>, %arg5: memref<32x64xbf16, #tpu.memory_space<vmem>>, %arg6: memref<32x1xf32, #tpu.memory_space<vmem>>, %arg7: memref<1x32x64xf32, #tpu.memory_space<vmem>>, %arg8: memref<1x32x64xf32, #tpu.memory_space<vmem>>) attributes {dimension_semantics = [#tpu.dimension_semantics<parallel>, #tpu.dimension_semantics<parallel>], iteration_bounds = array<i64: 2, 1>, scalar_prefetch = 0 : i64, scratch_operands = 0 : i64, tpu.core_type = #tpu.core_type<tc>, window_params = [{transform_indices = @transform_0, window_bounds = array<i64: 1, 32, 64>}, {pipeline_mode = #tpu.pipeline_mode<synchronous>, transform_indices = @transform_1, window_bounds = array<i64: 64, 32>}, {pipeline_mode = #tpu.pipeline_mode<synchronous>, transform_indices = @transform_2, window_bounds = array<i64: 64, 1>}, {pipeline_mode = #tpu.pipeline_mode<synchronous>, transform_indices = @transform_3, window_bounds = array<i64: 32, 64>}, {pipeline_mode = #tpu.pipeline_mode<synchronous>, transform_indices = @transform_4, window_bounds = array<i64: 32, 1>}, {transform_indices = @transform_5, window_bounds = array<i64: 1, 32, 64>}, {transform_indices = @transform_6, window_bounds = array<i64: 1, 32, 64>}]} {
    %c0 = arith.constant 0 : index
    %c0_0 = arith.constant 0 : index
    %c0_1 = arith.constant 0 : index
    %0 = vector.load %arg2[%c0, %c0_0, %c0_1] : memref<1x32x64xf32, #tpu.memory_space<vmem>>, vector<1x32x64xf32>
    %1 = vector.shape_cast %0 : vector<1x32x64xf32> to vector<32x64xf32>
    %2 = arith.truncf %1 : vector<32x64xf32> to vector<32x64xbf16>
    %c0_2 = arith.constant 0 : index
    %c0_3 = arith.constant 0 : index
    %3 = vector.load %arg3[%c0_2, %c0_3] : memref<64x32xbf16, #tpu.memory_space<vmem>>, vector<64x32xbf16>
    %cst = arith.constant dense<0.000000e+00> : vector<64x64xf32>
    %4 = tpu.matmul %3, %2, %cst {dimension_numbers = #tpu.dot_dimension_numbers<[1], [0], [0], [1], [0, 0, 1, 1], [], []>} : vector<64x32xbf16>, vector<32x64xbf16>, vector<64x64xf32> -> vector<64x64xf32>
    %c0_4 = arith.constant 0 : index
    %c0_5 = arith.constant 0 : index
    %5 = vector.load %arg4[%c0_4, %c0_5] : memref<64x1xf32, #tpu.memory_space<vmem>>, vector<64x1xf32>
    %6 = vector.broadcast %5 : vector<64x1xf32> to vector<64x64xf32>
    %7 = arith.addf %4, %6 : vector<64x64xf32>
    %cst_6 = arith.constant 5.000000e-01 : f32
    %8 = vector.broadcast %cst_6 : f32 to vector<64x64xf32>
    %9 = arith.mulf %8, %7 : vector<64x64xf32>
    %cst_7 = arith.constant 4.471500e-02 : f32
    %10 = vector.broadcast %cst_7 : f32 to vector<64x64xf32>
    %11 = arith.mulf %10, %7 : vector<64x64xf32>
    %12 = arith.mulf %11, %7 : vector<64x64xf32>
    %13 = arith.mulf %12, %7 : vector<64x64xf32>
    %14 = arith.addf %7, %13 : vector<64x64xf32>
    %cst_8 = arith.constant 0.797884583 : f32
    %15 = vector.broadcast %cst_8 : f32 to vector<64x64xf32>
    %16 = arith.mulf %15, %14 : vector<64x64xf32>
    %17 = math.tanh %16 : vector<64x64xf32>
    %cst_9 = arith.constant 1.000000e+00 : f32
    %18 = vector.broadcast %cst_9 : f32 to vector<64x64xf32>
    %19 = arith.addf %18, %17 : vector<64x64xf32>
    %20 = arith.mulf %9, %19 : vector<64x64xf32>
    %c0_10 = arith.constant 0 : index
    %c0_11 = arith.constant 0 : index
    %21 = vector.load %arg5[%c0_10, %c0_11] : memref<32x64xbf16, #tpu.memory_space<vmem>>, vector<32x64xbf16>
    %22 = arith.truncf %20 : vector<64x64xf32> to vector<64x64xbf16>
    %cst_12 = arith.constant dense<0.000000e+00> : vector<32x64xf32>
    %23 = tpu.matmul %21, %22, %cst_12 {dimension_numbers = #tpu.dot_dimension_numbers<[1], [0], [0], [1], [0, 0, 1, 1], [], []>} : vector<32x64xbf16>, vector<64x64xbf16>, vector<32x64xf32> -> vector<32x64xf32>
    %c0_13 = arith.constant 0 : index
    %c0_14 = arith.constant 0 : index
    %24 = vector.load %arg6[%c0_13, %c0_14] : memref<32x1xf32, #tpu.memory_space<vmem>>, vector<32x1xf32>
    %25 = vector.broadcast %24 : vector<32x1xf32> to vector<32x64xf32>
    %26 = arith.addf %23, %25 : vector<32x64xf32>
    %c0_15 = arith.constant 0 : index
    %c0_16 = arith.constant 0 : index
    %c0_17 = arith.constant 0 : index
    %27 = vector.load %arg7[%c0_15, %c0_16, %c0_17] : memref<1x32x64xf32, #tpu.memory_space<vmem>>, vector<1x32x64xf32>
    %28 = vector.shape_cast %27 : vector<1x32x64xf32> to vector<32x64xf32>
    %29 = arith.addf %26, %28 : vector<32x64xf32>
    %c0_18 = arith.constant 0 : index
    %c0_19 = arith.constant 0 : index
    %c0_20 = arith.constant 0 : index
    %30 = vector.load %arg8[%c0_18, %c0_19, %c0_20] : memref<1x32x64xf32, #tpu.memory_space<vmem>>, vector<1x32x64xf32>
    %31 = vector.shape_cast %30 : vector<1x32x64xf32> to vector<32x64xf32>
    %32 = vector.shape_cast %29 : vector<32x64xf32> to vector<1x32x64xf32>
    tpu.vector_store %arg8[%c0_18, %c0_19, %c0_20], %32 {strides = array<i32>} : memref<1x32x64xf32, #tpu.memory_space<vmem>>, vector<1x32x64xf32>,
    return
  }
  func.func @transform_0(%arg0: i32, %arg1: i32) -> (i32, i32, i32) {
    %c0_i32 = arith.constant 0 : i32
    %c0_i32_0 = arith.constant 0 : i32
    return %arg0, %c0_i32, %arg1 : i32, i32, i32
  }
  func.func @transform_1(%arg0: i32, %arg1: i32) -> (i32, i32) {
    %c0_i32 = arith.constant 0 : i32
    %c0_i32_0 = arith.constant 0 : i32
    %c0_i32_1 = arith.constant 0 : i32
    return %c0_i32, %c0_i32_0 : i32, i32
  }
  func.func @transform_2(%arg0: i32, %arg1: i32) -> (i32, i32) {
    %c0_i32 = arith.constant 0 : i32
    %c0_i32_0 = arith.constant 0 : i32
    %c0_i32_1 = arith.constant 0 : i32
    return %c0_i32, %c0_i32_0 : i32, i32
  }
  func.func @transform_3(%arg0: i32, %arg1: i32) -> (i32, i32) {
    %c0_i32 = arith.constant 0 : i32
    %c0_i32_0 = arith.constant 0 : i32
    %c0_i32_1 = arith.constant 0 : i32
    return %c0_i32, %c0_i32_0 : i32, i32
  }
  func.func @transform_4(%arg0: i32, %arg1: i32) -> (i32, i32) {
    %c0_i32 = arith.constant 0 : i32
    %c0_i32_0 = arith.constant 0 : i32
    %c0_i32_1 = arith.constant 0 : i32
    return %c0_i32, %c0_i32_0 : i32, i32
  }
  func.func @transform_5(%arg0: i32, %arg1: i32) -> (i32, i32, i32) {
    %c0_i32 = arith.constant 0 : i32
    %c0_i32_0 = arith.constant 0 : i32
    return %arg0, %c0_i32, %arg1 : i32, i32, i32
  }
  func.func @transform_6(%arg0: i32, %arg1: i32) -> (i32, i32, i32) {
    %c0_i32 = arith.constant 0 : i32
    %c0_i32_0 = arith.constant 0 : i32
    return %arg0, %c0_i32, %arg1 : i32, i32, i32
  }
}

module attributes {stable_mosaic.version = 11 : i64} {
  func.func @_ln_add2_kernel(%arg0: i32, %arg1: memref<32x64xf32, #tpu.memory_space<vmem>>, %arg2: memref<32x64xf32, #tpu.memory_space<vmem>>, %arg3: memref<32x64xf32, #tpu.memory_space<vmem>>, %arg4: memref<1x64xf32, #tpu.memory_space<vmem>>, %arg5: memref<1x64xf32, #tpu.memory_space<vmem>>, %arg6: memref<32x64xf32, #tpu.memory_space<vmem>>, %arg7: memref<32x64xf32, #tpu.memory_space<vmem>>) attributes {dimension_semantics = [#tpu.dimension_semantics<parallel>], iteration_bounds = array<i64: 2>, scalar_prefetch = 0 : i64, scratch_operands = 0 : i64, tpu.core_type = #tpu.core_type<tc>, window_params = [{transform_indices = @transform_0, window_bounds = array<i64: 32, 64>}, {transform_indices = @transform_1, window_bounds = array<i64: 32, 64>}, {transform_indices = @transform_2, window_bounds = array<i64: 32, 64>}, {pipeline_mode = #tpu.pipeline_mode<synchronous>, transform_indices = @transform_3, window_bounds = array<i64: 1, 64>}, {pipeline_mode = #tpu.pipeline_mode<synchronous>, transform_indices = @transform_4, window_bounds = array<i64: 1, 64>}, {transform_indices = @transform_5, window_bounds = array<i64: 32, 64>}, {transform_indices = @transform_6, window_bounds = array<i64: 32, 64>}]} {
    %c0 = arith.constant 0 : index
    %c0_0 = arith.constant 0 : index
    %0 = vector.load %arg1[%c0, %c0_0] : memref<32x64xf32, #tpu.memory_space<vmem>>, vector<32x64xf32>
    %c0_1 = arith.constant 0 : index
    %c0_2 = arith.constant 0 : index
    %1 = vector.load %arg2[%c0_1, %c0_2] : memref<32x64xf32, #tpu.memory_space<vmem>>, vector<32x64xf32>
    %2 = arith.addf %0, %1 : vector<32x64xf32>
    %c0_3 = arith.constant 0 : index
    %c0_4 = arith.constant 0 : index
    %3 = vector.load %arg3[%c0_3, %c0_4] : memref<32x64xf32, #tpu.memory_space<vmem>>, vector<32x64xf32>
    %4 = arith.addf %2, %3 : vector<32x64xf32>
    %c0_5 = arith.constant 0 : index
    %c0_6 = arith.constant 0 : index
    %5 = vector.load %arg7[%c0_5, %c0_6] : memref<32x64xf32, #tpu.memory_space<vmem>>, vector<32x64xf32>
    tpu.vector_store %arg7[%c0_5, %c0_6], %4 {strides = array<i32>} : memref<32x64xf32, #tpu.memory_space<vmem>>, vector<32x64xf32>,
    %cst = arith.constant dense<0.000000e+00> : vector<32xf32>
    %6 = vector.multi_reduction <add>, %4, %cst [1] : vector<32x64xf32> to vector<32xf32>
    %7 = vector.shape_cast %6 : vector<32xf32> to vector<32x1xf32>
    %cst_7 = arith.constant 6.400000e+01 : f32
    %8 = vector.broadcast %cst_7 : f32 to vector<32x1xf32>
    %9 = arith.divf %7, %8 : vector<32x1xf32>
    %10 = vector.broadcast %9 : vector<32x1xf32> to vector<32x64xf32>
    %11 = arith.subf %4, %10 : vector<32x64xf32>
    %12 = arith.mulf %11, %11 : vector<32x64xf32>
    %cst_8 = arith.constant dense<0.000000e+00> : vector<32xf32>
    %13 = vector.multi_reduction <add>, %12, %cst_8 [1] : vector<32x64xf32> to vector<32xf32>
    %14 = vector.shape_cast %13 : vector<32xf32> to vector<32x1xf32>
    %cst_9 = arith.constant 6.400000e+01 : f32
    %15 = vector.broadcast %cst_9 : f32 to vector<32x1xf32>
    %16 = arith.divf %14, %15 : vector<32x1xf32>
    %cst_10 = arith.constant 9.99999997E-7 : f32
    %17 = vector.broadcast %cst_10 : f32 to vector<32x1xf32>
    %18 = arith.addf %16, %17 : vector<32x1xf32>
    %19 = math.rsqrt %18 : vector<32x1xf32>
    %20 = vector.broadcast %19 : vector<32x1xf32> to vector<32x64xf32>
    %21 = arith.mulf %11, %20 : vector<32x64xf32>
    %c0_11 = arith.constant 0 : index
    %c0_12 = arith.constant 0 : index
    %22 = vector.load %arg4[%c0_11, %c0_12] : memref<1x64xf32, #tpu.memory_space<vmem>>, vector<1x64xf32>
    %23 = vector.broadcast %22 : vector<1x64xf32> to vector<32x64xf32>
    %24 = arith.mulf %21, %23 : vector<32x64xf32>
    %c0_13 = arith.constant 0 : index
    %c0_14 = arith.constant 0 : index
    %25 = vector.load %arg5[%c0_13, %c0_14] : memref<1x64xf32, #tpu.memory_space<vmem>>, vector<1x64xf32>
    %26 = vector.broadcast %25 : vector<1x64xf32> to vector<32x64xf32>
    %27 = arith.addf %24, %26 : vector<32x64xf32>
    %c0_15 = arith.constant 0 : index
    %c0_16 = arith.constant 0 : index
    %28 = vector.load %arg6[%c0_15, %c0_16] : memref<32x64xf32, #tpu.memory_space<vmem>>, vector<32x64xf32>
    tpu.vector_store %arg6[%c0_15, %c0_16], %27 {strides = array<i32>} : memref<32x64xf32, #tpu.memory_space<vmem>>, vector<32x64xf32>,
    return
  }
  func.func @transform_0(%arg0: i32) -> (i32, i32) {
    %c0_i32 = arith.constant 0 : i32
    %c0_i32_0 = arith.constant 0 : i32
    return %arg0, %c0_i32 : i32, i32
  }
  func.func @transform_1(%arg0: i32) -> (i32, i32) {
    %c0_i32 = arith.constant 0 : i32
    %c0_i32_0 = arith.constant 0 : i32
    return %arg0, %c0_i32 : i32, i32
  }
  func.func @transform_2(%arg0: i32) -> (i32, i32) {
    %c0_i32 = arith.constant 0 : i32
    %c0_i32_0 = arith.constant 0 : i32
    return %arg0, %c0_i32 : i32, i32
  }
  func.func @transform_3(%arg0: i32) -> (i32, i32) {
    %c0_i32 = arith.constant 0 : i32
    %c0_i32_0 = arith.constant 0 : i32
    %c0_i32_1 = arith.constant 0 : i32
    return %c0_i32, %c0_i32_0 : i32, i32
  }
  func.func @transform_4(%arg0: i32) -> (i32, i32) {
    %c0_i32 = arith.constant 0 : i32
    %c0_i32_0 = arith.constant 0 : i32
    %c0_i32_1 = arith.constant 0 : i32
    return %c0_i32, %c0_i32_0 : i32, i32
  }
  func.func @transform_5(%arg0: i32) -> (i32, i32) {
    %c0_i32 = arith.constant 0 : i32
    %c0_i32_0 = arith.constant 0 : i32
    return %arg0, %c0_i32 : i32, i32
  }
  func.func @transform_6(%arg0: i32) -> (i32, i32) {
    %c0_i32 = arith.constant 0 : i32
    %c0_i32_0 = arith.constant 0 : i32
    return %arg0, %c0_i32 : i32, i32
  }
}

module attributes {stable_mosaic.version = 11 : i64} {
  func.func @_head_kernel(%arg0: i32, %arg1: i32, %arg2: memref<1x32x64xf32, #tpu.memory_space<vmem>>, %arg3: memref<32x32xbf16, #tpu.memory_space<vmem>>, %arg4: memref<1x32x64xf32, #tpu.memory_space<vmem>>) attributes {dimension_semantics = [#tpu.dimension_semantics<parallel>, #tpu.dimension_semantics<parallel>], iteration_bounds = array<i64: 2, 1>, scalar_prefetch = 0 : i64, scratch_operands = 0 : i64, tpu.core_type = #tpu.core_type<tc>, window_params = [{transform_indices = @transform_0, window_bounds = array<i64: 1, 32, 64>}, {pipeline_mode = #tpu.pipeline_mode<synchronous>, transform_indices = @transform_1, window_bounds = array<i64: 32, 32>}, {transform_indices = @transform_2, window_bounds = array<i64: 1, 32, 64>}]} {
    %c0 = arith.constant 0 : index
    %c0_0 = arith.constant 0 : index
    %c0_1 = arith.constant 0 : index
    %0 = vector.load %arg2[%c0, %c0_0, %c0_1] : memref<1x32x64xf32, #tpu.memory_space<vmem>>, vector<1x32x64xf32>
    %1 = vector.shape_cast %0 : vector<1x32x64xf32> to vector<32x64xf32>
    %2 = arith.truncf %1 : vector<32x64xf32> to vector<32x64xbf16>
    %c0_2 = arith.constant 0 : index
    %c0_3 = arith.constant 0 : index
    %3 = vector.load %arg3[%c0_2, %c0_3] : memref<32x32xbf16, #tpu.memory_space<vmem>>, vector<32x32xbf16>
    %cst = arith.constant dense<0.000000e+00> : vector<32x64xf32>
    %4 = tpu.matmul %3, %2, %cst {dimension_numbers = #tpu.dot_dimension_numbers<[1], [0], [0], [1], [0, 0, 1, 1], [], []>} : vector<32x32xbf16>, vector<32x64xbf16>, vector<32x64xf32> -> vector<32x64xf32>
    %c0_4 = arith.constant 0 : index
    %c0_5 = arith.constant 0 : index
    %c0_6 = arith.constant 0 : index
    %5 = vector.load %arg4[%c0_4, %c0_5, %c0_6] : memref<1x32x64xf32, #tpu.memory_space<vmem>>, vector<1x32x64xf32>
    %6 = vector.shape_cast %5 : vector<1x32x64xf32> to vector<32x64xf32>
    %7 = vector.shape_cast %4 : vector<32x64xf32> to vector<1x32x64xf32>
    tpu.vector_store %arg4[%c0_4, %c0_5, %c0_6], %7 {strides = array<i32>} : memref<1x32x64xf32, #tpu.memory_space<vmem>>, vector<1x32x64xf32>,
    return
  }
  func.func @transform_0(%arg0: i32, %arg1: i32) -> (i32, i32, i32) {
    %c0_i32 = arith.constant 0 : i32
    %c0_i32_0 = arith.constant 0 : i32
    return %arg0, %c0_i32, %arg1 : i32, i32, i32
  }
  func.func @transform_1(%arg0: i32, %arg1: i32) -> (i32, i32) {
    %c0_i32 = arith.constant 0 : i32
    %c0_i32_0 = arith.constant 0 : i32
    %c0_i32_1 = arith.constant 0 : i32
    return %c0_i32, %c0_i32_0 : i32, i32
  }
  func.func @transform_2(%arg0: i32, %arg1: i32) -> (i32, i32, i32) {
    %c0_i32 = arith.constant 0 : i32
    %c0_i32_0 = arith.constant 0 : i32
    return %arg0, %c0_i32, %arg1 : i32, i32, i32
  }
}

</mosaic_0001>

<llo_original>
// kernel: _lambda_.10
$region0: #{_lambda_.10}
  #allocation0 [shape = 'u32[]', space=smem, size = 0x4, offset = 0x4, fixed_abs, tag = 'smem constant byte address 0x4 - core index']
  #allocation1 [shape = 'u32[72,128]{1,0:T(1,128)}', space=vmem, size = 0x9000, scoped, tag = 'internal scratch']
  %s0 = inlined_call_operand.vmem [shape: f32[2,32,64], index: 0, kind: input, shape index: {}]
  %s1 = inlined_call_operand.vmem [shape: bf16[32,32], index: 1, kind: input, shape index: {}]
  %s2 = inlined_call_operand.vmem [shape: f32[32,1], index: 2, kind: input, shape index: {}]
  %s3 = inlined_call_operand.vmem [shape: f32[1,32,64], index: 3, kind: input, shape index: {}]
  %s4 = inlined_call_operand.vmem [shape: f32[2,32,64], index: 4, kind: output, shape index: {}]
  %s5 = sld [smem:[#allocation0]]
  $region49: #{_lambda_.10} parent=0
    _
  %s7 = ssub.s32 1, %s5
  %s8 = scalar_select 0, %s7, %s5
  loop: start=0, step=1, limit=4
  $region2: #{_lambda_.10} parent=0 // loop_pre_header
    _
  $region3: #{_lambda_.10} parent=0 // loop_header
    %s10 = sphi 0, %s14
    %p11 = scmp.ge.s32.totalorder %s10, 4
    %s17 = sphi 0, %s29
    %s18 = sphi 0, %s25
    %s19 = sphi 0, %s17
    %s20 = sphi 0, %s18
    %s21 = sphi 0, %s19
    %s22 = sphi 0, %s20
    %s34 = sphi 0, %s36
    %s37 = sphi 0, %s34
    %s38 = sphi 0, %s37
    %s54 = sphi 0, %s38
    %s58 = sphi 0, %s58
    %s60 = sphi 0, %s58
    %s61 = sphi 0, %s60
    %s75 = sphi 0, %s61
    %s79 = sphi 0, %s79
    %s81 = sphi 0, %s79
    %s82 = sphi 0, %s81
    %s96 = sphi 0, %s82
    %s102 = sphi 0, %s104
    %s105 = sphi 0, %s102
    %s106 = sphi 0, %s105
    %s122 = sphi 0, %s106
    %s130 = sphi 0, %s132
    %s133 = sphi 0, %s130
    %s134 = sphi 0, %s133
    %s150 = sphi 0, %s134
  $region4: #{_lambda_.10} parent=0 // loop_header_branch
    %13 = sbr.rel (%p11) target = $region8
  $region5: #{_lambda_.10} parent=0 // loop_body
    %s15 = ssub.s32 %s10, 1
    %s16 = ssub.s32 %s10, 2
    %s23 = sadd.s32 1, %s18
    %p24 = scmp.ge.s32.totalorder %s23, 1
    %s25 = scalar_select %p24, 0, %s23
    %s26 = sadd.s32 1, %s17
    %s27 = scalar_select %p24, %s26, %s17
    %p28 = scmp.ge.s32.totalorder %s27, 2
    %s29 = scalar_select %p28, 0, %s27
    %s30 = ssub.s32 %s17, %s29
    %s31 = ssub.s32 %s18, %s25
    %s32 = sor.u32 %s30, %s31
    %p33 = scmp.eq.s32.totalorder %s32, 0
    %s35 = sadd.s32 %s34, 1
    %s36 = scalar_select %p33, %s34, %s35
    %p39 = pneg %p33
    %p40 = scmp.eq.s32.totalorder %s10, 1
    %p41 = por %p39, %p40
    %p42 = scmp.ne.s32.totalorder %s34, %s37
    %p43 = scmp.eq.s32.totalorder %s10, 0
    %p44 = por %p42, %p43
    %p45 = scmp.ne.s32.totalorder %s34, %s37
    %p46 = scmp.eq.s32.totalorder %s15, 1
    %p47 = por %p45, %p46
    %p48 = scmp.ne.s32.totalorder %s37, %s38
    %p49 = scmp.eq.s32.totalorder %s15, 0
    %p50 = por %p48, %p49
    %p51 = scmp.ne.s32.totalorder %s37, %s38
    %p52 = scmp.eq.s32.totalorder %s16, 1
    %p53 = por %p51, %p52
    %p55 = scmp.ne.s32.totalorder %s38, %s54
    %p56 = scmp.eq.s32.totalorder %s16, 0
    %p57 = por %p55, %p56
    %s59 = sadd.s32 %s58, 1
    %p62 = scmp.eq.s32.totalorder %s10, 1
    %p63 = scmp.ne.s32.totalorder %s58, %s60
    %p64 = scmp.eq.s32.totalorder %s10, 0
    %p65 = por %p63, %p64
    %p66 = scmp.ne.s32.totalorder %s58, %s60
    %p67 = scmp.eq.s32.totalorder %s15, 1
    %p68 = por %p66, %p67
    %p69 = scmp.ne.s32.totalorder %s60, %s61
    %p70 = scmp.eq.s32.totalorder %s15, 0
    %p71 = por %p69, %p70
    %p72 = scmp.ne.s32.totalorder %s60, %s61
    %p73 = scmp.eq.s32.totalorder %s16, 1
    %p74 = por %p72, %p73
    %p76 = scmp.ne.s32.totalorder %s61, %s75
    %p77 = scmp.eq.s32.totalorder %s16, 0
    %p78 = por %p76, %p77
    %s80 = sadd.s32 %s79, 1
    %p83 = scmp.eq.s32.totalorder %s10, 1
    %p84 = scmp.ne.s32.totalorder %s79, %s81
    %p85 = scmp.eq.s32.totalorder %s10, 0
    %p86 = por %p84, %p85
    %p87 = scmp.ne.s32.totalorder %s79, %s81
    %p88 = scmp.eq.s32.totalorder %s15, 1
    %p89 = por %p87, %p88
    %p90 = scmp.ne.s32.totalorder %s81, %s82
    %p91 = scmp.eq.s32.totalorder %s15, 0
    %p92 = por %p90, %p91
    %p93 = scmp.ne.s32.totalorder %s81, %s82
    %p94 = scmp.eq.s32.totalorder %s16, 1
    %p95 = por %p93, %p94
    %p97 = scmp.ne.s32.totalorder %s82, %s96
    %p98 = scmp.eq.s32.totalorder %s16, 0
    %p99 = por %p97, %p98
    %s100 = ssub.s32 %s18, %s25
    %p101 = scmp.eq.s32.totalorder %s100, 0
    %s103 = sadd.s32 %s102, 1
    %s104 = scalar_select %p101, %s102, %s103
    %p107 = pneg %p101
    %p108 = scmp.eq.s32.totalorder %s10, 1
    %p109 = por %p107, %p108
    %p110 = scmp.ne.s32.totalorder %s102, %s105
    %p111 = scmp.eq.s32.totalorder %s10, 0
    %p112 = por %p110, %p111
    %p113 = scmp.ne.s32.totalorder %s102, %s105
    %p114 = scmp.eq.s32.totalorder %s15, 1
    %p115 = por %p113, %p114
    %p116 = scmp.ne.s32.totalorder %s105, %s106
    %p117 = scmp.eq.s32.totalorder %s15, 0
    %p118 = por %p116, %p117
    %p119 = scmp.ne.s32.totalorder %s105, %s106
    %p120 = scmp.eq.s32.totalorder %s16, 1
    %p121 = por %p119, %p120
    %p123 = scmp.ne.s32.totalorder %s106, %s122
    %p124 = scmp.eq.s32.totalorder %s16, 0
    %p125 = por %p123, %p124
    %s126 = ssub.s32 %s17, %s29
    %s127 = ssub.s32 %s18, %s25
    %s128 = sor.u32 %s126, %s127
    %p129 = scmp.eq.s32.totalorder %s128, 0
    %s131 = sadd.s32 %s130, 1
    %s132 = scalar_select %p129, %s130, %s131
    %p135 = pneg %p129
    %p136 = scmp.eq.s32.totalorder %s10, 1
    %p137 = por %p135, %p136
    %p138 = scmp.ne.s32.totalorder %s130, %s133
    %p139 = scmp.eq.s32.totalorder %s10, 0
    %p140 = por %p138, %p139
    %p141 = scmp.ne.s32.totalorder %s130, %s133
    %p142 = scmp.eq.s32.totalorder %s15, 1
    %p143 = por %p141, %p142
    %p144 = scmp.ne.s32.totalorder %s133, %s134
    %p145 = scmp.eq.s32.totalorder %s15, 0
    %p146 = por %p144, %p145
    %p147 = scmp.ne.s32.totalorder %s133, %s134
    %p148 = scmp.eq.s32.totalorder %s16, 1
    %p149 = por %p147, %p148
    %p151 = scmp.ne.s32.totalorder %s134, %s150
    %p152 = scmp.eq.s32.totalorder %s16, 0
    %p153 = por %p151, %p152
    %p154 = scmp.le.s32.totalorder 1, %s10
    %p155 = scmp.lt.s32.totalorder %s10, 3
    %p156 = pnand %p154, %p155
    %p157 = pneg %p156
    // Predicated region
    $region9: #{_lambda_.10} parent=5 // pred_check
      _
    $region10: #{_lambda_.10} parent=5 // pred_check_branch
      %159 = sbr.rel (%p156) target = $region12
    $region11: #{_lambda_.10} parent=5 // pred_region
      %s160 = ssub.s32 %s10, 1
      // Predicated region
      $region13: #{_lambda_.10} parent=11 // pred_check
        %p161 = pneg %p71
      $region14: #{_lambda_.10} parent=11 // pred_check_branch
        %163 = sbr.rel (%p161) target = $region16
      $region15: #{_lambda_.10} parent=11 // pred_region
        _
      $region16: #{_lambda_.10} parent=11 // pred_fallthru
        _
      // Predicated region
      $region17: #{_lambda_.10} parent=11 // pred_check
        %p164 = pneg %p92
      $region18: #{_lambda_.10} parent=11 // pred_check_branch
        %166 = sbr.rel (%p164) target = $region20
      $region19: #{_lambda_.10} parent=11 // pred_region
        _
      $region20: #{_lambda_.10} parent=11 // pred_fallthru
        _
      // Predicated region
      $region21: #{_lambda_.10} parent=11 // pred_check
        %p167 = pneg %p118
      $region22: #{_lambda_.10} parent=11 // pred_check_branch
        %169 = sbr.rel (%p167) target = $region24
      $region23: #{_lambda_.10} parent=11 // pred_region
        %p170 = scmp.lt.s32.totalorder %s20, 0
        %s171 = scalar_select %p170, %s20, 0
        %s172 = smul.addr %s171, 8
        %s173 = scalar_lea.vmem %s3, %s172
      $region24: #{_lambda_.10} parent=11 // pred_fallthru
        _
    $region12: #{_lambda_.10} parent=5 // pred_fallthru
      _
    %p174 = scmp.lt.s32.totalorder %s10, 2
    // Predicated region
    $region25: #{_lambda_.10} parent=5 // pred_check
      %p175 = pneg %p174
    $region26: #{_lambda_.10} parent=5 // pred_check_branch
      %177 = sbr.rel (%p175) target = $region28
    $region27: #{_lambda_.10} parent=5 // pred_region
      // Predicated region
      $region29: #{_lambda_.10} parent=27 // pred_check
        %p178 = pneg %p44
      $region30: #{_lambda_.10} parent=27 // pred_check_branch
        %180 = sbr.rel (%p178) target = $region32
      $region31: #{_lambda_.10} parent=27 // pred_region
        %p181 = scmp.lt.s32.totalorder %s17, 1
        %s182 = scalar_select %p181, %s17, 1
        %p183 = scmp.lt.s32.totalorder %s18, 0
        %s184 = scalar_select %p183, %s18, 0
        %s185 = smul.addr %s182, 4
        %s186 = sadd.s32 %s184, %s185
        %s187 = smul.addr %s186, 8
        %s188 = scalar_lea.vmem %s0, %s187
      $region32: #{_lambda_.10} parent=27 // pred_fallthru
        _
    $region28: #{_lambda_.10} parent=5 // pred_fallthru
      _
    %p189 = scmp.le.s32.totalorder 1, %s10
    %p190 = scmp.lt.s32.totalorder %s10, 3
    %p191 = pnand %p189, %p190
    %p192 = pneg %p191
    // Predicated region
    $region33: #{_lambda_.10} parent=5 // pred_check
      _
    $region34: #{_lambda_.10} parent=5 // pred_check_branch
      %194 = sbr.rel (%p191) target = $region36
    $region35: #{_lambda_.10} parent=5 // pred_region
      %s195 = ssub.s32 %s10, 1
      %p196 = scmp.lt.s32.totalorder %s19, 1
      %s197 = scalar_select %p196, %s19, 1
      %p198 = scmp.lt.s32.totalorder %s20, 0
      %s199 = scalar_select %p198, %s20, 0
      %s200 = smul.addr %s197, 4
      %s201 = sadd.s32 %s199, %s200
      %s202 = smul.addr %s201, 8
      %s203 = scalar_lea.vmem %s0, %s202
      %p204 = pneg %p50
      %p205 = pneg %p47
      %p206 = pneg %p71
      %p207 = pneg %p68
      %p208 = pneg %p92
      %p209 = pneg %p89
      %p210 = scmp.lt.s32.totalorder %s20, 0
      %s211 = scalar_select %p210, %s20, 0
      %s212 = smul.addr %s211, 8
      %s213 = scalar_lea.vmem %s3, %s212
      %p214 = pneg %p118
      %p215 = pneg %p115
      %p216 = pneg %p146
      %p217 = pneg %p143
      %p218 = scmp.lt.s32.totalorder %s19, 1
      %s219 = scalar_select %p218, %s19, 1
      %p220 = scmp.lt.s32.totalorder %s20, 0
      %s221 = scalar_select %p220, %s20, 0
      %s222 = smul.addr %s219, 4
      %s223 = sadd.s32 %s221, %s222
      %s224 = smul.addr %s223, 8
      %s225 = scalar_lea.vmem %s4, %s224
      %p226 = scmp.lt.s32.totalorder %s19, 1
      %s227 = scalar_select %p226, %s19, 1
      %p228 = scmp.lt.s32.totalorder %s20, 0
      %s229 = scalar_select %p228, %s20, 0
      %s230 = smul.addr %s227, 4
      %s231 = sadd.s32 %s229, %s230
      %s232 = smul.addr %s231, 8
      %s233 = scalar_lea.vmem %s0, %s232
      %p234 = scmp.lt.s32.totalorder %s20, 0
      %s235 = scalar_select %p234, %s20, 0
      %s236 = smul.addr %s235, 8
      %s237 = scalar_lea.vmem %s3, %s236
      %p238 = scmp.lt.s32.totalorder %s19, 1
      %s239 = scalar_select %p238, %s19, 1
      %p240 = scmp.lt.s32.totalorder %s20, 0
      %s241 = scalar_select %p240, %s20, 0
      %s242 = smul.addr %s239, 4
      %s243 = sadd.s32 %s241, %s242
      %s244 = smul.addr %s243, 8
      %s245 = scalar_lea.vmem %s4, %s244
      %v247 = vld [vmem:[%s233] sm:$0xff]
      %v248 = vld [vmem:[%s233 + $0x8] sm:$0xff]
      %v249 = vld [vmem:[%s233 + $0x10] sm:$0xff]
      %v250 = vld [vmem:[%s233 + $0x18] sm:$0xff]
      %v251 = vpack.c.bf16 %v248, %v247
      %v252 = vpack.c.bf16 %v250, %v249
      %v253 = vld [vmem:[%s1] sm:$0xf]
      %v254 = vld [vmem:[%s1 + $0x4] sm:$0xf]
      %v255 = vld [vmem:[%s1 + $0x8] sm:$0xf]
      %v256 = vld [vmem:[%s1 + $0xc] sm:$0xf]
      %v257 = vld [vmem:[%s2] sm:$0xff]
      %v258 = vld [vmem:[%s2 + $0x8] sm:$0xff]
      %v259 = vld [vmem:[%s2 + $0x10] sm:$0xff]
      %v260 = vld [vmem:[%s2 + $0x18] sm:$0xff]
      %262 = vset.pattern.permute.xlu0 0
      %263 = vperm.xlu0 %262, %v257
      %v264 = vpop.permute.xlu0 %263
      %267 = vset.pattern.permute.xlu0 0
      %268 = vperm.xlu0 %267, %v258
      %v269 = vpop.permute.xlu0 %268
      %272 = vset.pattern.permute.xlu0 0
      %273 = vperm.xlu0 %272, %v259
      %v274 = vpop.permute.xlu0 %273
      %277 = vset.pattern.permute.xlu0 0
      %278 = vperm.xlu0 %277, %v260
      %v279 = vpop.permute.xlu0 %278
      %v285 = vunpack.c.l.b16 %v253
      %v286 = vunpack.c.l.b16 %v254
      %v287 = vunpack.c.l.b16 %v255
      %v288 = vunpack.c.l.b16 %v256
      %v289 = vpack.c.b16 %v286, %v285
      %v290 = vpack.c.b16 %v288, %v287
      %vm291 = vcmask 261120
      %v293 = vsel %vm291, %v289, 0
      %v296 = vsel %vm291, %v290, 0
      %298 = vmatpush.bf16.msra.mxu0 0
      %299 = vmatpush.bf16.msra.mxu0 0
      %300 = vmatpush.bf16.msra.mxu0 0
      %301 = vmatpush.bf16.msra.mxu0 0
      %302 = vmatpush.bf16.msra.mxu0 0
      %303 = vmatpush.bf16.msra.mxu0 0
      %304 = vmatpush.bf16.msra.mxu0 %v252
      %305 = vmatpush.bf16.msra.mxu0 %v251
      %306 = vmatmul.bf16.gmra.mxu0 %v293
      %v307 = vpop.f32.mrf.mxu0
      %v308 = vadd.f32 %v264, %v307
      %v309 = vpop.f32.mrf.mxu0
      %v310 = vadd.f32 %v269, %v309
      %311 = vmatmul.bf16.gmra.mxu0 %v296
      %v312 = vpop.f32.mrf.mxu0
      %v313 = vadd.f32 %v274, %v312
      %v314 = vpop.f32.mrf.mxu0
      %v315 = vadd.f32 %v279, %v314
      %316 = vdwg.mxu0
      %v317 = vld [vmem:[%s237] sm:$0xff]
      %v318 = vld [vmem:[%s237 + $0x8] sm:$0xff]
      %v319 = vld [vmem:[%s237 + $0x10] sm:$0xff]
      %v320 = vld [vmem:[%s237 + $0x18] sm:$0xff]
      %v321 = vadd.f32 %v308, %v317
      %v322 = vadd.f32 %v310, %v318
      %v323 = vadd.f32 %v313, %v319
      %v324 = vadd.f32 %v315, %v320
      %vm325 = vcmask 523264
      %326 = vst.msk [vmem:[%s245] sm:$0xff] %vm325, %v321
      %327 = vst.msk [vmem:[%s245 + $0x8] sm:$0xff] %vm325, %v322
      %328 = vst.msk [vmem:[%s245 + $0x10] sm:$0xff] %vm325, %v323
      %329 = vst.msk [vmem:[%s245 + $0x18] sm:$0xff] %vm325, %v324
      %p330 = scmp.lt.s32.totalorder %s19, 1
      %s331 = scalar_select %p330, %s19, 1
      %p332 = scmp.lt.s32.totalorder %s20, 0
      %s333 = scalar_select %p332, %s20, 0
      %s334 = smul.addr %s331, 4
      %s335 = sadd.s32 %s333, %s334
      %s336 = smul.addr %s335, 8
      %s337 = scalar_lea.vmem %s4, %s336
      // Predicated region
      $region37: #{_lambda_.10} parent=35 // pred_check
        %p338 = pneg %p143
      $region38: #{_lambda_.10} parent=35 // pred_check_branch
        %340 = sbr.rel (%p338) target = $region40
      $region39: #{_lambda_.10} parent=35 // pred_region
        _
      $region40: #{_lambda_.10} parent=35 // pred_fallthru
        _
    $region36: #{_lambda_.10} parent=5 // pred_fallthru
      _
    %p341 = scmp.le.s32.totalorder 2, %s10
    // Predicated region
    $region41: #{_lambda_.10} parent=5 // pred_check
      %p342 = pneg %p341
    $region42: #{_lambda_.10} parent=5 // pred_check_branch
      %344 = sbr.rel (%p342) target = $region44
    $region43: #{_lambda_.10} parent=5 // pred_region
      %s345 = ssub.s32 %s10, 2
      // Predicated region
      $region45: #{_lambda_.10} parent=43 // pred_check
        %p346 = pneg %p149
      $region46: #{_lambda_.10} parent=43 // pred_check_branch
        %348 = sbr.rel (%p346) target = $region48
      $region47: #{_lambda_.10} parent=43 // pred_region
        %p349 = scmp.lt.s32.totalorder %s21, 1
        %s350 = scalar_select %p349, %s21, 1
        %p351 = scmp.lt.s32.totalorder %s22, 0
        %s352 = scalar_select %p351, %s22, 0
        %s353 = smul.addr %s350, 4
        %s354 = sadd.s32 %s352, %s353
        %s355 = smul.addr %s354, 8
        %s356 = scalar_lea.vmem %s4, %s355
      $region48: #{_lambda_.10} parent=43 // pred_fallthru
        _
    $region44: #{_lambda_.10} parent=5 // pred_fallthru
      _
  $region6: #{_lambda_.10} parent=0 // loop_footer
    %s14 = sadd.s32 1, %s10
  $region7: #{_lambda_.10} parent=0 // loop_footer_branch
    %9 = sbr.rel target = $region3
  $region8: #{_lambda_.10} parent=0 // loop_exit
    _

// kernel: _lambda_.11
$region0: #{_lambda_.11}
  #allocation0 [shape = 'u32[]', space=smem, size = 0x4, offset = 0x4, fixed_abs, tag = 'smem constant byte address 0x4 - core index']
  #allocation1 [shape = 'u32[72,128]{1,0:T(1,128)}', space=vmem, size = 0x9000, scoped, tag = 'internal scratch']
  %s0 = inlined_call_operand.vmem [shape: f32[64,64], index: 0, kind: input, shape index: {}]
  %s1 = inlined_call_operand.vmem [shape: f32[1,64], index: 1, kind: input, shape index: {}]
  %s2 = inlined_call_operand.vmem [shape: f32[1,64], index: 2, kind: input, shape index: {}]
  %s3 = inlined_call_operand.vmem [shape: f32[64,64], index: 3, kind: output, shape index: {}]
  %s4 = sld [smem:[#allocation0]]
  $region45: #{_lambda_.11} parent=0
    _
  %s6 = ssub.s32 1, %s4
  %s7 = scalar_select 0, %s6, %s4
  loop: start=0, step=1, limit=4
  $region2: #{_lambda_.11} parent=0 // loop_pre_header
    _
  $region3: #{_lambda_.11} parent=0 // loop_header
    %s9 = sphi 0, %s13
    %p10 = scmp.ge.s32.totalorder %s9, 4
    %s19 = sphi 0, %s21
    %s22 = sphi 0, %s19
    %s23 = sphi 0, %s22
    %s39 = sphi 0, %s23
    %s43 = sphi 0, %s43
    %s45 = sphi 0, %s43
    %s46 = sphi 0, %s45
    %s60 = sphi 0, %s46
    %s64 = sphi 0, %s64
    %s66 = sphi 0, %s64
    %s67 = sphi 0, %s66
    %s81 = sphi 0, %s67
    %s87 = sphi 0, %s89
    %s90 = sphi 0, %s87
    %s91 = sphi 0, %s90
    %s107 = sphi 0, %s91
  $region4: #{_lambda_.11} parent=0 // loop_header_branch
    %12 = sbr.rel (%p10) target = $region8
  $region5: #{_lambda_.11} parent=0 // loop_body
    %s14 = ssub.s32 %s9, 1
    %s15 = ssub.s32 %s9, 2
    %s16 = sadd.s32 %s9, 1
    %s17 = ssub.s32 %s9, %s16
    %p18 = scmp.eq.s32.totalorder %s17, 0
    %s20 = sadd.s32 %s19, 1
    %s21 = scalar_select %p18, %s19, %s20
    %p24 = pneg %p18
    %p25 = scmp.eq.s32.totalorder %s9, 1
    %p26 = por %p24, %p25
    %p27 = scmp.ne.s32.totalorder %s19, %s22
    %p28 = scmp.eq.s32.totalorder %s9, 0
    %p29 = por %p27, %p28
    %p30 = scmp.ne.s32.totalorder %s19, %s22
    %p31 = scmp.eq.s32.totalorder %s14, 1
    %p32 = por %p30, %p31
    %p33 = scmp.ne.s32.totalorder %s22, %s23
    %p34 = scmp.eq.s32.totalorder %s14, 0
    %p35 = por %p33, %p34
    %p36 = scmp.ne.s32.totalorder %s22, %s23
    %p37 = scmp.eq.s32.totalorder %s15, 1
    %p38 = por %p36, %p37
    %p40 = scmp.ne.s32.totalorder %s23, %s39
    %p41 = scmp.eq.s32.totalorder %s15, 0
    %p42 = por %p40, %p41
    %s44 = sadd.s32 %s43, 1
    %p47 = scmp.eq.s32.totalorder %s9, 1
    %p48 = scmp.ne.s32.totalorder %s43, %s45
    %p49 = scmp.eq.s32.totalorder %s9, 0
    %p50 = por %p48, %p49
    %p51 = scmp.ne.s32.totalorder %s43, %s45
    %p52 = scmp.eq.s32.totalorder %s14, 1
    %p53 = por %p51, %p52
    %p54 = scmp.ne.s32.totalorder %s45, %s46
    %p55 = scmp.eq.s32.totalorder %s14, 0
    %p56 = por %p54, %p55
    %p57 = scmp.ne.s32.totalorder %s45, %s46
    %p58 = scmp.eq.s32.totalorder %s15, 1
    %p59 = por %p57, %p58
    %p61 = scmp.ne.s32.totalorder %s46, %s60
    %p62 = scmp.eq.s32.totalorder %s15, 0
    %p63 = por %p61, %p62
    %s65 = sadd.s32 %s64, 1
    %p68 = scmp.eq.s32.totalorder %s9, 1
    %p69 = scmp.ne.s32.totalorder %s64, %s66
    %p70 = scmp.eq.s32.totalorder %s9, 0
    %p71 = por %p69, %p70
    %p72 = scmp.ne.s32.totalorder %s64, %s66
    %p73 = scmp.eq.s32.totalorder %s14, 1
    %p74 = por %p72, %p73
    %p75 = scmp.ne.s32.totalorder %s66, %s67
    %p76 = scmp.eq.s32.totalorder %s14, 0
    %p77 = por %p75, %p76
    %p78 = scmp.ne.s32.totalorder %s66, %s67
    %p79 = scmp.eq.s32.totalorder %s15, 1
    %p80 = por %p78, %p79
    %p82 = scmp.ne.s32.totalorder %s67, %s81
    %p83 = scmp.eq.s32.totalorder %s15, 0
    %p84 = por %p82, %p83
    %s85 = ssub.s32 %s9, %s16
    %p86 = scmp.eq.s32.totalorder %s85, 0
    %s88 = sadd.s32 %s87, 1
    %s89 = scalar_select %p86, %s87, %s88
    %p92 = pneg %p86
    %p93 = scmp.eq.s32.totalorder %s9, 1
    %p94 = por %p92, %p93
    %p95 = scmp.ne.s32.totalorder %s87, %s90
    %p96 = scmp.eq.s32.totalorder %s9, 0
    %p97 = por %p95, %p96
    %p98 = scmp.ne.s32.totalorder %s87, %s90
    %p99 = scmp.eq.s32.totalorder %s14, 1
    %p100 = por %p98, %p99
    %p101 = scmp.ne.s32.totalorder %s90, %s91
    %p102 = scmp.eq.s32.totalorder %s14, 0
    %p103 = por %p101, %p102
    %p104 = scmp.ne.s32.totalorder %s90, %s91
    %p105 = scmp.eq.s32.totalorder %s15, 1
    %p106 = por %p104, %p105
    %p108 = scmp.ne.s32.totalorder %s91, %s107
    %p109 = scmp.eq.s32.totalorder %s15, 0
    %p110 = por %p108, %p109
    %p111 = scmp.le.s32.totalorder 1, %s9
    %p112 = scmp.lt.s32.totalorder %s9, 3
    %p113 = pnand %p111, %p112
    %p114 = pneg %p113
    // Predicated region
    $region9: #{_lambda_.11} parent=5 // pred_check
      _
    $region10: #{_lambda_.11} parent=5 // pred_check_branch
      %116 = sbr.rel (%p113) target = $region12
    $region11: #{_lambda_.11} parent=5 // pred_region
      %s117 = ssub.s32 %s9, 1
      // Predicated region
      $region13: #{_lambda_.11} parent=11 // pred_check
        %p118 = pneg %p56
      $region14: #{_lambda_.11} parent=11 // pred_check_branch
        %120 = sbr.rel (%p118) target = $region16
      $region15: #{_lambda_.11} parent=11 // pred_region
        _
      $region16: #{_lambda_.11} parent=11 // pred_fallthru
        _
      // Predicated region
      $region17: #{_lambda_.11} parent=11 // pred_check
        %p121 = pneg %p77
      $region18: #{_lambda_.11} parent=11 // pred_check_branch
        %123 = sbr.rel (%p121) target = $region20
      $region19: #{_lambda_.11} parent=11 // pred_region
        _
      $region20: #{_lambda_.11} parent=11 // pred_fallthru
        _
    $region12: #{_lambda_.11} parent=5 // pred_fallthru
      _
    %p124 = scmp.lt.s32.totalorder %s9, 2
    // Predicated region
    $region21: #{_lambda_.11} parent=5 // pred_check
      %p125 = pneg %p124
    $region22: #{_lambda_.11} parent=5 // pred_check_branch
      %127 = sbr.rel (%p125) target = $region24
    $region23: #{_lambda_.11} parent=5 // pred_region
      // Predicated region
      $region25: #{_lambda_.11} parent=23 // pred_check
        %p128 = pneg %p29
      $region26: #{_lambda_.11} parent=23 // pred_check_branch
        %130 = sbr.rel (%p128) target = $region28
      $region27: #{_lambda_.11} parent=23 // pred_region
        %s131 = smul.u32 4, %s9
        %p132 = scmp.lt.s32.totalorder %s131, 7
        %s133 = scalar_select %p132, %s131, 7
        %s134 = smul.addr %s133, 8
        %s135 = scalar_lea.vmem %s0, %s134
        %s136 = smul.u32 4, %s9
      $region28: #{_lambda_.11} parent=23 // pred_fallthru
        _
    $region24: #{_lambda_.11} parent=5 // pred_fallthru
      _
    %p137 = scmp.le.s32.totalorder 1, %s9
    %p138 = scmp.lt.s32.totalorder %s9, 3
    %p139 = pnand %p137, %p138
    %p140 = pneg %p139
    // Predicated region
    $region29: #{_lambda_.11} parent=5 // pred_check
      _
    $region30: #{_lambda_.11} parent=5 // pred_check_branch
      %142 = sbr.rel (%p139) target = $region32
    $region31: #{_lambda_.11} parent=5 // pred_region
      %s143 = ssub.s32 %s9, 1
      %s144 = smul.u32 4, %s14
      %p145 = scmp.lt.s32.totalorder %s144, 7
      %s146 = scalar_select %p145, %s144, 7
      %s147 = smul.addr %s146, 8
      %s148 = scalar_lea.vmem %s0, %s147
      %p149 = pneg %p35
      %p150 = pneg %p32
      %p151 = pneg %p56
      %p152 = pneg %p53
      %p153 = pneg %p77
      %p154 = pneg %p74
      %p155 = pneg %p103
      %p156 = pneg %p100
      %s157 = smul.u32 4, %s14
      %p158 = scmp.lt.s32.totalorder %s157, 7
      %s159 = scalar_select %p158, %s157, 7
      %s160 = smul.addr %s159, 8
      %s161 = scalar_lea.vmem %s3, %s160
      %s162 = smul.u32 4, %s14
      %p163 = scmp.lt.s32.totalorder %s162, 7
      %s164 = scalar_select %p163, %s162, 7
      %s165 = smul.addr %s164, 8
      %s166 = scalar_lea.vmem %s0, %s165
      %s167 = smul.u32 4, %s14
      %s168 = smul.u32 4, %s14
      %p169 = scmp.lt.s32.totalorder %s168, 7
      %s170 = scalar_select %p169, %s168, 7
      %s171 = smul.addr %s170, 8
      %s172 = scalar_lea.vmem %s3, %s171
      %s173 = smul.u32 4, %s14
      %v174 = vld [vmem:[%s166] sm:$0xff]
      %v175 = vld [vmem:[%s166 + $0x8] sm:$0xff]
      %v176 = vld [vmem:[%s166 + $0x10] sm:$0xff]
      %v177 = vld [vmem:[%s166 + $0x18] sm:$0xff]
      %vm178 = vcmask 523264
      %v179 = vsel %vm178, %v174, 0.0
      %180 = vadd.xlane.f32.xlu0 %v179
      %v181 = vpop.xlane.xlu0 %180
      %v182 = vsel %vm178, %v175, 0.0
      %183 = vadd.xlane.f32.xlu0 %v182
      %v184 = vpop.xlane.xlu0 %183
      %v185 = vsel %vm178, %v176, 0.0
      %186 = vadd.xlane.f32.xlu0 %v185
      %v187 = vpop.xlane.xlu0 %186
      %v188 = vsel %vm178, %v177, 0.0
      %189 = vadd.xlane.f32.xlu0 %v188
      %v190 = vpop.xlane.xlu0 %189
      %v191 = vrcp.pop 64.0
      %v192 = vmul.f32 64.0, %v191
      %v193 = vsub.f32 1.0, %v192
      %v194 = vmul.f32 %v191, %v193
      %v195 = vadd.f32 %v191, %v194
      %vm196 = vweird.f32 %v191
      %v197 = vsel %vm196, %v191, %v195
      %v198 = vmul.f32 %v181, %v197
      %v199 = vmul.f32 %v184, %v197
      %v200 = vmul.f32 %v187, %v197
      %v201 = vmul.f32 %v190, %v197
      %v202 = vsub.f32 %v174, %v198
      %v203 = vsub.f32 %v175, %v199
      %v204 = vsub.f32 %v176, %v200
      %v205 = vsub.f32 %v177, %v201
      %v206 = vmul.f32 %v202, %v202
      %v207 = vmul.f32 %v203, %v203
      %v208 = vmul.f32 %v204, %v204
      %v209 = vmul.f32 %v205, %v205
      %v210 = vsel %vm178, %v206, 0.0
      %211 = vadd.xlane.f32.xlu0 %v210
      %v212 = vpop.xlane.xlu0 %211
      %v213 = vsel %vm178, %v207, 0.0
      %214 = vadd.xlane.f32.xlu0 %v213
      %v215 = vpop.xlane.xlu0 %214
      %v216 = vsel %vm178, %v208, 0.0
      %217 = vadd.xlane.f32.xlu0 %v216
      %v218 = vpop.xlane.xlu0 %217
      %v219 = vsel %vm178, %v209, 0.0
      %220 = vadd.xlane.f32.xlu0 %v219
      %v221 = vpop.xlane.xlu0 %220
      %v222 = vmul.f32 %v212, %v197
      %v223 = vmul.f32 %v215, %v197
      %v224 = vmul.f32 %v218, %v197
      %v225 = vmul.f32 %v221, %v197
      %v226 = vadd.f32 %v222, 1e-06
      %v227 = vadd.f32 %v223, 1e-06
      %v228 = vadd.f32 %v224, 1e-06
      %v229 = vadd.f32 %v225, 1e-06
      %v230 = vrsqrt.pop %v226
      %v231 = vmul.f32 %v230, %v226
      %v232 = vmul.f32 %v231, %v230
      %v233 = vmul.f32 0.5, %v232
      %v234 = vsub.f32 1.5, %v233
      %v235 = vmul.f32 %v230, %v234
      %vm236 = vweird.f32 %v226
      %vm237 = vweird.f32 %v230
      %vm238 = vmor %vm236, %vm237
      %v239 = vsel %vm238, %v230, %v235
      %v240 = vrsqrt.pop %v227
      %v241 = vmul.f32 %v240, %v227
      %v242 = vmul.f32 %v241, %v240
      %v243 = vmul.f32 0.5, %v242
      %v244 = vsub.f32 1.5, %v243
      %v245 = vmul.f32 %v240, %v244
      %vm246 = vweird.f32 %v227
      %vm247 = vweird.f32 %v240
      %vm248 = vmor %vm246, %vm247
      %v249 = vsel %vm248, %v240, %v245
      %v250 = vrsqrt.pop %v228
      %v251 = vmul.f32 %v250, %v228
      %v252 = vmul.f32 %v251, %v250
      %v253 = vmul.f32 0.5, %v252
      %v254 = vsub.f32 1.5, %v253
      %v255 = vmul.f32 %v250, %v254
      %vm256 = vweird.f32 %v228
      %vm257 = vweird.f32 %v250
      %vm258 = vmor %vm256, %vm257
      %v259 = vsel %vm258, %v250, %v255
      %v260 = vrsqrt.pop %v229
      %v261 = vmul.f32 %v260, %v229
      %v262 = vmul.f32 %v261, %v260
      %v263 = vmul.f32 0.5, %v262
      %v264 = vsub.f32 1.5, %v263
      %v265 = vmul.f32 %v260, %v264
      %vm266 = vweird.f32 %v229
      %vm267 = vweird.f32 %v260
      %vm268 = vmor %vm266, %vm267
      %v269 = vsel %vm268, %v260, %v265
      %v270 = vmul.f32 %v202, %v239
      %v271 = vmul.f32 %v203, %v249
      %v272 = vmul.f32 %v204, %v259
      %v273 = vmul.f32 %v205, %v269
      %v274 = vld [vmem:[%s1] sm:$0x1]
      %v276 = vperm.slane %v274, 0
      %v278 = vmul.f32 %v270, %v276
      %v279 = vmul.f32 %v271, %v276
      %v280 = vmul.f32 %v272, %v276
      %v281 = vmul.f32 %v273, %v276
      %v282 = vld [vmem:[%s2] sm:$0x1]
      %v284 = vperm.slane %v282, 0
      %v286 = vadd.f32 %v278, %v284
      %v287 = vadd.f32 %v279, %v284
      %v288 = vadd.f32 %v280, %v284
      %v289 = vadd.f32 %v281, %v284
      %290 = vst.msk [vmem:[%s172] sm:$0xff] %vm178, %v286
      %291 = vst.msk [vmem:[%s172 + $0x8] sm:$0xff] %vm178, %v287
      %292 = vst.msk [vmem:[%s172 + $0x10] sm:$0xff] %vm178, %v288
      %293 = vst.msk [vmem:[%s172 + $0x18] sm:$0xff] %vm178, %v289
      %s294 = smul.u32 4, %s14
      %p295 = scmp.lt.s32.totalorder %s294, 7
      %s296 = scalar_select %p295, %s294, 7
      %s297 = smul.addr %s296, 8
      %s298 = scalar_lea.vmem %s3, %s297
      // Predicated region
      $region33: #{_lambda_.11} parent=31 // pred_check
        %p299 = pneg %p100
      $region34: #{_lambda_.11} parent=31 // pred_check_branch
        %301 = sbr.rel (%p299) target = $region36
      $region35: #{_lambda_.11} parent=31 // pred_region
        %s302 = smul.u32 4, %s14
      $region36: #{_lambda_.11} parent=31 // pred_fallthru
        _
    $region32: #{_lambda_.11} parent=5 // pred_fallthru
      _
    %p303 = scmp.le.s32.totalorder 2, %s9
    // Predicated region
    $region37: #{_lambda_.11} parent=5 // pred_check
      %p304 = pneg %p303
    $region38: #{_lambda_.11} parent=5 // pred_check_branch
      %306 = sbr.rel (%p304) target = $region40
    $region39: #{_lambda_.11} parent=5 // pred_region
      %s307 = ssub.s32 %s9, 2
      // Predicated region
      $region41: #{_lambda_.11} parent=39 // pred_check
        %p308 = pneg %p106
      $region42: #{_lambda_.11} parent=39 // pred_check_branch
        %310 = sbr.rel (%p308) target = $region44
      $region43: #{_lambda_.11} parent=39 // pred_region
        %s311 = smul.u32 4, %s15
        %p312 = scmp.lt.s32.totalorder %s311, 7
        %s313 = scalar_select %p312, %s311, 7
        %s314 = smul.addr %s313, 8
        %s315 = scalar_lea.vmem %s3, %s314
      $region44: #{_lambda_.11} parent=39 // pred_fallthru
        _
    $region40: #{_lambda_.11} parent=5 // pred_fallthru
      _
  $region6: #{_lambda_.11} parent=0 // loop_footer
    %s13 = sadd.s32 1, %s9
  $region7: #{_lambda_.11} parent=0 // loop_footer_branch
    %8 = sbr.rel target = $region3
  $region8: #{_lambda_.11} parent=0 // loop_exit
    _

// kernel: reverse.4
$region0: #{reverse.4}
  #allocation0 [shape = 's32[1]{0}', space=sflag, size = 0x4, scoped, tag = 'scoped memory for reverse.4']
  %s0 = inlined_call_operand.vmem [shape: f32[2,32,8,3], index: 0, kind: input, shape index: {}]
  %s1 = inlined_call_operand.vmem [shape: f32[2,32,8,3], index: 1, kind: output, shape index: {}]
  %s2 = scalar_lea.vmem %s0, 16
  %v3 = vld [vmem:[%s2] sm:$0xff]
  %4 = vst [vmem:[%s1] sm:$0xff] %v3
  %s5 = scalar_lea.vmem %s0, 40
  %v6 = vld [vmem:[%s5] sm:$0xff]
  %s7 = scalar_lea.vmem %s1, 24
  %8 = vst [vmem:[%s7] sm:$0xff] %v6
  %s9 = scalar_lea.vmem %s0, 8
  %v10 = vld [vmem:[%s9] sm:$0xff]
  %s11 = scalar_lea.vmem %s1, 8
  %12 = vst [vmem:[%s11] sm:$0xff] %v10
  %s13 = scalar_lea.vmem %s0, 32
  %v14 = vld [vmem:[%s13] sm:$0xff]
  %s15 = scalar_lea.vmem %s1, 32
  %16 = vst [vmem:[%s15] sm:$0xff] %v14
  %v17 = vld [vmem:[%s0] sm:$0xff]
  %s18 = scalar_lea.vmem %s1, 16
  %19 = vst [vmem:[%s18] sm:$0xff] %v17
  %s20 = scalar_lea.vmem %s0, 24
  %v21 = vld [vmem:[%s20] sm:$0xff]
  %s22 = scalar_lea.vmem %s1, 40
  %23 = vst [vmem:[%s22] sm:$0xff] %v21

// kernel: _lambda_.12
$region0: #{_lambda_.12}
  #allocation0 [shape = 'u32[]', space=smem, size = 0x4, offset = 0x4, fixed_abs, tag = 'smem constant byte address 0x4 - core index']
  #allocation1 [shape = 'u32[72,128]{1,0:T(1,128)}', space=vmem, size = 0x9000, scoped, tag = 'internal scratch']
  %s0 = inlined_call_operand.vmem [shape: f32[2,4,16,40], index: 0, kind: input, shape index: {}]
  %s1 = inlined_call_operand.vmem [shape: bf16[4,16,16], index: 1, kind: input, shape index: {}]
  %s2 = inlined_call_operand.vmem [shape: f32[4,16,1], index: 2, kind: input, shape index: {}]
  %s3 = inlined_call_operand.vmem [shape: bf16[4,16,16], index: 3, kind: input, shape index: {}]
  %s4 = inlined_call_operand.vmem [shape: f32[4,16,1], index: 4, kind: input, shape index: {}]
  %s5 = inlined_call_operand.vmem [shape: f32[2,4,16,40], index: 5, kind: output, shape index: {}]
  %s6 = sld [smem:[#allocation0]]
  $region53: #{_lambda_.12} parent=0
    _
  %s8 = ssub.s32 1, %s6
  %s9 = scalar_select 0, %s8, %s6
  loop: start=0, step=1, limit=4
  $region2: #{_lambda_.12} parent=0 // loop_pre_header
    _
  $region3: #{_lambda_.12} parent=0 // loop_header
    %s11 = sphi 0, %s15
    %p12 = scmp.ge.s32.totalorder %s11, 4
    %s18 = sphi 0, %s30
    %s19 = sphi 0, %s26
    %s20 = sphi 0, %s18
    %s21 = sphi 0, %s19
    %s22 = sphi 0, %s20
    %s23 = sphi 0, %s21
    %s35 = sphi 0, %s37
    %s38 = sphi 0, %s35
    %s39 = sphi 0, %s38
    %s55 = sphi 0, %s39
    %s59 = sphi 0, %s59
    %s61 = sphi 0, %s59
    %s62 = sphi 0, %s61
    %s76 = sphi 0, %s62
    %s80 = sphi 0, %s80
    %s82 = sphi 0, %s80
    %s83 = sphi 0, %s82
    %s97 = sphi 0, %s83
    %s101 = sphi 0, %s101
    %s103 = sphi 0, %s101
    %s104 = sphi 0, %s103
    %s118 = sphi 0, %s104
    %s122 = sphi 0, %s122
    %s124 = sphi 0, %s122
    %s125 = sphi 0, %s124
    %s139 = sphi 0, %s125
    %s147 = sphi 0, %s149
    %s150 = sphi 0, %s147
    %s151 = sphi 0, %s150
    %s167 = sphi 0, %s151
  $region4: #{_lambda_.12} parent=0 // loop_header_branch
    %14 = sbr.rel (%p12) target = $region8
  $region5: #{_lambda_.12} parent=0 // loop_body
    %s16 = ssub.s32 %s11, 1
    %s17 = ssub.s32 %s11, 2
    %s24 = sadd.s32 1, %s19
    %p25 = scmp.ge.s32.totalorder %s24, 1
    %s26 = scalar_select %p25, 0, %s24
    %s27 = sadd.s32 1, %s18
    %s28 = scalar_select %p25, %s27, %s18
    %p29 = scmp.ge.s32.totalorder %s28, 2
    %s30 = scalar_select %p29, 0, %s28
    %s31 = ssub.s32 %s18, %s30
    %s32 = ssub.s32 %s19, %s26
    %s33 = sor.u32 %s31, %s32
    %p34 = scmp.eq.s32.totalorder %s33, 0
    %s36 = sadd.s32 %s35, 1
    %s37 = scalar_select %p34, %s35, %s36
    %p40 = pneg %p34
    %p41 = scmp.eq.s32.totalorder %s11, 1
    %p42 = por %p40, %p41
    %p43 = scmp.ne.s32.totalorder %s35, %s38
    %p44 = scmp.eq.s32.totalorder %s11, 0
    %p45 = por %p43, %p44
    %p46 = scmp.ne.s32.totalorder %s35, %s38
    %p47 = scmp.eq.s32.totalorder %s16, 1
    %p48 = por %p46, %p47
    %p49 = scmp.ne.s32.totalorder %s38, %s39
    %p50 = scmp.eq.s32.totalorder %s16, 0
    %p51 = por %p49, %p50
    %p52 = scmp.ne.s32.totalorder %s38, %s39
    %p53 = scmp.eq.s32.totalorder %s17, 1
    %p54 = por %p52, %p53
    %p56 = scmp.ne.s32.totalorder %s39, %s55
    %p57 = scmp.eq.s32.totalorder %s17, 0
    %p58 = por %p56, %p57
    %s60 = sadd.s32 %s59, 1
    %p63 = scmp.eq.s32.totalorder %s11, 1
    %p64 = scmp.ne.s32.totalorder %s59, %s61
    %p65 = scmp.eq.s32.totalorder %s11, 0
    %p66 = por %p64, %p65
    %p67 = scmp.ne.s32.totalorder %s59, %s61
    %p68 = scmp.eq.s32.totalorder %s16, 1
    %p69 = por %p67, %p68
    %p70 = scmp.ne.s32.totalorder %s61, %s62
    %p71 = scmp.eq.s32.totalorder %s16, 0
    %p72 = por %p70, %p71
    %p73 = scmp.ne.s32.totalorder %s61, %s62
    %p74 = scmp.eq.s32.totalorder %s17, 1
    %p75 = por %p73, %p74
    %p77 = scmp.ne.s32.totalorder %s62, %s76
    %p78 = scmp.eq.s32.totalorder %s17, 0
    %p79 = por %p77, %p78
    %s81 = sadd.s32 %s80, 1
    %p84 = scmp.eq.s32.totalorder %s11, 1
    %p85 = scmp.ne.s32.totalorder %s80, %s82
    %p86 = scmp.eq.s32.totalorder %s11, 0
    %p87 = por %p85, %p86
    %p88 = scmp.ne.s32.totalorder %s80, %s82
    %p89 = scmp.eq.s32.totalorder %s16, 1
    %p90 = por %p88, %p89
    %p91 = scmp.ne.s32.totalorder %s82, %s83
    %p92 = scmp.eq.s32.totalorder %s16, 0
    %p93 = por %p91, %p92
    %p94 = scmp.ne.s32.totalorder %s82, %s83
    %p95 = scmp.eq.s32.totalorder %s17, 1
    %p96 = por %p94, %p95
    %p98 = scmp.ne.s32.totalorder %s83, %s97
    %p99 = scmp.eq.s32.totalorder %s17, 0
    %p100 = por %p98, %p99
    %s102 = sadd.s32 %s101, 1
    %p105 = scmp.eq.s32.totalorder %s11, 1
    %p106 = scmp.ne.s32.totalorder %s101, %s103
    %p107 = scmp.eq.s32.totalorder %s11, 0
    %p108 = por %p106, %p107
    %p109 = scmp.ne.s32.totalorder %s101, %s103
    %p110 = scmp.eq.s32.totalorder %s16, 1
    %p111 = por %p109, %p110
    %p112 = scmp.ne.s32.totalorder %s103, %s104
    %p113 = scmp.eq.s32.totalorder %s16, 0
    %p114 = por %p112, %p113
    %p115 = scmp.ne.s32.totalorder %s103, %s104
    %p116 = scmp.eq.s32.totalorder %s17, 1
    %p117 = por %p115, %p116
    %p119 = scmp.ne.s32.totalorder %s104, %s118
    %p120 = scmp.eq.s32.totalorder %s17, 0
    %p121 = por %p119, %p120
    %s123 = sadd.s32 %s122, 1
    %p126 = scmp.eq.s32.totalorder %s11, 1
    %p127 = scmp.ne.s32.totalorder %s122, %s124
    %p128 = scmp.eq.s32.totalorder %s11, 0
    %p129 = por %p127, %p128
    %p130 = scmp.ne.s32.totalorder %s122, %s124
    %p131 = scmp.eq.s32.totalorder %s16, 1
    %p132 = por %p130, %p131
    %p133 = scmp.ne.s32.totalorder %s124, %s125
    %p134 = scmp.eq.s32.totalorder %s16, 0
    %p135 = por %p133, %p134
    %p136 = scmp.ne.s32.totalorder %s124, %s125
    %p137 = scmp.eq.s32.totalorder %s17, 1
    %p138 = por %p136, %p137
    %p140 = scmp.ne.s32.totalorder %s125, %s139
    %p141 = scmp.eq.s32.totalorder %s17, 0
    %p142 = por %p140, %p141
    %s143 = ssub.s32 %s18, %s30
    %s144 = ssub.s32 %s19, %s26
    %s145 = sor.u32 %s143, %s144
    %p146 = scmp.eq.s32.totalorder %s145, 0
    %s148 = sadd.s32 %s147, 1
    %s149 = scalar_select %p146, %s147, %s148
    %p152 = pneg %p146
    %p153 = scmp.eq.s32.totalorder %s11, 1
    %p154 = por %p152, %p153
    %p155 = scmp.ne.s32.totalorder %s147, %s150
    %p156 = scmp.eq.s32.totalorder %s11, 0
    %p157 = por %p155, %p156
    %p158 = scmp.ne.s32.totalorder %s147, %s150
    %p159 = scmp.eq.s32.totalorder %s16, 1
    %p160 = por %p158, %p159
    %p161 = scmp.ne.s32.totalorder %s150, %s151
    %p162 = scmp.eq.s32.totalorder %s16, 0
    %p163 = por %p161, %p162
    %p164 = scmp.ne.s32.totalorder %s150, %s151
    %p165 = scmp.eq.s32.totalorder %s17, 1
    %p166 = por %p164, %p165
    %p168 = scmp.ne.s32.totalorder %s151, %s167
    %p169 = scmp.eq.s32.totalorder %s17, 0
    %p170 = por %p168, %p169
    %p171 = scmp.le.s32.totalorder 1, %s11
    %p172 = scmp.lt.s32.totalorder %s11, 3
    %p173 = pnand %p171, %p172
    %p174 = pneg %p173
    // Predicated region
    $region9: #{_lambda_.12} parent=5 // pred_check
      _
    $region10: #{_lambda_.12} parent=5 // pred_check_branch
      %176 = sbr.rel (%p173) target = $region12
    $region11: #{_lambda_.12} parent=5 // pred_region
      %s177 = ssub.s32 %s11, 1
      // Predicated region
      $region13: #{_lambda_.12} parent=11 // pred_check
        %p178 = pneg %p72
      $region14: #{_lambda_.12} parent=11 // pred_check_branch
        %180 = sbr.rel (%p178) target = $region16
      $region15: #{_lambda_.12} parent=11 // pred_region
        _
      $region16: #{_lambda_.12} parent=11 // pred_fallthru
        _
      // Predicated region
      $region17: #{_lambda_.12} parent=11 // pred_check
        %p181 = pneg %p93
      $region18: #{_lambda_.12} parent=11 // pred_check_branch
        %183 = sbr.rel (%p181) target = $region20
      $region19: #{_lambda_.12} parent=11 // pred_region
        _
      $region20: #{_lambda_.12} parent=11 // pred_fallthru
        _
      // Predicated region
      $region21: #{_lambda_.12} parent=11 // pred_check
        %p184 = pneg %p114
      $region22: #{_lambda_.12} parent=11 // pred_check_branch
        %186 = sbr.rel (%p184) target = $region24
      $region23: #{_lambda_.12} parent=11 // pred_region
        _
      $region24: #{_lambda_.12} parent=11 // pred_fallthru
        _
      // Predicated region
      $region25: #{_lambda_.12} parent=11 // pred_check
        %p187 = pneg %p135
      $region26: #{_lambda_.12} parent=11 // pred_check_branch
        %189 = sbr.rel (%p187) target = $region28
      $region27: #{_lambda_.12} parent=11 // pred_region
        _
      $region28: #{_lambda_.12} parent=11 // pred_fallthru
        _
    $region12: #{_lambda_.12} parent=5 // pred_fallthru
      _
    %p190 = scmp.lt.s32.totalorder %s11, 2
    // Predicated region
    $region29: #{_lambda_.12} parent=5 // pred_check
      %p191 = pneg %p190
    $region30: #{_lambda_.12} parent=5 // pred_check_branch
      %193 = sbr.rel (%p191) target = $region32
    $region31: #{_lambda_.12} parent=5 // pred_region
      // Predicated region
      $region33: #{_lambda_.12} parent=31 // pred_check
        %p194 = pneg %p45
      $region34: #{_lambda_.12} parent=31 // pred_check_branch
        %196 = sbr.rel (%p194) target = $region36
      $region35: #{_lambda_.12} parent=31 // pred_region
        %p197 = scmp.lt.s32.totalorder %s18, 1
        %s198 = scalar_select %p197, %s18, 1
        %p199 = scmp.lt.s32.totalorder %s19, 0
        %s200 = scalar_select %p199, %s19, 0
        %s201 = smul.addr %s198, 8
        %s202 = sadd.s32 %s200, %s201
        %s203 = smul.addr %s202, 8
        %s204 = scalar_lea.vmem %s0, %s203
      $region36: #{_lambda_.12} parent=31 // pred_fallthru
        _
    $region32: #{_lambda_.12} parent=5 // pred_fallthru
      _
    %p205 = scmp.le.s32.totalorder 1, %s11
    %p206 = scmp.lt.s32.totalorder %s11, 3
    %p207 = pnand %p205, %p206
    %p208 = pneg %p207
    // Predicated region
    $region37: #{_lambda_.12} parent=5 // pred_check
      _
    $region38: #{_lambda_.12} parent=5 // pred_check_branch
      %210 = sbr.rel (%p207) target = $region40
    $region39: #{_lambda_.12} parent=5 // pred_region
      %s211 = ssub.s32 %s11, 1
      %p212 = scmp.lt.s32.totalorder %s20, 1
      %s213 = scalar_select %p212, %s20, 1
      %p214 = scmp.lt.s32.totalorder %s21, 0
      %s215 = scalar_select %p214, %s21, 0
      %s216 = smul.addr %s213, 8
      %s217 = sadd.s32 %s215, %s216
      %s218 = smul.addr %s217, 8
      %s219 = scalar_lea.vmem %s0, %s218
      %p220 = pneg %p51
      %p221 = pneg %p48
      %p222 = pneg %p72
      %p223 = pneg %p69
      %p224 = pneg %p93
      %p225 = pneg %p90
      %p226 = pneg %p114
      %p227 = pneg %p111
      %p228 = pneg %p135
      %p229 = pneg %p132
      %p230 = pneg %p163
      %p231 = pneg %p160
      %p232 = scmp.lt.s32.totalorder %s20, 1
      %s233 = scalar_select %p232, %s20, 1
      %p234 = scmp.lt.s32.totalorder %s21, 0
      %s235 = scalar_select %p234, %s21, 0
      %s236 = smul.addr %s233, 8
      %s237 = sadd.s32 %s235, %s236
      %s238 = smul.addr %s237, 8
      %s239 = scalar_lea.vmem %s5, %s238
      %p240 = scmp.lt.s32.totalorder %s20, 1
      %s241 = scalar_select %p240, %s20, 1
      %p242 = scmp.lt.s32.totalorder %s21, 0
      %s243 = scalar_select %p242, %s21, 0
      %s244 = smul.addr %s241, 8
      %s245 = sadd.s32 %s243, %s244
      %s246 = smul.addr %s245, 8
      %s247 = scalar_lea.vmem %s0, %s246
      %p248 = scmp.lt.s32.totalorder %s20, 1
      %s249 = scalar_select %p248, %s20, 1
      %p250 = scmp.lt.s32.totalorder %s21, 0
      %s251 = scalar_select %p250, %s21, 0
      %s252 = smul.addr %s249, 8
      %s253 = sadd.s32 %s251, %s252
      %s254 = smul.addr %s253, 8
      %s255 = scalar_lea.vmem %s5, %s254
      %v257 = vld [vmem:[%s247] sm:$0xff]
      %v258 = vld [vmem:[%s247 + $0x8] sm:$0xff]
      %v259 = vld [vmem:[%s247 + $0x10] sm:$0xff]
      %v260 = vld [vmem:[%s247 + $0x18] sm:$0xff]
      %v261 = vld [vmem:[%s247 + $0x20] sm:$0xff]
      %v262 = vld [vmem:[%s247 + $0x28] sm:$0xff]
      %v263 = vld [vmem:[%s247 + $0x30] sm:$0xff]
      %v264 = vld [vmem:[%s247 + $0x38] sm:$0xff]
      %v265 = vpack.c.bf16 %v257, %v257
      %v266 = vpack.c.bf16 %v258, %v258
      %v267 = vpack.c.bf16 %v259, %v259
      %v268 = vpack.c.bf16 %v260, %v260
      %v269 = vpack.c.bf16 %v261, %v261
      %v270 = vpack.c.bf16 %v262, %v262
      %v271 = vpack.c.bf16 %v263, %v263
      %v272 = vpack.c.bf16 %v264, %v264
      %v273 = vld [vmem:[%s1] sm:$0xf]
      %v274 = vld [vmem:[%s1 + $0x4] sm:$0xf]
      %v275 = vld [vmem:[%s1 + $0x8] sm:$0xf]
      %v276 = vld [vmem:[%s1 + $0xc] sm:$0xf]
      %v277 = vld [vmem:[%s1 + $0x10] sm:$0xf]
      %v278 = vld [vmem:[%s1 + $0x14] sm:$0xf]
      %v279 = vld [vmem:[%s1 + $0x18] sm:$0xf]
      %v280 = vld [vmem:[%s1 + $0x1c] sm:$0xf]
      %v281 = vld [vmem:[%s2] sm:$0xff]
      %v282 = vld [vmem:[%s2 + $0x8] sm:$0xff]
      %v283 = vld [vmem:[%s2 + $0x10] sm:$0xff]
      %v284 = vld [vmem:[%s2 + $0x18] sm:$0xff]
      %v285 = vld [vmem:[%s2 + $0x20] sm:$0xff]
      %v286 = vld [vmem:[%s2 + $0x28] sm:$0xff]
      %v287 = vld [vmem:[%s2 + $0x30] sm:$0xff]
      %v288 = vld [vmem:[%s2 + $0x38] sm:$0xff]
      %290 = vset.pattern.permute.xlu0 0
      %291 = vperm.xlu0 %290, %v281
      %v292 = vpop.permute.xlu0 %291
      %295 = vset.pattern.permute.xlu0 0
      %296 = vperm.xlu0 %295, %v282
      %v297 = vpop.permute.xlu0 %296
      %300 = vset.pattern.permute.xlu0 0
      %301 = vperm.xlu0 %300, %v283
      %v302 = vpop.permute.xlu0 %301
      %305 = vset.pattern.permute.xlu0 0
      %306 = vperm.xlu0 %305, %v284
      %v307 = vpop.permute.xlu0 %306
      %310 = vset.pattern.permute.xlu0 0
      %311 = vperm.xlu0 %310, %v285
      %v312 = vpop.permute.xlu0 %311
      %315 = vset.pattern.permute.xlu0 0
      %316 = vperm.xlu0 %315, %v286
      %v317 = vpop.permute.xlu0 %316
      %320 = vset.pattern.permute.xlu0 0
      %321 = vperm.xlu0 %320, %v287
      %v322 = vpop.permute.xlu0 %321
      %325 = vset.pattern.permute.xlu0 0
      %326 = vperm.xlu0 %325, %v288
      %v327 = vpop.permute.xlu0 %326
      %v331 = vunpack.c.l.b16 %v273
      %v332 = vunpack.c.l.b16 %v274
      %v333 = vpack.c.b16 %v332, %v331
      %v336 = vunpack.c.l.b16 %v265
      %v337 = vunpack.c.l.b16 %v266
      %v338 = vpack.c.b16 %v337, %v336
      %vm340 = vcmask 130048
      %v342 = vsel %vm340, %v333, 0
      %344 = vmatpush.bf16.msra.mxu0 0
      %345 = vmatpush.bf16.msra.mxu0 0
      %346 = vmatpush.bf16.msra.mxu0 0
      %347 = vmatpush.bf16.msra.mxu0 0
      %348 = vmatpush.bf16.msra.mxu0 0
      %349 = vmatpush.bf16.msra.mxu0 0
      %350 = vmatpush.bf16.msra.mxu0 0
      %351 = vmatpush.bf16.msra.mxu0 %v338
      %352 = vmatmul.bf16.gmra.mxu0 %v342
      %v353 = vpop.f32.mrf.mxu0
      %v354 = vadd.f32 %v292, %v353
      %v355 = vpop.f32.mrf.mxu0
      %v356 = vadd.f32 %v297, %v355
      %357 = vdwg.mxu0
      %v360 = vunpack.c.l.b16 %v275
      %v361 = vunpack.c.l.b16 %v276
      %v362 = vpack.c.b16 %v361, %v360
      %v365 = vunpack.c.l.b16 %v267
      %v366 = vunpack.c.l.b16 %v268
      %v367 = vpack.c.b16 %v366, %v365
      %v370 = vsel %vm340, %v362, 0
      %372 = vmatpush.bf16.msra.mxu0 0
      %373 = vmatpush.bf16.msra.mxu0 0
      %374 = vmatpush.bf16.msra.mxu0 0
      %375 = vmatpush.bf16.msra.mxu0 0
      %376 = vmatpush.bf16.msra.mxu0 0
      %377 = vmatpush.bf16.msra.mxu0 0
      %378 = vmatpush.bf16.msra.mxu0 0
      %379 = vmatpush.bf16.msra.mxu0 %v367
      %380 = vmatmul.bf16.gmra.mxu0 %v370
      %v381 = vpop.f32.mrf.mxu0
      %v382 = vadd.f32 %v302, %v381
      %v383 = vpop.f32.mrf.mxu0
      %v384 = vadd.f32 %v307, %v383
      %385 = vdwg.mxu0
      %v388 = vunpack.c.l.b16 %v277
      %v389 = vunpack.c.l.b16 %v278
      %v390 = vpack.c.b16 %v389, %v388
      %v393 = vunpack.c.l.b16 %v269
      %v394 = vunpack.c.l.b16 %v270
      %v395 = vpack.c.b16 %v394, %v393
      %v398 = vsel %vm340, %v390, 0
      %400 = vmatpush.bf16.msra.mxu0 0
      %401 = vmatpush.bf16.msra.mxu0 0
      %402 = vmatpush.bf16.msra.mxu0 0
      %403 = vmatpush.bf16.msra.mxu0 0
      %404 = vmatpush.bf16.msra.mxu0 0
      %405 = vmatpush.bf16.msra.mxu0 0
      %406 = vmatpush.bf16.msra.mxu0 0
      %407 = vmatpush.bf16.msra.mxu0 %v395
      %408 = vmatmul.bf16.gmra.mxu0 %v398
      %v409 = vpop.f32.mrf.mxu0
      %v410 = vadd.f32 %v312, %v409
      %v411 = vpop.f32.mrf.mxu0
      %v412 = vadd.f32 %v317, %v411
      %413 = vdwg.mxu0
      %v416 = vunpack.c.l.b16 %v279
      %v417 = vunpack.c.l.b16 %v280
      %v418 = vpack.c.b16 %v417, %v416
      %v421 = vunpack.c.l.b16 %v271
      %v422 = vunpack.c.l.b16 %v272
      %v423 = vpack.c.b16 %v422, %v421
      %v426 = vsel %vm340, %v418, 0
      %428 = vmatpush.bf16.msra.mxu0 0
      %429 = vmatpush.bf16.msra.mxu0 0
      %430 = vmatpush.bf16.msra.mxu0 0
      %431 = vmatpush.bf16.msra.mxu0 0
      %432 = vmatpush.bf16.msra.mxu0 0
      %433 = vmatpush.bf16.msra.mxu0 0
      %434 = vmatpush.bf16.msra.mxu0 0
      %435 = vmatpush.bf16.msra.mxu0 %v423
      %436 = vmatmul.bf16.gmra.mxu0 %v426
      %v437 = vpop.f32.mrf.mxu0
      %v438 = vadd.f32 %v322, %v437
      %v439 = vpop.f32.mrf.mxu0
      %v440 = vadd.f32 %v327, %v439
      %441 = vdwg.mxu0
      %v442 = vmax.f32 %v354, 0.0
      %v443 = vmax.f32 %v356, 0.0
      %v444 = vmax.f32 %v382, 0.0
      %v445 = vmax.f32 %v384, 0.0
      %v446 = vmax.f32 %v410, 0.0
      %v447 = vmax.f32 %v412, 0.0
      %v448 = vmax.f32 %v438, 0.0
      %v449 = vmax.f32 %v440, 0.0
      %v450 = vld [vmem:[%s3] sm:$0xf]
      %v451 = vld [vmem:[%s3 + $0x4] sm:$0xf]
      %v452 = vld [vmem:[%s3 + $0x8] sm:$0xf]
      %v453 = vld [vmem:[%s3 + $0xc] sm:$0xf]
      %v454 = vld [vmem:[%s3 + $0x10] sm:$0xf]
      %v455 = vld [vmem:[%s3 + $0x14] sm:$0xf]
      %v456 = vld [vmem:[%s3 + $0x18] sm:$0xf]
      %v457 = vld [vmem:[%s3 + $0x1c] sm:$0xf]
      %v458 = vpack.c.bf16 %v442, %v442
      %v459 = vpack.c.bf16 %v443, %v443
      %v460 = vpack.c.bf16 %v444, %v444
      %v461 = vpack.c.bf16 %v445, %v445
      %v462 = vpack.c.bf16 %v446, %v446
      %v463 = vpack.c.bf16 %v447, %v447
      %v464 = vpack.c.bf16 %v448, %v448
      %v465 = vpack.c.bf16 %v449, %v449
      %v466 = vld [vmem:[%s4] sm:$0xff]
      %v467 = vld [vmem:[%s4 + $0x8] sm:$0xff]
      %v468 = vld [vmem:[%s4 + $0x10] sm:$0xff]
      %v469 = vld [vmem:[%s4 + $0x18] sm:$0xff]
      %v470 = vld [vmem:[%s4 + $0x20] sm:$0xff]
      %v471 = vld [vmem:[%s4 + $0x28] sm:$0xff]
      %v472 = vld [vmem:[%s4 + $0x30] sm:$0xff]
      %v473 = vld [vmem:[%s4 + $0x38] sm:$0xff]
      %475 = vset.pattern.permute.xlu0 0
      %476 = vperm.xlu0 %475, %v466
      %v477 = vpop.permute.xlu0 %476
      %480 = vset.pattern.permute.xlu0 0
      %481 = vperm.xlu0 %480, %v467
      %v482 = vpop.permute.xlu0 %481
      %485 = vset.pattern.permute.xlu0 0
      %486 = vperm.xlu0 %485, %v468
      %v487 = vpop.permute.xlu0 %486
      %490 = vset.pattern.permute.xlu0 0
      %491 = vperm.xlu0 %490, %v469
      %v492 = vpop.permute.xlu0 %491
      %495 = vset.pattern.permute.xlu0 0
      %496 = vperm.xlu0 %495, %v470
      %v497 = vpop.permute.xlu0 %496
      %500 = vset.pattern.permute.xlu0 0
      %501 = vperm.xlu0 %500, %v471
      %v502 = vpop.permute.xlu0 %501
      %505 = vset.pattern.permute.xlu0 0
      %506 = vperm.xlu0 %505, %v472
      %v507 = vpop.permute.xlu0 %506
      %510 = vset.pattern.permute.xlu0 0
      %511 = vperm.xlu0 %510, %v473
      %v512 = vpop.permute.xlu0 %511
      %v516 = vunpack.c.l.b16 %v450
      %v517 = vunpack.c.l.b16 %v451
      %v518 = vpack.c.b16 %v517, %v516
      %v521 = vunpack.c.l.b16 %v458
      %v522 = vunpack.c.l.b16 %v459
      %v523 = vpack.c.b16 %v522, %v521
      %v526 = vsel %vm340, %v518, 0
      %528 = vmatpush.bf16.msra.mxu0 0
      %529 = vmatpush.bf16.msra.mxu0 0
      %530 = vmatpush.bf16.msra.mxu0 0
      %531 = vmatpush.bf16.msra.mxu0 0
      %532 = vmatpush.bf16.msra.mxu0 0
      %533 = vmatpush.bf16.msra.mxu0 0
      %534 = vmatpush.bf16.msra.mxu0 0
      %535 = vmatpush.bf16.msra.mxu0 %v523
      %536 = vmatmul.bf16.gmra.mxu0 %v526
      %v537 = vpop.f32.mrf.mxu0
      %v538 = vadd.f32 %v477, %v537
      %v539 = vpop.f32.mrf.mxu0
      %v540 = vadd.f32 %v482, %v539
      %541 = vdwg.mxu0
      %v544 = vunpack.c.l.b16 %v452
      %v545 = vunpack.c.l.b16 %v453
      %v546 = vpack.c.b16 %v545, %v544
      %v549 = vunpack.c.l.b16 %v460
      %v550 = vunpack.c.l.b16 %v461
      %v551 = vpack.c.b16 %v550, %v549
      %v554 = vsel %vm340, %v546, 0
      %556 = vmatpush.bf16.msra.mxu0 0
      %557 = vmatpush.bf16.msra.mxu0 0
      %558 = vmatpush.bf16.msra.mxu0 0
      %559 = vmatpush.bf16.msra.mxu0 0
      %560 = vmatpush.bf16.msra.mxu0 0
      %561 = vmatpush.bf16.msra.mxu0 0
      %562 = vmatpush.bf16.msra.mxu0 0
      %563 = vmatpush.bf16.msra.mxu0 %v551
      %564 = vmatmul.bf16.gmra.mxu0 %v554
      %v565 = vpop.f32.mrf.mxu0
      %v566 = vadd.f32 %v487, %v565
      %v567 = vpop.f32.mrf.mxu0
      %v568 = vadd.f32 %v492, %v567
      %569 = vdwg.mxu0
      %v572 = vunpack.c.l.b16 %v454
      %v573 = vunpack.c.l.b16 %v455
      %v574 = vpack.c.b16 %v573, %v572
      %v577 = vunpack.c.l.b16 %v462
      %v578 = vunpack.c.l.b16 %v463
      %v579 = vpack.c.b16 %v578, %v577
      %v582 = vsel %vm340, %v574, 0
      %584 = vmatpush.bf16.msra.mxu0 0
      %585 = vmatpush.bf16.msra.mxu0 0
      %586 = vmatpush.bf16.msra.mxu0 0
      %587 = vmatpush.bf16.msra.mxu0 0
      %588 = vmatpush.bf16.msra.mxu0 0
      %589 = vmatpush.bf16.msra.mxu0 0
      %590 = vmatpush.bf16.msra.mxu0 0
      %591 = vmatpush.bf16.msra.mxu0 %v579
      %592 = vmatmul.bf16.gmra.mxu0 %v582
      %v593 = vpop.f32.mrf.mxu0
      %v594 = vadd.f32 %v497, %v593
      %v595 = vpop.f32.mrf.mxu0
      %v596 = vadd.f32 %v502, %v595
      %597 = vdwg.mxu0
      %v600 = vunpack.c.l.b16 %v456
      %v601 = vunpack.c.l.b16 %v457
      %v602 = vpack.c.b16 %v601, %v600
      %v605 = vunpack.c.l.b16 %v464
      %v606 = vunpack.c.l.b16 %v465
      %v607 = vpack.c.b16 %v606, %v605
      %v610 = vsel %vm340, %v602, 0
      %612 = vmatpush.bf16.msra.mxu0 0
      %613 = vmatpush.bf16.msra.mxu0 0
      %614 = vmatpush.bf16.msra.mxu0 0
      %615 = vmatpush.bf16.msra.mxu0 0
      %616 = vmatpush.bf16.msra.mxu0 0
      %617 = vmatpush.bf16.msra.mxu0 0
      %618 = vmatpush.bf16.msra.mxu0 0
      %619 = vmatpush.bf16.msra.mxu0 %v607
      %620 = vmatmul.bf16.gmra.mxu0 %v610
      %v621 = vpop.f32.mrf.mxu0
      %v622 = vadd.f32 %v507, %v621
      %v623 = vpop.f32.mrf.mxu0
      %v624 = vadd.f32 %v512, %v623
      %625 = vdwg.mxu0
      %vm626 = vcmp.gt.f32.partialorder %v538, 0.01
      %vm627 = vcmp.gt.f32.partialorder %v540, 0.01
      %vm628 = vcmp.gt.f32.partialorder %v566, 0.01
      %vm629 = vcmp.gt.f32.partialorder %v568, 0.01
      %vm630 = vcmp.gt.f32.partialorder %v594, 0.01
      %vm631 = vcmp.gt.f32.partialorder %v596, 0.01
      %vm632 = vcmp.gt.f32.partialorder %v622, 0.01
      %vm633 = vcmp.gt.f32.partialorder %v624, 0.01
      %v634 = vsub.f32 %v538, 0.01
      %v635 = vsub.f32 %v540, 0.01
      %v636 = vsub.f32 %v566, 0.01
      %v637 = vsub.f32 %v568, 0.01
      %v638 = vsub.f32 %v594, 0.01
      %v639 = vsub.f32 %v596, 0.01
      %v640 = vsub.f32 %v622, 0.01
      %v641 = vsub.f32 %v624, 0.01
      %vm642 = vcmp.lt.f32.partialorder %v538, -0.01
      %vm643 = vcmp.lt.f32.partialorder %v540, -0.01
      %vm644 = vcmp.lt.f32.partialorder %v566, -0.01
      %vm645 = vcmp.lt.f32.partialorder %v568, -0.01
      %vm646 = vcmp.lt.f32.partialorder %v594, -0.01
      %vm647 = vcmp.lt.f32.partialorder %v596, -0.01
      %vm648 = vcmp.lt.f32.partialorder %v622, -0.01
      %vm649 = vcmp.lt.f32.partialorder %v624, -0.01
      %v650 = vadd.f32 %v538, 0.01
      %v651 = vadd.f32 %v540, 0.01
      %v652 = vadd.f32 %v566, 0.01
      %v653 = vadd.f32 %v568, 0.01
      %v654 = vadd.f32 %v594, 0.01
      %v655 = vadd.f32 %v596, 0.01
      %v656 = vadd.f32 %v622, 0.01
      %v657 = vadd.f32 %v624, 0.01
      %v658 = vsel %vm642, %v650, 0.0
      %v659 = vsel %vm643, %v651, 0.0
      %v660 = vsel %vm644, %v652, 0.0
      %v661 = vsel %vm645, %v653, 0.0
      %v662 = vsel %vm646, %v654, 0.0
      %v663 = vsel %vm647, %v655, 0.0
      %v664 = vsel %vm648, %v656, 0.0
      %v665 = vsel %vm649, %v657, 0.0
      %v666 = vsel %vm626, %v634, %v658
      %v667 = vsel %vm627, %v635, %v659
      %v668 = vsel %vm628, %v636, %v660
      %v669 = vsel %vm629, %v637, %v661
      %v670 = vsel %vm630, %v638, %v662
      %v671 = vsel %vm631, %v639, %v663
      %v672 = vsel %vm632, %v640, %v664
      %v673 = vsel %vm633, %v641, %v665
      %vm674 = vcmask 326656
      %675 = vst.msk [vmem:[%s255] sm:$0xff] %vm674, %v666
      %676 = vst.msk [vmem:[%s255 + $0x8] sm:$0xff] %vm674, %v667
      %677 = vst.msk [vmem:[%s255 + $0x10] sm:$0xff] %vm674, %v668
      %678 = vst.msk [vmem:[%s255 + $0x18] sm:$0xff] %vm674, %v669
      %679 = vst.msk [vmem:[%s255 + $0x20] sm:$0xff] %vm674, %v670
      %680 = vst.msk [vmem:[%s255 + $0x28] sm:$0xff] %vm674, %v671
      %681 = vst.msk [vmem:[%s255 + $0x30] sm:$0xff] %vm674, %v672
      %682 = vst.msk [vmem:[%s255 + $0x38] sm:$0xff] %vm674, %v673
      %p683 = scmp.lt.s32.totalorder %s20, 1
      %s684 = scalar_select %p683, %s20, 1
      %p685 = scmp.lt.s32.totalorder %s21, 0
      %s686 = scalar_select %p685, %s21, 0
      %s687 = smul.addr %s684, 8
      %s688 = sadd.s32 %s686, %s687
      %s689 = smul.addr %s688, 8
      %s690 = scalar_lea.vmem %s5, %s689
      // Predicated region
      $region41: #{_lambda_.12} parent=39 // pred_check
        %p691 = pneg %p160
      $region42: #{_lambda_.12} parent=39 // pred_check_branch
        %693 = sbr.rel (%p691) target = $region44
      $region43: #{_lambda_.12} parent=39 // pred_region
        _
      $region44: #{_lambda_.12} parent=39 // pred_fallthru
        _
    $region40: #{_lambda_.12} parent=5 // pred_fallthru
      _
    %p694 = scmp.le.s32.totalorder 2, %s11
    // Predicated region
    $region45: #{_lambda_.12} parent=5 // pred_check
      %p695 = pneg %p694
    $region46: #{_lambda_.12} parent=5 // pred_check_branch
      %697 = sbr.rel (%p695) target = $region48
    $region47: #{_lambda_.12} parent=5 // pred_region
      %s698 = ssub.s32 %s11, 2
      // Predicated region
      $region49: #{_lambda_.12} parent=47 // pred_check
        %p699 = pneg %p166
      $region50: #{_lambda_.12} parent=47 // pred_check_branch
        %701 = sbr.rel (%p699) target = $region52
      $region51: #{_lambda_.12} parent=47 // pred_region
        %p702 = scmp.lt.s32.totalorder %s22, 1
        %s703 = scalar_select %p702, %s22, 1
        %p704 = scmp.lt.s32.totalorder %s23, 0
        %s705 = scalar_select %p704, %s23, 0
        %s706 = smul.addr %s703, 8
        %s707 = sadd.s32 %s705, %s706
        %s708 = smul.addr %s707, 8
        %s709 = scalar_lea.vmem %s5, %s708
      $region52: #{_lambda_.12} parent=47 // pred_fallthru
        _
    $region48: #{_lambda_.12} parent=5 // pred_fallthru
      _
  $region6: #{_lambda_.12} parent=0 // loop_footer
    %s15 = sadd.s32 1, %s11
  $region7: #{_lambda_.12} parent=0 // loop_footer_branch
    %10 = sbr.rel target = $region3
  $region8: #{_lambda_.12} parent=0 // loop_exit
    _

// kernel: _lambda_.14
$region0: #{_lambda_.14}
  #allocation0 [shape = 'u32[]', space=smem, size = 0x4, offset = 0x4, fixed_abs, tag = 'smem constant byte address 0x4 - core index']
  #allocation1 [shape = 'u32[72,128]{1,0:T(1,128)}', space=vmem, size = 0x9000, scoped, tag = 'internal scratch']
  %s0 = inlined_call_operand.vmem [shape: f32[2,32,64], index: 0, kind: input, shape index: {}]
  %s1 = inlined_call_operand.vmem [shape: bf16[64,32], index: 1, kind: input, shape index: {}]
  %s2 = inlined_call_operand.vmem [shape: f32[64,1], index: 2, kind: input, shape index: {}]
  %s3 = inlined_call_operand.vmem [shape: bf16[32,64], index: 3, kind: input, shape index: {}]
  %s4 = inlined_call_operand.vmem [shape: f32[32,1], index: 4, kind: input, shape index: {}]
  %s5 = inlined_call_operand.vmem [shape: f32[2,32,64], index: 5, kind: input, shape index: {}]
  %s6 = inlined_call_operand.vmem [shape: f32[2,32,64], index: 6, kind: output, shape index: {}]
  %s7 = sld [smem:[#allocation0]]
  $region57: #{_lambda_.14} parent=0
    _
  %s9 = ssub.s32 1, %s7
  %s10 = scalar_select 0, %s9, %s7
  loop: start=0, step=1, limit=4
  $region2: #{_lambda_.14} parent=0 // loop_pre_header
    _
  $region3: #{_lambda_.14} parent=0 // loop_header
    %s12 = sphi 0, %s16
    %p13 = scmp.ge.s32.totalorder %s12, 4
    %s19 = sphi 0, %s31
    %s20 = sphi 0, %s27
    %s21 = sphi 0, %s19
    %s22 = sphi 0, %s20
    %s23 = sphi 0, %s21
    %s24 = sphi 0, %s22
    %s36 = sphi 0, %s38
    %s39 = sphi 0, %s36
    %s40 = sphi 0, %s39
    %s56 = sphi 0, %s40
    %s60 = sphi 0, %s60
    %s62 = sphi 0, %s60
    %s63 = sphi 0, %s62
    %s77 = sphi 0, %s63
    %s81 = sphi 0, %s81
    %s83 = sphi 0, %s81
    %s84 = sphi 0, %s83
    %s98 = sphi 0, %s84
    %s102 = sphi 0, %s102
    %s104 = sphi 0, %s102
    %s105 = sphi 0, %s104
    %s119 = sphi 0, %s105
    %s123 = sphi 0, %s123
    %s125 = sphi 0, %s123
    %s126 = sphi 0, %s125
    %s140 = sphi 0, %s126
    %s148 = sphi 0, %s150
    %s151 = sphi 0, %s148
    %s152 = sphi 0, %s151
    %s168 = sphi 0, %s152
    %s176 = sphi 0, %s178
    %s179 = sphi 0, %s176
    %s180 = sphi 0, %s179
    %s196 = sphi 0, %s180
  $region4: #{_lambda_.14} parent=0 // loop_header_branch
    %15 = sbr.rel (%p13) target = $region8
  $region5: #{_lambda_.14} parent=0 // loop_body
    %s17 = ssub.s32 %s12, 1
    %s18 = ssub.s32 %s12, 2
    %s25 = sadd.s32 1, %s20
    %p26 = scmp.ge.s32.totalorder %s25, 1
    %s27 = scalar_select %p26, 0, %s25
    %s28 = sadd.s32 1, %s19
    %s29 = scalar_select %p26, %s28, %s19
    %p30 = scmp.ge.s32.totalorder %s29, 2
    %s31 = scalar_select %p30, 0, %s29
    %s32 = ssub.s32 %s19, %s31
    %s33 = ssub.s32 %s20, %s27
    %s34 = sor.u32 %s32, %s33
    %p35 = scmp.eq.s32.totalorder %s34, 0
    %s37 = sadd.s32 %s36, 1
    %s38 = scalar_select %p35, %s36, %s37
    %p41 = pneg %p35
    %p42 = scmp.eq.s32.totalorder %s12, 1
    %p43 = por %p41, %p42
    %p44 = scmp.ne.s32.totalorder %s36, %s39
    %p45 = scmp.eq.s32.totalorder %s12, 0
    %p46 = por %p44, %p45
    %p47 = scmp.ne.s32.totalorder %s36, %s39
    %p48 = scmp.eq.s32.totalorder %s17, 1
    %p49 = por %p47, %p48
    %p50 = scmp.ne.s32.totalorder %s39, %s40
    %p51 = scmp.eq.s32.totalorder %s17, 0
    %p52 = por %p50, %p51
    %p53 = scmp.ne.s32.totalorder %s39, %s40
    %p54 = scmp.eq.s32.totalorder %s18, 1
    %p55 = por %p53, %p54
    %p57 = scmp.ne.s32.totalorder %s40, %s56
    %p58 = scmp.eq.s32.totalorder %s18, 0
    %p59 = por %p57, %p58
    %s61 = sadd.s32 %s60, 1
    %p64 = scmp.eq.s32.totalorder %s12, 1
    %p65 = scmp.ne.s32.totalorder %s60, %s62
    %p66 = scmp.eq.s32.totalorder %s12, 0
    %p67 = por %p65, %p66
    %p68 = scmp.ne.s32.totalorder %s60, %s62
    %p69 = scmp.eq.s32.totalorder %s17, 1
    %p70 = por %p68, %p69
    %p71 = scmp.ne.s32.totalorder %s62, %s63
    %p72 = scmp.eq.s32.totalorder %s17, 0
    %p73 = por %p71, %p72
    %p74 = scmp.ne.s32.totalorder %s62, %s63
    %p75 = scmp.eq.s32.totalorder %s18, 1
    %p76 = por %p74, %p75
    %p78 = scmp.ne.s32.totalorder %s63, %s77
    %p79 = scmp.eq.s32.totalorder %s18, 0
    %p80 = por %p78, %p79
    %s82 = sadd.s32 %s81, 1
    %p85 = scmp.eq.s32.totalorder %s12, 1
    %p86 = scmp.ne.s32.totalorder %s81, %s83
    %p87 = scmp.eq.s32.totalorder %s12, 0
    %p88 = por %p86, %p87
    %p89 = scmp.ne.s32.totalorder %s81, %s83
    %p90 = scmp.eq.s32.totalorder %s17, 1
    %p91 = por %p89, %p90
    %p92 = scmp.ne.s32.totalorder %s83, %s84
    %p93 = scmp.eq.s32.totalorder %s17, 0
    %p94 = por %p92, %p93
    %p95 = scmp.ne.s32.totalorder %s83, %s84
    %p96 = scmp.eq.s32.totalorder %s18, 1
    %p97 = por %p95, %p96
    %p99 = scmp.ne.s32.totalorder %s84, %s98
    %p100 = scmp.eq.s32.totalorder %s18, 0
    %p101 = por %p99, %p100
    %s103 = sadd.s32 %s102, 1
    %p106 = scmp.eq.s32.totalorder %s12, 1
    %p107 = scmp.ne.s32.totalorder %s102, %s104
    %p108 = scmp.eq.s32.totalorder %s12, 0
    %p109 = por %p107, %p108
    %p110 = scmp.ne.s32.totalorder %s102, %s104
    %p111 = scmp.eq.s32.totalorder %s17, 1
    %p112 = por %p110, %p111
    %p113 = scmp.ne.s32.totalorder %s104, %s105
    %p114 = scmp.eq.s32.totalorder %s17, 0
    %p115 = por %p113, %p114
    %p116 = scmp.ne.s32.totalorder %s104, %s105
    %p117 = scmp.eq.s32.totalorder %s18, 1
    %p118 = por %p116, %p117
    %p120 = scmp.ne.s32.totalorder %s105, %s119
    %p121 = scmp.eq.s32.totalorder %s18, 0
    %p122 = por %p120, %p121
    %s124 = sadd.s32 %s123, 1
    %p127 = scmp.eq.s32.totalorder %s12, 1
    %p128 = scmp.ne.s32.totalorder %s123, %s125
    %p129 = scmp.eq.s32.totalorder %s12, 0
    %p130 = por %p128, %p129
    %p131 = scmp.ne.s32.totalorder %s123, %s125
    %p132 = scmp.eq.s32.totalorder %s17, 1
    %p133 = por %p131, %p132
    %p134 = scmp.ne.s32.totalorder %s125, %s126
    %p135 = scmp.eq.s32.totalorder %s17, 0
    %p136 = por %p134, %p135
    %p137 = scmp.ne.s32.totalorder %s125, %s126
    %p138 = scmp.eq.s32.totalorder %s18, 1
    %p139 = por %p137, %p138
    %p141 = scmp.ne.s32.totalorder %s126, %s140
    %p142 = scmp.eq.s32.totalorder %s18, 0
    %p143 = por %p141, %p142
    %s144 = ssub.s32 %s19, %s31
    %s145 = ssub.s32 %s20, %s27
    %s146 = sor.u32 %s144, %s145
    %p147 = scmp.eq.s32.totalorder %s146, 0
    %s149 = sadd.s32 %s148, 1
    %s150 = scalar_select %p147, %s148, %s149
    %p153 = pneg %p147
    %p154 = scmp.eq.s32.totalorder %s12, 1
    %p155 = por %p153, %p154
    %p156 = scmp.ne.s32.totalorder %s148, %s151
    %p157 = scmp.eq.s32.totalorder %s12, 0
    %p158 = por %p156, %p157
    %p159 = scmp.ne.s32.totalorder %s148, %s151
    %p160 = scmp.eq.s32.totalorder %s17, 1
    %p161 = por %p159, %p160
    %p162 = scmp.ne.s32.totalorder %s151, %s152
    %p163 = scmp.eq.s32.totalorder %s17, 0
    %p164 = por %p162, %p163
    %p165 = scmp.ne.s32.totalorder %s151, %s152
    %p166 = scmp.eq.s32.totalorder %s18, 1
    %p167 = por %p165, %p166
    %p169 = scmp.ne.s32.totalorder %s152, %s168
    %p170 = scmp.eq.s32.totalorder %s18, 0
    %p171 = por %p169, %p170
    %s172 = ssub.s32 %s19, %s31
    %s173 = ssub.s32 %s20, %s27
    %s174 = sor.u32 %s172, %s173
    %p175 = scmp.eq.s32.totalorder %s174, 0
    %s177 = sadd.s32 %s176, 1
    %s178 = scalar_select %p175, %s176, %s177
    %p181 = pneg %p175
    %p182 = scmp.eq.s32.totalorder %s12, 1
    %p183 = por %p181, %p182
    %p184 = scmp.ne.s32.totalorder %s176, %s179
    %p185 = scmp.eq.s32.totalorder %s12, 0
    %p186 = por %p184, %p185
    %p187 = scmp.ne.s32.totalorder %s176, %s179
    %p188 = scmp.eq.s32.totalorder %s17, 1
    %p189 = por %p187, %p188
    %p190 = scmp.ne.s32.totalorder %s179, %s180
    %p191 = scmp.eq.s32.totalorder %s17, 0
    %p192 = por %p190, %p191
    %p193 = scmp.ne.s32.totalorder %s179, %s180
    %p194 = scmp.eq.s32.totalorder %s18, 1
    %p195 = por %p193, %p194
    %p197 = scmp.ne.s32.totalorder %s180, %s196
    %p198 = scmp.eq.s32.totalorder %s18, 0
    %p199 = por %p197, %p198
    %p200 = scmp.le.s32.totalorder 1, %s12
    %p201 = scmp.lt.s32.totalorder %s12, 3
    %p202 = pnand %p200, %p201
    %p203 = pneg %p202
    // Predicated region
    $region9: #{_lambda_.14} parent=5 // pred_check
      _
    $region10: #{_lambda_.14} parent=5 // pred_check_branch
      %205 = sbr.rel (%p202) target = $region12
    $region11: #{_lambda_.14} parent=5 // pred_region
      %s206 = ssub.s32 %s12, 1
      // Predicated region
      $region13: #{_lambda_.14} parent=11 // pred_check
        %p207 = pneg %p73
      $region14: #{_lambda_.14} parent=11 // pred_check_branch
        %209 = sbr.rel (%p207) target = $region16
      $region15: #{_lambda_.14} parent=11 // pred_region
        _
      $region16: #{_lambda_.14} parent=11 // pred_fallthru
        _
      // Predicated region
      $region17: #{_lambda_.14} parent=11 // pred_check
        %p210 = pneg %p94
      $region18: #{_lambda_.14} parent=11 // pred_check_branch
        %212 = sbr.rel (%p210) target = $region20
      $region19: #{_lambda_.14} parent=11 // pred_region
        _
      $region20: #{_lambda_.14} parent=11 // pred_fallthru
        _
      // Predicated region
      $region21: #{_lambda_.14} parent=11 // pred_check
        %p213 = pneg %p115
      $region22: #{_lambda_.14} parent=11 // pred_check_branch
        %215 = sbr.rel (%p213) target = $region24
      $region23: #{_lambda_.14} parent=11 // pred_region
        _
      $region24: #{_lambda_.14} parent=11 // pred_fallthru
        _
      // Predicated region
      $region25: #{_lambda_.14} parent=11 // pred_check
        %p216 = pneg %p136
      $region26: #{_lambda_.14} parent=11 // pred_check_branch
        %218 = sbr.rel (%p216) target = $region28
      $region27: #{_lambda_.14} parent=11 // pred_region
        _
      $region28: #{_lambda_.14} parent=11 // pred_fallthru
        _
    $region12: #{_lambda_.14} parent=5 // pred_fallthru
      _
    %p219 = scmp.lt.s32.totalorder %s12, 2
    // Predicated region
    $region29: #{_lambda_.14} parent=5 // pred_check
      %p220 = pneg %p219
    $region30: #{_lambda_.14} parent=5 // pred_check_branch
      %222 = sbr.rel (%p220) target = $region32
    $region31: #{_lambda_.14} parent=5 // pred_region
      // Predicated region
      $region33: #{_lambda_.14} parent=31 // pred_check
        %p223 = pneg %p46
      $region34: #{_lambda_.14} parent=31 // pred_check_branch
        %225 = sbr.rel (%p223) target = $region36
      $region35: #{_lambda_.14} parent=31 // pred_region
        %p226 = scmp.lt.s32.totalorder %s19, 1
        %s227 = scalar_select %p226, %s19, 1
        %p228 = scmp.lt.s32.totalorder %s20, 0
        %s229 = scalar_select %p228, %s20, 0
        %s230 = smul.addr %s227, 4
        %s231 = sadd.s32 %s229, %s230
        %s232 = smul.addr %s231, 8
        %s233 = scalar_lea.vmem %s0, %s232
      $region36: #{_lambda_.14} parent=31 // pred_fallthru
        _
      // Predicated region
      $region37: #{_lambda_.14} parent=31 // pred_check
        %p234 = pneg %p158
      $region38: #{_lambda_.14} parent=31 // pred_check_branch
        %236 = sbr.rel (%p234) target = $region40
      $region39: #{_lambda_.14} parent=31 // pred_region
        %p237 = scmp.lt.s32.totalorder %s19, 1
        %s238 = scalar_select %p237, %s19, 1
        %p239 = scmp.lt.s32.totalorder %s20, 0
        %s240 = scalar_select %p239, %s20, 0
        %s241 = smul.addr %s238, 4
        %s242 = sadd.s32 %s240, %s241
        %s243 = smul.addr %s242, 8
        %s244 = scalar_lea.vmem %s5, %s243
      $region40: #{_lambda_.14} parent=31 // pred_fallthru
        _
    $region32: #{_lambda_.14} parent=5 // pred_fallthru
      _
    %p245 = scmp.le.s32.totalorder 1, %s12
    %p246 = scmp.lt.s32.totalorder %s12, 3
    %p247 = pnand %p245, %p246
    %p248 = pneg %p247
    // Predicated region
    $region41: #{_lambda_.14} parent=5 // pred_check
      _
    $region42: #{_lambda_.14} parent=5 // pred_check_branch
      %250 = sbr.rel (%p247) target = $region44
    $region43: #{_lambda_.14} parent=5 // pred_region
      %s251 = ssub.s32 %s12, 1
      %p252 = scmp.lt.s32.totalorder %s21, 1
      %s253 = scalar_select %p252, %s21, 1
      %p254 = scmp.lt.s32.totalorder %s22, 0
      %s255 = scalar_select %p254, %s22, 0
      %s256 = smul.addr %s253, 4
      %s257 = sadd.s32 %s255, %s256
      %s258 = smul.addr %s257, 8
      %s259 = scalar_lea.vmem %s0, %s258
      %p260 = pneg %p52
      %p261 = pneg %p49
      %p262 = pneg %p73
      %p263 = pneg %p70
      %p264 = pneg %p94
      %p265 = pneg %p91
      %p266 = pneg %p115
      %p267 = pneg %p112
      %p268 = pneg %p136
      %p269 = pneg %p133
      %p270 = scmp.lt.s32.totalorder %s21, 1
      %s271 = scalar_select %p270, %s21, 1
      %p272 = scmp.lt.s32.totalorder %s22, 0
      %s273 = scalar_select %p272, %s22, 0
      %s274 = smul.addr %s271, 4
      %s275 = sadd.s32 %s273, %s274
      %s276 = smul.addr %s275, 8
      %s277 = scalar_lea.vmem %s5, %s276
      %p278 = pneg %p164
      %p279 = pneg %p161
      %p280 = pneg %p192
      %p281 = pneg %p189
      %p282 = scmp.lt.s32.totalorder %s21, 1
      %s283 = scalar_select %p282, %s21, 1
      %p284 = scmp.lt.s32.totalorder %s22, 0
      %s285 = scalar_select %p284, %s22, 0
      %s286 = smul.addr %s283, 4
      %s287 = sadd.s32 %s285, %s286
      %s288 = smul.addr %s287, 8
      %s289 = scalar_lea.vmem %s6, %s288
      %p290 = scmp.lt.s32.totalorder %s21, 1
      %s291 = scalar_select %p290, %s21, 1
      %p292 = scmp.lt.s32.totalorder %s22, 0
      %s293 = scalar_select %p292, %s22, 0
      %s294 = smul.addr %s291, 4
      %s295 = sadd.s32 %s293, %s294
      %s296 = smul.addr %s295, 8
      %s297 = scalar_lea.vmem %s0, %s296
      %p298 = scmp.lt.s32.totalorder %s21, 1
      %s299 = scalar_select %p298, %s21, 1
      %p300 = scmp.lt.s32.totalorder %s22, 0
      %s301 = scalar_select %p300, %s22, 0
      %s302 = smul.addr %s299, 4
      %s303 = sadd.s32 %s301, %s302
      %s304 = smul.addr %s303, 8
      %s305 = scalar_lea.vmem %s5, %s304
      %p306 = scmp.lt.s32.totalorder %s21, 1
      %s307 = scalar_select %p306, %s21, 1
      %p308 = scmp.lt.s32.totalorder %s22, 0
      %s309 = scalar_select %p308, %s22, 0
      %s310 = smul.addr %s307, 4
      %s311 = sadd.s32 %s309, %s310
      %s312 = smul.addr %s311, 8
      %s313 = scalar_lea.vmem %s6, %s312
      %v315 = vld [vmem:[%s297] sm:$0xff]
      %v316 = vld [vmem:[%s297 + $0x8] sm:$0xff]
      %v317 = vld [vmem:[%s297 + $0x10] sm:$0xff]
      %v318 = vld [vmem:[%s297 + $0x18] sm:$0xff]
      %v319 = vpack.c.bf16 %v316, %v315
      %v320 = vpack.c.bf16 %v318, %v317
      %v321 = vld [vmem:[%s1] sm:$0xf]
      %v322 = vld [vmem:[%s1 + $0x4] sm:$0xf]
      %v323 = vld [vmem:[%s1 + $0x8] sm:$0xf]
      %v324 = vld [vmem:[%s1 + $0xc] sm:$0xf]
      %v325 = vld [vmem:[%s1 + $0x10] sm:$0xf]
      %v326 = vld [vmem:[%s1 + $0x14] sm:$0xf]
      %v327 = vld [vmem:[%s1 + $0x18] sm:$0xf]
      %v328 = vld [vmem:[%s1 + $0x1c] sm:$0xf]
      %v329 = vld [vmem:[%s2] sm:$0xff]
      %v330 = vld [vmem:[%s2 + $0x8] sm:$0xff]
      %v331 = vld [vmem:[%s2 + $0x10] sm:$0xff]
      %v332 = vld [vmem:[%s2 + $0x18] sm:$0xff]
      %v333 = vld [vmem:[%s2 + $0x20] sm:$0xff]
      %v334 = vld [vmem:[%s2 + $0x28] sm:$0xff]
      %v335 = vld [vmem:[%s2 + $0x30] sm:$0xff]
      %v336 = vld [vmem:[%s2 + $0x38] sm:$0xff]
      %338 = vset.pattern.permute.xlu0 0
      %339 = vperm.xlu0 %338, %v329
      %v340 = vpop.permute.xlu0 %339
      %343 = vset.pattern.permute.xlu0 0
      %344 = vperm.xlu0 %343, %v330
      %v345 = vpop.permute.xlu0 %344
      %348 = vset.pattern.permute.xlu0 0
      %349 = vperm.xlu0 %348, %v331
      %v350 = vpop.permute.xlu0 %349
      %353 = vset.pattern.permute.xlu0 0
      %354 = vperm.xlu0 %353, %v332
      %v355 = vpop.permute.xlu0 %354
      %358 = vset.pattern.permute.xlu0 0
      %359 = vperm.xlu0 %358, %v333
      %v360 = vpop.permute.xlu0 %359
      %363 = vset.pattern.permute.xlu0 0
      %364 = vperm.xlu0 %363, %v334
      %v365 = vpop.permute.xlu0 %364
      %368 = vset.pattern.permute.xlu0 0
      %369 = vperm.xlu0 %368, %v335
      %v370 = vpop.permute.xlu0 %369
      %373 = vset.pattern.permute.xlu0 0
      %374 = vperm.xlu0 %373, %v336
      %v375 = vpop.permute.xlu0 %374
      %v385 = vunpack.c.l.b16 %v321
      %v386 = vunpack.c.l.b16 %v322
      %v387 = vunpack.c.l.b16 %v323
      %v388 = vunpack.c.l.b16 %v324
      %v389 = vunpack.c.l.b16 %v325
      %v390 = vunpack.c.l.b16 %v326
      %v391 = vunpack.c.l.b16 %v327
      %v392 = vunpack.c.l.b16 %v328
      %v393 = vpack.c.b16 %v386, %v385
      %v394 = vpack.c.b16 %v388, %v387
      %v395 = vpack.c.b16 %v390, %v389
      %v396 = vpack.c.b16 %v392, %v391
      %vm397 = vcmask 261120
      %v399 = vsel %vm397, %v393, 0
      %v402 = vsel %vm397, %v394, 0
      %v405 = vsel %vm397, %v395, 0
      %v408 = vsel %vm397, %v396, 0
      %410 = vmatpush.bf16.msra.mxu0 0
      %411 = vmatpush.bf16.msra.mxu0 0
      %412 = vmatpush.bf16.msra.mxu0 0
      %413 = vmatpush.bf16.msra.mxu0 0
      %414 = vmatpush.bf16.msra.mxu0 0
      %415 = vmatpush.bf16.msra.mxu0 0
      %416 = vmatpush.bf16.msra.mxu0 %v320
      %417 = vmatpush.bf16.msra.mxu0 %v319
      %418 = vmatmul.bf16.gmra.mxu0 %v399
      %v419 = vpop.f32.mrf.mxu0
      %v420 = vadd.f32 %v340, %v419
      %v421 = vpop.f32.mrf.mxu0
      %v422 = vadd.f32 %v345, %v421
      %423 = vmatmul.bf16.gmra.mxu0 %v402
      %v424 = vpop.f32.mrf.mxu0
      %v425 = vadd.f32 %v350, %v424
      %v426 = vpop.f32.mrf.mxu0
      %v427 = vadd.f32 %v355, %v426
      %428 = vmatmul.bf16.gmra.mxu0 %v405
      %v429 = vpop.f32.mrf.mxu0
      %v430 = vadd.f32 %v360, %v429
      %v431 = vpop.f32.mrf.mxu0
      %v432 = vadd.f32 %v365, %v431
      %433 = vmatmul.bf16.gmra.mxu0 %v408
      %v434 = vpop.f32.mrf.mxu0
      %v435 = vadd.f32 %v370, %v434
      %v436 = vpop.f32.mrf.mxu0
      %v437 = vadd.f32 %v375, %v436
      %438 = vdwg.mxu0
      %v439 = vmul.f32 %v420, 0.5
      %v440 = vmul.f32 %v422, 0.5
      %v441 = vmul.f32 %v425, 0.5
      %v442 = vmul.f32 %v427, 0.5
      %v443 = vmul.f32 %v430, 0.5
      %v444 = vmul.f32 %v432, 0.5
      %v445 = vmul.f32 %v435, 0.5
      %v446 = vmul.f32 %v437, 0.5
      %v447 = vmul.f32 %v420, 0.044715
      %v448 = vmul.f32 %v422, 0.044715
      %v449 = vmul.f32 %v425, 0.044715
      %v450 = vmul.f32 %v427, 0.044715
      %v451 = vmul.f32 %v430, 0.044715
      %v452 = vmul.f32 %v432, 0.044715
      %v453 = vmul.f32 %v435, 0.044715
      %v454 = vmul.f32 %v437, 0.044715
      %v455 = vmul.f32 %v447, %v420
      %v456 = vmul.f32 %v448, %v422
      %v457 = vmul.f32 %v449, %v425
      %v458 = vmul.f32 %v450, %v427
      %v459 = vmul.f32 %v451, %v430
      %v460 = vmul.f32 %v452, %v432
      %v461 = vmul.f32 %v453, %v435
      %v462 = vmul.f32 %v454, %v437
      %v463 = vmul.f32 %v455, %v420
      %v464 = vmul.f32 %v456, %v422
      %v465 = vmul.f32 %v457, %v425
      %v466 = vmul.f32 %v458, %v427
      %v467 = vmul.f32 %v459, %v430
      %v468 = vmul.f32 %v460, %v432
      %v469 = vmul.f32 %v461, %v435
      %v470 = vmul.f32 %v462, %v437
      %v471 = vadd.f32 %v420, %v463
      %v472 = vadd.f32 %v422, %v464
      %v473 = vadd.f32 %v425, %v465
      %v474 = vadd.f32 %v427, %v466
      %v475 = vadd.f32 %v430, %v467
      %v476 = vadd.f32 %v432, %v468
      %v477 = vadd.f32 %v435, %v469
      %v478 = vadd.f32 %v437, %v470
      %v479 = vmul.f32 %v471, 0.7978846
      %v480 = vmul.f32 %v472, 0.7978846
      %v481 = vmul.f32 %v473, 0.7978846
      %v482 = vmul.f32 %v474, 0.7978846
      %v483 = vmul.f32 %v475, 0.7978846
      %v484 = vmul.f32 %v476, 0.7978846
      %v485 = vmul.f32 %v477, 0.7978846
      %v486 = vmul.f32 %v478, 0.7978846
      %v487 = vtanh.pop %v479
      %v488 = vtanh.pop %v480
      %v489 = vtanh.pop %v481
      %v490 = vtanh.pop %v482
      %v491 = vtanh.pop %v483
      %v492 = vtanh.pop %v484
      %v493 = vtanh.pop %v485
      %v494 = vtanh.pop %v486
      %v495 = vadd.f32 %v487, 1.0
      %v496 = vadd.f32 %v488, 1.0
      %v497 = vadd.f32 %v489, 1.0
      %v498 = vadd.f32 %v490, 1.0
      %v499 = vadd.f32 %v491, 1.0
      %v500 = vadd.f32 %v492, 1.0
      %v501 = vadd.f32 %v493, 1.0
      %v502 = vadd.f32 %v494, 1.0
      %v503 = vmul.f32 %v439, %v495
      %v504 = vmul.f32 %v440, %v496
      %v505 = vmul.f32 %v441, %v497
      %v506 = vmul.f32 %v442, %v498
      %v507 = vmul.f32 %v443, %v499
      %v508 = vmul.f32 %v444, %v500
      %v509 = vmul.f32 %v445, %v501
      %v510 = vmul.f32 %v446, %v502
      %v511 = vld [vmem:[%s3] sm:$0xf]
      %v512 = vld [vmem:[%s3 + $0x4] sm:$0xf]
      %v513 = vld [vmem:[%s3 + $0x8] sm:$0xf]
      %v514 = vld [vmem:[%s3 + $0xc] sm:$0xf]
      %v515 = vpack.c.bf16 %v504, %v503
      %v516 = vpack.c.bf16 %v506, %v505
      %v517 = vpack.c.bf16 %v508, %v507
      %v518 = vpack.c.bf16 %v510, %v509
      %v519 = vld [vmem:[%s4] sm:$0xff]
      %v520 = vld [vmem:[%s4 + $0x8] sm:$0xff]
      %v521 = vld [vmem:[%s4 + $0x10] sm:$0xff]
      %v522 = vld [vmem:[%s4 + $0x18] sm:$0xff]
      %524 = vset.pattern.permute.xlu0 0
      %525 = vperm.xlu0 %524, %v519
      %v526 = vpop.permute.xlu0 %525
      %529 = vset.pattern.permute.xlu0 0
      %530 = vperm.xlu0 %529, %v520
      %v531 = vpop.permute.xlu0 %530
      %534 = vset.pattern.permute.xlu0 0
      %535 = vperm.xlu0 %534, %v521
      %v536 = vpop.permute.xlu0 %535
      %539 = vset.pattern.permute.xlu0 0
      %540 = vperm.xlu0 %539, %v522
      %v541 = vpop.permute.xlu0 %540
      %v547 = vunpack.c.l.b16 %v511
      %v548 = vunpack.c.l.b16 %v512
      %v549 = vunpack.c.l.b16 %v513
      %v550 = vunpack.c.l.b16 %v514
      %v551 = vpack.c.b16 %v548, %v547
      %v552 = vpack.c.b16 %v550, %v549
      %vm553 = vcmask 523264
      %v555 = vsel %vm553, %v551, 0
      %v558 = vsel %vm553, %v552, 0
      %560 = vmatpush.bf16.msra.mxu0 0
      %561 = vmatpush.bf16.msra.mxu0 0
      %562 = vmatpush.bf16.msra.mxu0 0
      %563 = vmatpush.bf16.msra.mxu0 0
      %564 = vmatpush.bf16.msra.mxu0 %v518
      %565 = vmatpush.bf16.msra.mxu0 %v517
      %566 = vmatpush.bf16.msra.mxu0 %v516
      %567 = vmatpush.bf16.msra.mxu0 %v515
      %568 = vmatmul.bf16.gmra.mxu0 %v555
      %v569 = vpop.f32.mrf.mxu0
      %v570 = vadd.f32 %v526, %v569
      %v571 = vpop.f32.mrf.mxu0
      %v572 = vadd.f32 %v531, %v571
      %573 = vmatmul.bf16.gmra.mxu0 %v558
      %v574 = vpop.f32.mrf.mxu0
      %v575 = vadd.f32 %v536, %v574
      %v576 = vpop.f32.mrf.mxu0
      %v577 = vadd.f32 %v541, %v576
      %578 = vdwg.mxu0
      %v579 = vld [vmem:[%s305] sm:$0xff]
      %v580 = vld [vmem:[%s305 + $0x8] sm:$0xff]
      %v581 = vld [vmem:[%s305 + $0x10] sm:$0xff]
      %v582 = vld [vmem:[%s305 + $0x18] sm:$0xff]
      %v583 = vadd.f32 %v570, %v579
      %v584 = vadd.f32 %v572, %v580
      %v585 = vadd.f32 %v575, %v581
      %v586 = vadd.f32 %v577, %v582
      %587 = vst.msk [vmem:[%s313] sm:$0xff] %vm553, %v583
      %588 = vst.msk [vmem:[%s313 + $0x8] sm:$0xff] %vm553, %v584
      %589 = vst.msk [vmem:[%s313 + $0x10] sm:$0xff] %vm553, %v585
      %590 = vst.msk [vmem:[%s313 + $0x18] sm:$0xff] %vm553, %v586
      %p591 = scmp.lt.s32.totalorder %s21, 1
      %s592 = scalar_select %p591, %s21, 1
      %p593 = scmp.lt.s32.totalorder %s22, 0
      %s594 = scalar_select %p593, %s22, 0
      %s595 = smul.addr %s592, 4
      %s596 = sadd.s32 %s594, %s595
      %s597 = smul.addr %s596, 8
      %s598 = scalar_lea.vmem %s6, %s597
      // Predicated region
      $region45: #{_lambda_.14} parent=43 // pred_check
        %p599 = pneg %p189
      $region46: #{_lambda_.14} parent=43 // pred_check_branch
        %601 = sbr.rel (%p599) target = $region48
      $region47: #{_lambda_.14} parent=43 // pred_region
        _
      $region48: #{_lambda_.14} parent=43 // pred_fallthru
        _
    $region44: #{_lambda_.14} parent=5 // pred_fallthru
      _
    %p602 = scmp.le.s32.totalorder 2, %s12
    // Predicated region
    $region49: #{_lambda_.14} parent=5 // pred_check
      %p603 = pneg %p602
    $region50: #{_lambda_.14} parent=5 // pred_check_branch
      %605 = sbr.rel (%p603) target = $region52
    $region51: #{_lambda_.14} parent=5 // pred_region
      %s606 = ssub.s32 %s12, 2
      // Predicated region
      $region53: #{_lambda_.14} parent=51 // pred_check
        %p607 = pneg %p195
      $region54: #{_lambda_.14} parent=51 // pred_check_branch
        %609 = sbr.rel (%p607) target = $region56
      $region55: #{_lambda_.14} parent=51 // pred_region
        %p610 = scmp.lt.s32.totalorder %s23, 1
        %s611 = scalar_select %p610, %s23, 1
        %p612 = scmp.lt.s32.totalorder %s24, 0
        %s613 = scalar_select %p612, %s24, 0
        %s614 = smul.addr %s611, 4
        %s615 = sadd.s32 %s613, %s614
        %s616 = smul.addr %s615, 8
        %s617 = scalar_lea.vmem %s6, %s616
      $region56: #{_lambda_.14} parent=51 // pred_fallthru
        _
    $region52: #{_lambda_.14} parent=5 // pred_fallthru
      _
  $region6: #{_lambda_.14} parent=0 // loop_footer
    %s16 = sadd.s32 1, %s12
  $region7: #{_lambda_.14} parent=0 // loop_footer_branch
    %11 = sbr.rel target = $region3
  $region8: #{_lambda_.14} parent=0 // loop_exit
    _

// kernel: _lambda_.13
$region0: #{_lambda_.13}
  #allocation0 [shape = 'u32[]', space=smem, size = 0x4, offset = 0x4, fixed_abs, tag = 'smem constant byte address 0x4 - core index']
  #allocation1 [shape = 'u32[72,128]{1,0:T(1,128)}', space=vmem, size = 0x9000, scoped, tag = 'internal scratch']
  %s0 = inlined_call_operand.vmem [shape: f32[64,64], index: 0, kind: input, shape index: {}]
  %s1 = inlined_call_operand.vmem [shape: f32[64,64], index: 1, kind: input, shape index: {}]
  %s2 = inlined_call_operand.vmem [shape: f32[64,64], index: 2, kind: input, shape index: {}]
  %s3 = inlined_call_operand.vmem [shape: f32[1,64], index: 3, kind: input, shape index: {}]
  %s4 = inlined_call_operand.vmem [shape: f32[1,64], index: 4, kind: input, shape index: {}]
  %s5 = inlined_call_operand.vmem [shape: f32[64,64], index: 5, kind: output, shape index: {0}]
  %s6 = inlined_call_operand.vmem [shape: f32[64,64], index: 6, kind: output, shape index: {1}]
  %7 = xla_tuple %s5, %s6
  %s8 = sld [smem:[#allocation0]]
  $region61: #{_lambda_.13} parent=0
    _
  %s10 = ssub.s32 1, %s8
  %s11 = scalar_select 0, %s10, %s8
  loop: start=0, step=1, limit=4
  $region2: #{_lambda_.13} parent=0 // loop_pre_header
    _
  $region3: #{_lambda_.13} parent=0 // loop_header
    %s13 = sphi 0, %s17
    %p14 = scmp.ge.s32.totalorder %s13, 4
    %s23 = sphi 0, %s25
    %s26 = sphi 0, %s23
    %s27 = sphi 0, %s26
    %s43 = sphi 0, %s27
    %s49 = sphi 0, %s51
    %s52 = sphi 0, %s49
    %s53 = sphi 0, %s52
    %s69 = sphi 0, %s53
    %s75 = sphi 0, %s77
    %s78 = sphi 0, %s75
    %s79 = sphi 0, %s78
    %s95 = sphi 0, %s79
    %s99 = sphi 0, %s99
    %s101 = sphi 0, %s99
    %s102 = sphi 0, %s101
    %s116 = sphi 0, %s102
    %s120 = sphi 0, %s120
    %s122 = sphi 0, %s120
    %s123 = sphi 0, %s122
    %s137 = sphi 0, %s123
    %s143 = sphi 0, %s145
    %s146 = sphi 0, %s143
    %s147 = sphi 0, %s146
    %s163 = sphi 0, %s147
    %s169 = sphi 0, %s171
    %s172 = sphi 0, %s169
    %s173 = sphi 0, %s172
    %s189 = sphi 0, %s173
  $region4: #{_lambda_.13} parent=0 // loop_header_branch
    %16 = sbr.rel (%p14) target = $region8
  $region5: #{_lambda_.13} parent=0 // loop_body
    %s18 = ssub.s32 %s13, 1
    %s19 = ssub.s32 %s13, 2
    %s20 = sadd.s32 %s13, 1
    %s21 = ssub.s32 %s13, %s20
    %p22 = scmp.eq.s32.totalorder %s21, 0
    %s24 = sadd.s32 %s23, 1
    %s25 = scalar_select %p22, %s23, %s24
    %p28 = pneg %p22
    %p29 = scmp.eq.s32.totalorder %s13, 1
    %p30 = por %p28, %p29
    %p31 = scmp.ne.s32.totalorder %s23, %s26
    %p32 = scmp.eq.s32.totalorder %s13, 0
    %p33 = por %p31, %p32
    %p34 = scmp.ne.s32.totalorder %s23, %s26
    %p35 = scmp.eq.s32.totalorder %s18, 1
    %p36 = por %p34, %p35
    %p37 = scmp.ne.s32.totalorder %s26, %s27
    %p38 = scmp.eq.s32.totalorder %s18, 0
    %p39 = por %p37, %p38
    %p40 = scmp.ne.s32.totalorder %s26, %s27
    %p41 = scmp.eq.s32.totalorder %s19, 1
    %p42 = por %p40, %p41
    %p44 = scmp.ne.s32.totalorder %s27, %s43
    %p45 = scmp.eq.s32.totalorder %s19, 0
    %p46 = por %p44, %p45
    %s47 = ssub.s32 %s13, %s20
    %p48 = scmp.eq.s32.totalorder %s47, 0
    %s50 = sadd.s32 %s49, 1
    %s51 = scalar_select %p48, %s49, %s50
    %p54 = pneg %p48
    %p55 = scmp.eq.s32.totalorder %s13, 1
    %p56 = por %p54, %p55
    %p57 = scmp.ne.s32.totalorder %s49, %s52
    %p58 = scmp.eq.s32.totalorder %s13, 0
    %p59 = por %p57, %p58
    %p60 = scmp.ne.s32.totalorder %s49, %s52
    %p61 = scmp.eq.s32.totalorder %s18, 1
    %p62 = por %p60, %p61
    %p63 = scmp.ne.s32.totalorder %s52, %s53
    %p64 = scmp.eq.s32.totalorder %s18, 0
    %p65 = por %p63, %p64
    %p66 = scmp.ne.s32.totalorder %s52, %s53
    %p67 = scmp.eq.s32.totalorder %s19, 1
    %p68 = por %p66, %p67
    %p70 = scmp.ne.s32.totalorder %s53, %s69
    %p71 = scmp.eq.s32.totalorder %s19, 0
    %p72 = por %p70, %p71
    %s73 = ssub.s32 %s13, %s20
    %p74 = scmp.eq.s32.totalorder %s73, 0
    %s76 = sadd.s32 %s75, 1
    %s77 = scalar_select %p74, %s75, %s76
    %p80 = pneg %p74
    %p81 = scmp.eq.s32.totalorder %s13, 1
    %p82 = por %p80, %p81
    %p83 = scmp.ne.s32.totalorder %s75, %s78
    %p84 = scmp.eq.s32.totalorder %s13, 0
    %p85 = por %p83, %p84
    %p86 = scmp.ne.s32.totalorder %s75, %s78
    %p87 = scmp.eq.s32.totalorder %s18, 1
    %p88 = por %p86, %p87
    %p89 = scmp.ne.s32.totalorder %s78, %s79
    %p90 = scmp.eq.s32.totalorder %s18, 0
    %p91 = por %p89, %p90
    %p92 = scmp.ne.s32.totalorder %s78, %s79
    %p93 = scmp.eq.s32.totalorder %s19, 1
    %p94 = por %p92, %p93
    %p96 = scmp.ne.s32.totalorder %s79, %s95
    %p97 = scmp.eq.s32.totalorder %s19, 0
    %p98 = por %p96, %p97
    %s100 = sadd.s32 %s99, 1
    %p103 = scmp.eq.s32.totalorder %s13, 1
    %p104 = scmp.ne.s32.totalorder %s99, %s101
    %p105 = scmp.eq.s32.totalorder %s13, 0
    %p106 = por %p104, %p105
    %p107 = scmp.ne.s32.totalorder %s99, %s101
    %p108 = scmp.eq.s32.totalorder %s18, 1
    %p109 = por %p107, %p108
    %p110 = scmp.ne.s32.totalorder %s101, %s102
    %p111 = scmp.eq.s32.totalorder %s18, 0
    %p112 = por %p110, %p111
    %p113 = scmp.ne.s32.totalorder %s101, %s102
    %p114 = scmp.eq.s32.totalorder %s19, 1
    %p115 = por %p113, %p114
    %p117 = scmp.ne.s32.totalorder %s102, %s116
    %p118 = scmp.eq.s32.totalorder %s19, 0
    %p119 = por %p117, %p118
    %s121 = sadd.s32 %s120, 1
    %p124 = scmp.eq.s32.totalorder %s13, 1
    %p125 = scmp.ne.s32.totalorder %s120, %s122
    %p126 = scmp.eq.s32.totalorder %s13, 0
    %p127 = por %p125, %p126
    %p128 = scmp.ne.s32.totalorder %s120, %s122
    %p129 = scmp.eq.s32.totalorder %s18, 1
    %p130 = por %p128, %p129
    %p131 = scmp.ne.s32.totalorder %s122, %s123
    %p132 = scmp.eq.s32.totalorder %s18, 0
    %p133 = por %p131, %p132
    %p134 = scmp.ne.s32.totalorder %s122, %s123
    %p135 = scmp.eq.s32.totalorder %s19, 1
    %p136 = por %p134, %p135
    %p138 = scmp.ne.s32.totalorder %s123, %s137
    %p139 = scmp.eq.s32.totalorder %s19, 0
    %p140 = por %p138, %p139
    %s141 = ssub.s32 %s13, %s20
    %p142 = scmp.eq.s32.totalorder %s141, 0
    %s144 = sadd.s32 %s143, 1
    %s145 = scalar_select %p142, %s143, %s144
    %p148 = pneg %p142
    %p149 = scmp.eq.s32.totalorder %s13, 1
    %p150 = por %p148, %p149
    %p151 = scmp.ne.s32.totalorder %s143, %s146
    %p152 = scmp.eq.s32.totalorder %s13, 0
    %p153 = por %p151, %p152
    %p154 = scmp.ne.s32.totalorder %s143, %s146
    %p155 = scmp.eq.s32.totalorder %s18, 1
    %p156 = por %p154, %p155
    %p157 = scmp.ne.s32.totalorder %s146, %s147
    %p158 = scmp.eq.s32.totalorder %s18, 0
    %p159 = por %p157, %p158
    %p160 = scmp.ne.s32.totalorder %s146, %s147
    %p161 = scmp.eq.s32.totalorder %s19, 1
    %p162 = por %p160, %p161
    %p164 = scmp.ne.s32.totalorder %s147, %s163
    %p165 = scmp.eq.s32.totalorder %s19, 0
    %p166 = por %p164, %p165
    %s167 = ssub.s32 %s13, %s20
    %p168 = scmp.eq.s32.totalorder %s167, 0
    %s170 = sadd.s32 %s169, 1
    %s171 = scalar_select %p168, %s169, %s170
    %p174 = pneg %p168
    %p175 = scmp.eq.s32.totalorder %s13, 1
    %p176 = por %p174, %p175
    %p177 = scmp.ne.s32.totalorder %s169, %s172
    %p178 = scmp.eq.s32.totalorder %s13, 0
    %p179 = por %p177, %p178
    %p180 = scmp.ne.s32.totalorder %s169, %s172
    %p181 = scmp.eq.s32.totalorder %s18, 1
    %p182 = por %p180, %p181
    %p183 = scmp.ne.s32.totalorder %s172, %s173
    %p184 = scmp.eq.s32.totalorder %s18, 0
    %p185 = por %p183, %p184
    %p186 = scmp.ne.s32.totalorder %s172, %s173
    %p187 = scmp.eq.s32.totalorder %s19, 1
    %p188 = por %p186, %p187
    %p190 = scmp.ne.s32.totalorder %s173, %s189
    %p191 = scmp.eq.s32.totalorder %s19, 0
    %p192 = por %p190, %p191
    %p193 = scmp.le.s32.totalorder 1, %s13
    %p194 = scmp.lt.s32.totalorder %s13, 3
    %p195 = pnand %p193, %p194
    %p196 = pneg %p195
    // Predicated region
    $region9: #{_lambda_.13} parent=5 // pred_check
      _
    $region10: #{_lambda_.13} parent=5 // pred_check_branch
      %198 = sbr.rel (%p195) target = $region12
    $region11: #{_lambda_.13} parent=5 // pred_region
      %s199 = ssub.s32 %s13, 1
      // Predicated region
      $region13: #{_lambda_.13} parent=11 // pred_check
        %p200 = pneg %p112
      $region14: #{_lambda_.13} parent=11 // pred_check_branch
        %202 = sbr.rel (%p200) target = $region16
      $region15: #{_lambda_.13} parent=11 // pred_region
        _
      $region16: #{_lambda_.13} parent=11 // pred_fallthru
        _
      // Predicated region
      $region17: #{_lambda_.13} parent=11 // pred_check
        %p203 = pneg %p133
      $region18: #{_lambda_.13} parent=11 // pred_check_branch
        %205 = sbr.rel (%p203) target = $region20
      $region19: #{_lambda_.13} parent=11 // pred_region
        _
      $region20: #{_lambda_.13} parent=11 // pred_fallthru
        _
    $region12: #{_lambda_.13} parent=5 // pred_fallthru
      _
    %p206 = scmp.lt.s32.totalorder %s13, 2
    // Predicated region
    $region21: #{_lambda_.13} parent=5 // pred_check
      %p207 = pneg %p206
    $region22: #{_lambda_.13} parent=5 // pred_check_branch
      %209 = sbr.rel (%p207) target = $region24
    $region23: #{_lambda_.13} parent=5 // pred_region
      // Predicated region
      $region25: #{_lambda_.13} parent=23 // pred_check
        %p210 = pneg %p33
      $region26: #{_lambda_.13} parent=23 // pred_check_branch
        %212 = sbr.rel (%p210) target = $region28
      $region27: #{_lambda_.13} parent=23 // pred_region
        %s213 = smul.u32 4, %s13
        %p214 = scmp.lt.s32.totalorder %s213, 7
        %s215 = scalar_select %p214, %s213, 7
        %s216 = smul.addr %s215, 8
        %s217 = scalar_lea.vmem %s0, %s216
        %s218 = smul.u32 4, %s13
      $region28: #{_lambda_.13} parent=23 // pred_fallthru
        _
      // Predicated region
      $region29: #{_lambda_.13} parent=23 // pred_check
        %p219 = pneg %p59
      $region30: #{_lambda_.13} parent=23 // pred_check_branch
        %221 = sbr.rel (%p219) target = $region32
      $region31: #{_lambda_.13} parent=23 // pred_region
        %s222 = smul.u32 4, %s13
        %p223 = scmp.lt.s32.totalorder %s222, 7
        %s224 = scalar_select %p223, %s222, 7
        %s225 = smul.addr %s224, 8
        %s226 = scalar_lea.vmem %s1, %s225
        %s227 = smul.u32 4, %s13
      $region32: #{_lambda_.13} parent=23 // pred_fallthru
        _
      // Predicated region
      $region33: #{_lambda_.13} parent=23 // pred_check
        %p228 = pneg %p85
      $region34: #{_lambda_.13} parent=23 // pred_check_branch
        %230 = sbr.rel (%p228) target = $region36
      $region35: #{_lambda_.13} parent=23 // pred_region
        %s231 = smul.u32 4, %s13
        %p232 = scmp.lt.s32.totalorder %s231, 7
        %s233 = scalar_select %p232, %s231, 7
        %s234 = smul.addr %s233, 8
        %s235 = scalar_lea.vmem %s2, %s234
        %s236 = smul.u32 4, %s13
      $region36: #{_lambda_.13} parent=23 // pred_fallthru
        _
    $region24: #{_lambda_.13} parent=5 // pred_fallthru
      _
    %p237 = scmp.le.s32.totalorder 1, %s13
    %p238 = scmp.lt.s32.totalorder %s13, 3
    %p239 = pnand %p237, %p238
    %p240 = pneg %p239
    // Predicated region
    $region37: #{_lambda_.13} parent=5 // pred_check
      _
    $region38: #{_lambda_.13} parent=5 // pred_check_branch
      %242 = sbr.rel (%p239) target = $region40
    $region39: #{_lambda_.13} parent=5 // pred_region
      %s243 = ssub.s32 %s13, 1
      %s244 = smul.u32 4, %s18
      %p245 = scmp.lt.s32.totalorder %s244, 7
      %s246 = scalar_select %p245, %s244, 7
      %s247 = smul.addr %s246, 8
      %s248 = scalar_lea.vmem %s0, %s247
      %p249 = pneg %p39
      %p250 = pneg %p36
      %s251 = smul.u32 4, %s18
      %p252 = scmp.lt.s32.totalorder %s251, 7
      %s253 = scalar_select %p252, %s251, 7
      %s254 = smul.addr %s253, 8
      %s255 = scalar_lea.vmem %s1, %s254
      %p256 = pneg %p65
      %p257 = pneg %p62
      %s258 = smul.u32 4, %s18
      %p259 = scmp.lt.s32.totalorder %s258, 7
      %s260 = scalar_select %p259, %s258, 7
      %s261 = smul.addr %s260, 8
      %s262 = scalar_lea.vmem %s2, %s261
      %p263 = pneg %p91
      %p264 = pneg %p88
      %p265 = pneg %p112
      %p266 = pneg %p109
      %p267 = pneg %p133
      %p268 = pneg %p130
      %p269 = pneg %p159
      %p270 = pneg %p156
      %s271 = smul.u32 4, %s18
      %p272 = scmp.lt.s32.totalorder %s271, 7
      %s273 = scalar_select %p272, %s271, 7
      %s274 = smul.addr %s273, 8
      %s275 = scalar_lea.vmem %s5, %s274
      %p276 = pneg %p185
      %p277 = pneg %p182
      %s278 = smul.u32 4, %s18
      %p279 = scmp.lt.s32.totalorder %s278, 7
      %s280 = scalar_select %p279, %s278, 7
      %s281 = smul.addr %s280, 8
      %s282 = scalar_lea.vmem %s6, %s281
      %s283 = smul.u32 4, %s18
      %p284 = scmp.lt.s32.totalorder %s283, 7
      %s285 = scalar_select %p284, %s283, 7
      %s286 = smul.addr %s285, 8
      %s287 = scalar_lea.vmem %s0, %s286
      %s288 = smul.u32 4, %s18
      %s289 = smul.u32 4, %s18
      %p290 = scmp.lt.s32.totalorder %s289, 7
      %s291 = scalar_select %p290, %s289, 7
      %s292 = smul.addr %s291, 8
      %s293 = scalar_lea.vmem %s1, %s292
      %s294 = smul.u32 4, %s18
      %s295 = smul.u32 4, %s18
      %p296 = scmp.lt.s32.totalorder %s295, 7
      %s297 = scalar_select %p296, %s295, 7
      %s298 = smul.addr %s297, 8
      %s299 = scalar_lea.vmem %s2, %s298
      %s300 = smul.u32 4, %s18
      %s301 = smul.u32 4, %s18
      %p302 = scmp.lt.s32.totalorder %s301, 7
      %s303 = scalar_select %p302, %s301, 7
      %s304 = smul.addr %s303, 8
      %s305 = scalar_lea.vmem %s5, %s304
      %s306 = smul.u32 4, %s18
      %s307 = smul.u32 4, %s18
      %p308 = scmp.lt.s32.totalorder %s307, 7
      %s309 = scalar_select %p308, %s307, 7
      %s310 = smul.addr %s309, 8
      %s311 = scalar_lea.vmem %s6, %s310
      %s312 = smul.u32 4, %s18
      %v313 = vld [vmem:[%s287] sm:$0xff]
      %v314 = vld [vmem:[%s287 + $0x8] sm:$0xff]
      %v315 = vld [vmem:[%s287 + $0x10] sm:$0xff]
      %v316 = vld [vmem:[%s287 + $0x18] sm:$0xff]
      %v317 = vld [vmem:[%s293] sm:$0xff]
      %v318 = vld [vmem:[%s293 + $0x8] sm:$0xff]
      %v319 = vld [vmem:[%s293 + $0x10] sm:$0xff]
      %v320 = vld [vmem:[%s293 + $0x18] sm:$0xff]
      %v321 = vadd.f32 %v313, %v317
      %v322 = vadd.f32 %v314, %v318
      %v323 = vadd.f32 %v315, %v319
      %v324 = vadd.f32 %v316, %v320
      %v325 = vld [vmem:[%s299] sm:$0xff]
      %v326 = vld [vmem:[%s299 + $0x8] sm:$0xff]
      %v327 = vld [vmem:[%s299 + $0x10] sm:$0xff]
      %v328 = vld [vmem:[%s299 + $0x18] sm:$0xff]
      %v329 = vadd.f32 %v321, %v325
      %v330 = vadd.f32 %v322, %v326
      %v331 = vadd.f32 %v323, %v327
      %v332 = vadd.f32 %v324, %v328
      %vm333 = vcmask 523264
      %334 = vst.msk [vmem:[%s311] sm:$0xff] %vm333, %v329
      %335 = vst.msk [vmem:[%s311 + $0x8] sm:$0xff] %vm333, %v330
      %336 = vst.msk [vmem:[%s311 + $0x10] sm:$0xff] %vm333, %v331
      %337 = vst.msk [vmem:[%s311 + $0x18] sm:$0xff] %vm333, %v332
      %v338 = vsel %vm333, %v329, 0.0
      %339 = vadd.xlane.f32.xlu0 %v338
      %v340 = vpop.xlane.xlu0 %339
      %v341 = vsel %vm333, %v330, 0.0
      %342 = vadd.xlane.f32.xlu0 %v341
      %v343 = vpop.xlane.xlu0 %342
      %v344 = vsel %vm333, %v331, 0.0
      %345 = vadd.xlane.f32.xlu0 %v344
      %v346 = vpop.xlane.xlu0 %345
      %v347 = vsel %vm333, %v332, 0.0
      %348 = vadd.xlane.f32.xlu0 %v347
      %v349 = vpop.xlane.xlu0 %348
      %v350 = vrcp.pop 64.0
      %v351 = vmul.f32 64.0, %v350
      %v352 = vsub.f32 1.0, %v351
      %v353 = vmul.f32 %v350, %v352
      %v354 = vadd.f32 %v350, %v353
      %vm355 = vweird.f32 %v350
      %v356 = vsel %vm355, %v350, %v354
      %v357 = vmul.f32 %v340, %v356
      %v358 = vmul.f32 %v343, %v356
      %v359 = vmul.f32 %v346, %v356
      %v360 = vmul.f32 %v349, %v356
      %v361 = vsub.f32 %v329, %v357
      %v362 = vsub.f32 %v330, %v358
      %v363 = vsub.f32 %v331, %v359
      %v364 = vsub.f32 %v332, %v360
      %v365 = vmul.f32 %v361, %v361
      %v366 = vmul.f32 %v362, %v362
      %v367 = vmul.f32 %v363, %v363
      %v368 = vmul.f32 %v364, %v364
      %v369 = vsel %vm333, %v365, 0.0
      %370 = vadd.xlane.f32.xlu0 %v369
      %v371 = vpop.xlane.xlu0 %370
      %v372 = vsel %vm333, %v366, 0.0
      %373 = vadd.xlane.f32.xlu0 %v372
      %v374 = vpop.xlane.xlu0 %373
      %v375 = vsel %vm333, %v367, 0.0
      %376 = vadd.xlane.f32.xlu0 %v375
      %v377 = vpop.xlane.xlu0 %376
      %v378 = vsel %vm333, %v368, 0.0
      %379 = vadd.xlane.f32.xlu0 %v378
      %v380 = vpop.xlane.xlu0 %379
      %v381 = vmul.f32 %v371, %v356
      %v382 = vmul.f32 %v374, %v356
      %v383 = vmul.f32 %v377, %v356
      %v384 = vmul.f32 %v380, %v356
      %v385 = vadd.f32 %v381, 1e-06
      %v386 = vadd.f32 %v382, 1e-06
      %v387 = vadd.f32 %v383, 1e-06
      %v388 = vadd.f32 %v384, 1e-06
      %v389 = vrsqrt.pop %v385
      %v390 = vmul.f32 %v389, %v385
      %v391 = vmul.f32 %v390, %v389
      %v392 = vmul.f32 0.5, %v391
      %v393 = vsub.f32 1.5, %v392
      %v394 = vmul.f32 %v389, %v393
      %vm395 = vweird.f32 %v385
      %vm396 = vweird.f32 %v389
      %vm397 = vmor %vm395, %vm396
      %v398 = vsel %vm397, %v389, %v394
      %v399 = vrsqrt.pop %v386
      %v400 = vmul.f32 %v399, %v386
      %v401 = vmul.f32 %v400, %v399
      %v402 = vmul.f32 0.5, %v401
      %v403 = vsub.f32 1.5, %v402
      %v404 = vmul.f32 %v399, %v403
      %vm405 = vweird.f32 %v386
      %vm406 = vweird.f32 %v399
      %vm407 = vmor %vm405, %vm406
      %v408 = vsel %vm407, %v399, %v404
      %v409 = vrsqrt.pop %v387
      %v410 = vmul.f32 %v409, %v387
      %v411 = vmul.f32 %v410, %v409
      %v412 = vmul.f32 0.5, %v411
      %v413 = vsub.f32 1.5, %v412
      %v414 = vmul.f32 %v409, %v413
      %vm415 = vweird.f32 %v387
      %vm416 = vweird.f32 %v409
      %vm417 = vmor %vm415, %vm416
      %v418 = vsel %vm417, %v409, %v414
      %v419 = vrsqrt.pop %v388
      %v420 = vmul.f32 %v419, %v388
      %v421 = vmul.f32 %v420, %v419
      %v422 = vmul.f32 0.5, %v421
      %v423 = vsub.f32 1.5, %v422
      %v424 = vmul.f32 %v419, %v423
      %vm425 = vweird.f32 %v388
      %vm426 = vweird.f32 %v419
      %vm427 = vmor %vm425, %vm426
      %v428 = vsel %vm427, %v419, %v424
      %v429 = vmul.f32 %v361, %v398
      %v430 = vmul.f32 %v362, %v408
      %v431 = vmul.f32 %v363, %v418
      %v432 = vmul.f32 %v364, %v428
      %v433 = vld [vmem:[%s3] sm:$0x1]
      %v435 = vperm.slane %v433, 0
      %v437 = vmul.f32 %v429, %v435
      %v438 = vmul.f32 %v430, %v435
      %v439 = vmul.f32 %v431, %v435
      %v440 = vmul.f32 %v432, %v435
      %v441 = vld [vmem:[%s4] sm:$0x1]
      %v443 = vperm.slane %v441, 0
      %v445 = vadd.f32 %v437, %v443
      %v446 = vadd.f32 %v438, %v443
      %v447 = vadd.f32 %v439, %v443
      %v448 = vadd.f32 %v440, %v443
      %449 = vst.msk [vmem:[%s305] sm:$0xff] %vm333, %v445
      %450 = vst.msk [vmem:[%s305 + $0x8] sm:$0xff] %vm333, %v446
      %451 = vst.msk [vmem:[%s305 + $0x10] sm:$0xff] %vm333, %v447
      %452 = vst.msk [vmem:[%s305 + $0x18] sm:$0xff] %vm333, %v448
      %s453 = smul.u32 4, %s18
      %p454 = scmp.lt.s32.totalorder %s453, 7
      %s455 = scalar_select %p454, %s453, 7
      %s456 = smul.addr %s455, 8
      %s457 = scalar_lea.vmem %s5, %s456
      %s458 = smul.u32 4, %s18
      %p459 = scmp.lt.s32.totalorder %s458, 7
      %s460 = scalar_select %p459, %s458, 7
      %s461 = smul.addr %s460, 8
      %s462 = scalar_lea.vmem %s6, %s461
      // Predicated region
      $region41: #{_lambda_.13} parent=39 // pred_check
        %p463 = pneg %p156
      $region42: #{_lambda_.13} parent=39 // pred_check_branch
        %465 = sbr.rel (%p463) target = $region44
      $region43: #{_lambda_.13} parent=39 // pred_region
        %s466 = smul.u32 4, %s18
      $region44: #{_lambda_.13} parent=39 // pred_fallthru
        _
      // Predicated region
      $region45: #{_lambda_.13} parent=39 // pred_check
        %p467 = pneg %p182
      $region46: #{_lambda_.13} parent=39 // pred_check_branch
        %469 = sbr.rel (%p467) target = $region48
      $region47: #{_lambda_.13} parent=39 // pred_region
        %s470 = smul.u32 4, %s18
      $region48: #{_lambda_.13} parent=39 // pred_fallthru
        _
    $region40: #{_lambda_.13} parent=5 // pred_fallthru
      _
    %p471 = scmp.le.s32.totalorder 2, %s13
    // Predicated region
    $region49: #{_lambda_.13} parent=5 // pred_check
      %p472 = pneg %p471
    $region50: #{_lambda_.13} parent=5 // pred_check_branch
      %474 = sbr.rel (%p472) target = $region52
    $region51: #{_lambda_.13} parent=5 // pred_region
      %s475 = ssub.s32 %s13, 2
      // Predicated region
      $region53: #{_lambda_.13} parent=51 // pred_check
        %p476 = pneg %p162
      $region54: #{_lambda_.13} parent=51 // pred_check_branch
        %478 = sbr.rel (%p476) target = $region56
      $region55: #{_lambda_.13} parent=51 // pred_region
        %s479 = smul.u32 4, %s19
        %p480 = scmp.lt.s32.totalorder %s479, 7
        %s481 = scalar_select %p480, %s479, 7
        %s482 = smul.addr %s481, 8
        %s483 = scalar_lea.vmem %s5, %s482
      $region56: #{_lambda_.13} parent=51 // pred_fallthru
        _
      // Predicated region
      $region57: #{_lambda_.13} parent=51 // pred_check
        %p484 = pneg %p188
      $region58: #{_lambda_.13} parent=51 // pred_check_branch
        %486 = sbr.rel (%p484) target = $region60
      $region59: #{_lambda_.13} parent=51 // pred_region
        %s487 = smul.u32 4, %s19
        %p488 = scmp.lt.s32.totalorder %s487, 7
        %s489 = scalar_select %p488, %s487, 7
        %s490 = smul.addr %s489, 8
        %s491 = scalar_lea.vmem %s6, %s490
      $region60: #{_lambda_.13} parent=51 // pred_fallthru
        _
    $region52: #{_lambda_.13} parent=5 // pred_fallthru
      _
  $region6: #{_lambda_.13} parent=0 // loop_footer
    %s17 = sadd.s32 1, %s13
  $region7: #{_lambda_.13} parent=0 // loop_footer_branch
    %12 = sbr.rel target = $region3
  $region8: #{_lambda_.13} parent=0 // loop_exit
    _

// kernel: _lambda_.19
$region0: #{_lambda_.19}
  #allocation0 [shape = 'u32[]', space=smem, size = 0x4, offset = 0x4, fixed_abs, tag = 'smem constant byte address 0x4 - core index']
  #allocation1 [shape = 'u32[72,128]{1,0:T(1,128)}', space=vmem, size = 0x9000, scoped, tag = 'internal scratch']
  %s0 = inlined_call_operand.vmem [shape: f32[2,32,64], index: 0, kind: input, shape index: {}]
  %s1 = inlined_call_operand.vmem [shape: bf16[32,32], index: 1, kind: input, shape index: {}]
  %s2 = inlined_call_operand.vmem [shape: f32[2,32,64], index: 2, kind: output, shape index: {}]
  %s3 = sld [smem:[#allocation0]]
  $region41: #{_lambda_.19} parent=0
    _
  %s5 = ssub.s32 1, %s3
  %s6 = scalar_select 0, %s5, %s3
  loop: start=0, step=1, limit=4
  $region2: #{_lambda_.19} parent=0 // loop_pre_header
    _
  $region3: #{_lambda_.19} parent=0 // loop_header
    %s8 = sphi 0, %s12
    %p9 = scmp.ge.s32.totalorder %s8, 4
    %s15 = sphi 0, %s27
    %s16 = sphi 0, %s23
    %s17 = sphi 0, %s15
    %s18 = sphi 0, %s16
    %s19 = sphi 0, %s17
    %s20 = sphi 0, %s18
    %s32 = sphi 0, %s34
    %s35 = sphi 0, %s32
    %s36 = sphi 0, %s35
    %s52 = sphi 0, %s36
    %s56 = sphi 0, %s56
    %s58 = sphi 0, %s56
    %s59 = sphi 0, %s58
    %s73 = sphi 0, %s59
    %s81 = sphi 0, %s83
    %s84 = sphi 0, %s81
    %s85 = sphi 0, %s84
    %s101 = sphi 0, %s85
  $region4: #{_lambda_.19} parent=0 // loop_header_branch
    %11 = sbr.rel (%p9) target = $region8
  $region5: #{_lambda_.19} parent=0 // loop_body
    %s13 = ssub.s32 %s8, 1
    %s14 = ssub.s32 %s8, 2
    %s21 = sadd.s32 1, %s16
    %p22 = scmp.ge.s32.totalorder %s21, 1
    %s23 = scalar_select %p22, 0, %s21
    %s24 = sadd.s32 1, %s15
    %s25 = scalar_select %p22, %s24, %s15
    %p26 = scmp.ge.s32.totalorder %s25, 2
    %s27 = scalar_select %p26, 0, %s25
    %s28 = ssub.s32 %s15, %s27
    %s29 = ssub.s32 %s16, %s23
    %s30 = sor.u32 %s28, %s29
    %p31 = scmp.eq.s32.totalorder %s30, 0
    %s33 = sadd.s32 %s32, 1
    %s34 = scalar_select %p31, %s32, %s33
    %p37 = pneg %p31
    %p38 = scmp.eq.s32.totalorder %s8, 1
    %p39 = por %p37, %p38
    %p40 = scmp.ne.s32.totalorder %s32, %s35
    %p41 = scmp.eq.s32.totalorder %s8, 0
    %p42 = por %p40, %p41
    %p43 = scmp.ne.s32.totalorder %s32, %s35
    %p44 = scmp.eq.s32.totalorder %s13, 1
    %p45 = por %p43, %p44
    %p46 = scmp.ne.s32.totalorder %s35, %s36
    %p47 = scmp.eq.s32.totalorder %s13, 0
    %p48 = por %p46, %p47
    %p49 = scmp.ne.s32.totalorder %s35, %s36
    %p50 = scmp.eq.s32.totalorder %s14, 1
    %p51 = por %p49, %p50
    %p53 = scmp.ne.s32.totalorder %s36, %s52
    %p54 = scmp.eq.s32.totalorder %s14, 0
    %p55 = por %p53, %p54
    %s57 = sadd.s32 %s56, 1
    %p60 = scmp.eq.s32.totalorder %s8, 1
    %p61 = scmp.ne.s32.totalorder %s56, %s58
    %p62 = scmp.eq.s32.totalorder %s8, 0
    %p63 = por %p61, %p62
    %p64 = scmp.ne.s32.totalorder %s56, %s58
    %p65 = scmp.eq.s32.totalorder %s13, 1
    %p66 = por %p64, %p65
    %p67 = scmp.ne.s32.totalorder %s58, %s59
    %p68 = scmp.eq.s32.totalorder %s13, 0
    %p69 = por %p67, %p68
    %p70 = scmp.ne.s32.totalorder %s58, %s59
    %p71 = scmp.eq.s32.totalorder %s14, 1
    %p72 = por %p70, %p71
    %p74 = scmp.ne.s32.totalorder %s59, %s73
    %p75 = scmp.eq.s32.totalorder %s14, 0
    %p76 = por %p74, %p75
    %s77 = ssub.s32 %s15, %s27
    %s78 = ssub.s32 %s16, %s23
    %s79 = sor.u32 %s77, %s78
    %p80 = scmp.eq.s32.totalorder %s79, 0
    %s82 = sadd.s32 %s81, 1
    %s83 = scalar_select %p80, %s81, %s82
    %p86 = pneg %p80
    %p87 = scmp.eq.s32.totalorder %s8, 1
    %p88 = por %p86, %p87
    %p89 = scmp.ne.s32.totalorder %s81, %s84
    %p90 = scmp.eq.s32.totalorder %s8, 0
    %p91 = por %p89, %p90
    %p92 = scmp.ne.s32.totalorder %s81, %s84
    %p93 = scmp.eq.s32.totalorder %s13, 1
    %p94 = por %p92, %p93
    %p95 = scmp.ne.s32.totalorder %s84, %s85
    %p96 = scmp.eq.s32.totalorder %s13, 0
    %p97 = por %p95, %p96
    %p98 = scmp.ne.s32.totalorder %s84, %s85
    %p99 = scmp.eq.s32.totalorder %s14, 1
    %p100 = por %p98, %p99
    %p102 = scmp.ne.s32.totalorder %s85, %s101
    %p103 = scmp.eq.s32.totalorder %s14, 0
    %p104 = por %p102, %p103
    %p105 = scmp.le.s32.totalorder 1, %s8
    %p106 = scmp.lt.s32.totalorder %s8, 3
    %p107 = pnand %p105, %p106
    %p108 = pneg %p107
    // Predicated region
    $region9: #{_lambda_.19} parent=5 // pred_check
      _
    $region10: #{_lambda_.19} parent=5 // pred_check_branch
      %110 = sbr.rel (%p107) target = $region12
    $region11: #{_lambda_.19} parent=5 // pred_region
      %s111 = ssub.s32 %s8, 1
      // Predicated region
      $region13: #{_lambda_.19} parent=11 // pred_check
        %p112 = pneg %p69
      $region14: #{_lambda_.19} parent=11 // pred_check_branch
        %114 = sbr.rel (%p112) target = $region16
      $region15: #{_lambda_.19} parent=11 // pred_region
        _
      $region16: #{_lambda_.19} parent=11 // pred_fallthru
        _
    $region12: #{_lambda_.19} parent=5 // pred_fallthru
      _
    %p115 = scmp.lt.s32.totalorder %s8, 2
    // Predicated region
    $region17: #{_lambda_.19} parent=5 // pred_check
      %p116 = pneg %p115
    $region18: #{_lambda_.19} parent=5 // pred_check_branch
      %118 = sbr.rel (%p116) target = $region20
    $region19: #{_lambda_.19} parent=5 // pred_region
      // Predicated region
      $region21: #{_lambda_.19} parent=19 // pred_check
        %p119 = pneg %p42
      $region22: #{_lambda_.19} parent=19 // pred_check_branch
        %121 = sbr.rel (%p119) target = $region24
      $region23: #{_lambda_.19} parent=19 // pred_region
        %p122 = scmp.lt.s32.totalorder %s15, 1
        %s123 = scalar_select %p122, %s15, 1
        %p124 = scmp.lt.s32.totalorder %s16, 0
        %s125 = scalar_select %p124, %s16, 0
        %s126 = smul.addr %s123, 4
        %s127 = sadd.s32 %s125, %s126
        %s128 = smul.addr %s127, 8
        %s129 = scalar_lea.vmem %s0, %s128
      $region24: #{_lambda_.19} parent=19 // pred_fallthru
        _
    $region20: #{_lambda_.19} parent=5 // pred_fallthru
      _
    %p130 = scmp.le.s32.totalorder 1, %s8
    %p131 = scmp.lt.s32.totalorder %s8, 3
    %p132 = pnand %p130, %p131
    %p133 = pneg %p132
    // Predicated region
    $region25: #{_lambda_.19} parent=5 // pred_check
      _
    $region26: #{_lambda_.19} parent=5 // pred_check_branch
      %135 = sbr.rel (%p132) target = $region28
    $region27: #{_lambda_.19} parent=5 // pred_region
      %s136 = ssub.s32 %s8, 1
      %p137 = scmp.lt.s32.totalorder %s17, 1
      %s138 = scalar_select %p137, %s17, 1
      %p139 = scmp.lt.s32.totalorder %s18, 0
      %s140 = scalar_select %p139, %s18, 0
      %s141 = smul.addr %s138, 4
      %s142 = sadd.s32 %s140, %s141
      %s143 = smul.addr %s142, 8
      %s144 = scalar_lea.vmem %s0, %s143
      %p145 = pneg %p48
      %p146 = pneg %p45
      %p147 = pneg %p69
      %p148 = pneg %p66
      %p149 = pneg %p97
      %p150 = pneg %p94
      %p151 = scmp.lt.s32.totalorder %s17, 1
      %s152 = scalar_select %p151, %s17, 1
      %p153 = scmp.lt.s32.totalorder %s18, 0
      %s154 = scalar_select %p153, %s18, 0
      %s155 = smul.addr %s152, 4
      %s156 = sadd.s32 %s154, %s155
      %s157 = smul.addr %s156, 8
      %s158 = scalar_lea.vmem %s2, %s157
      %p159 = scmp.lt.s32.totalorder %s17, 1
      %s160 = scalar_select %p159, %s17, 1
      %p161 = scmp.lt.s32.totalorder %s18, 0
      %s162 = scalar_select %p161, %s18, 0
      %s163 = smul.addr %s160, 4
      %s164 = sadd.s32 %s162, %s163
      %s165 = smul.addr %s164, 8
      %s166 = scalar_lea.vmem %s0, %s165
      %p167 = scmp.lt.s32.totalorder %s17, 1
      %s168 = scalar_select %p167, %s17, 1
      %p169 = scmp.lt.s32.totalorder %s18, 0
      %s170 = scalar_select %p169, %s18, 0
      %s171 = smul.addr %s168, 4
      %s172 = sadd.s32 %s170, %s171
      %s173 = smul.addr %s172, 8
      %s174 = scalar_lea.vmem %s2, %s173
      %v176 = vld [vmem:[%s166] sm:$0xff]
      %v177 = vld [vmem:[%s166 + $0x8] sm:$0xff]
      %v178 = vld [vmem:[%s166 + $0x10] sm:$0xff]
      %v179 = vld [vmem:[%s166 + $0x18] sm:$0xff]
      %v180 = vpack.c.bf16 %v177, %v176
      %v181 = vpack.c.bf16 %v179, %v178
      %v182 = vld [vmem:[%s1] sm:$0xf]
      %v183 = vld [vmem:[%s1 + $0x4] sm:$0xf]
      %v184 = vld [vmem:[%s1 + $0x8] sm:$0xf]
      %v185 = vld [vmem:[%s1 + $0xc] sm:$0xf]
      %v190 = vunpack.c.l.b16 %v182
      %v191 = vunpack.c.l.b16 %v183
      %v192 = vunpack.c.l.b16 %v184
      %v193 = vunpack.c.l.b16 %v185
      %v194 = vpack.c.b16 %v191, %v190
      %v195 = vpack.c.b16 %v193, %v192
      %vm196 = vcmask 261120
      %v198 = vsel %vm196, %v194, 0
      %v201 = vsel %vm196, %v195, 0
      %203 = vmatpush.bf16.msra.mxu0 0
      %204 = vmatpush.bf16.msra.mxu0 0
      %205 = vmatpush.bf16.msra.mxu0 0
      %206 = vmatpush.bf16.msra.mxu0 0
      %207 = vmatpush.bf16.msra.mxu0 0
      %208 = vmatpush.bf16.msra.mxu0 0
      %209 = vmatpush.bf16.msra.mxu0 %v181
      %210 = vmatpush.bf16.msra.mxu0 %v180
      %211 = vmatmul.bf16.gmra.mxu0 %v198
      %v212 = vpop.f32.mrf.mxu0
      %v213 = vadd.f32 0.0, %v212
      %v214 = vpop.f32.mrf.mxu0
      %v215 = vadd.f32 0.0, %v214
      %216 = vmatmul.bf16.gmra.mxu0 %v201
      %v217 = vpop.f32.mrf.mxu0
      %v218 = vadd.f32 0.0, %v217
      %v219 = vpop.f32.mrf.mxu0
      %v220 = vadd.f32 0.0, %v219
      %221 = vdwg.mxu0
      %vm222 = vcmask 523264
      %223 = vst.msk [vmem:[%s174] sm:$0xff] %vm222, %v213
      %224 = vst.msk [vmem:[%s174 + $0x8] sm:$0xff] %vm222, %v215
      %225 = vst.msk [vmem:[%s174 + $0x10] sm:$0xff] %vm222, %v218
      %226 = vst.msk [vmem:[%s174 + $0x18] sm:$0xff] %vm222, %v220
      %p227 = scmp.lt.s32.totalorder %s17, 1
      %s228 = scalar_select %p227, %s17, 1
      %p229 = scmp.lt.s32.totalorder %s18, 0
      %s230 = scalar_select %p229, %s18, 0
      %s231 = smul.addr %s228, 4
      %s232 = sadd.s32 %s230, %s231
      %s233 = smul.addr %s232, 8
      %s234 = scalar_lea.vmem %s2, %s233
      // Predicated region
      $region29: #{_lambda_.19} parent=27 // pred_check
        %p235 = pneg %p94
      $region30: #{_lambda_.19} parent=27 // pred_check_branch
        %237 = sbr.rel (%p235) target = $region32
      $region31: #{_lambda_.19} parent=27 // pred_region
        _
      $region32: #{_lambda_.19} parent=27 // pred_fallthru
        _
    $region28: #{_lambda_.19} parent=5 // pred_fallthru
      _
    %p238 = scmp.le.s32.totalorder 2, %s8
    // Predicated region
    $region33: #{_lambda_.19} parent=5 // pred_check
      %p239 = pneg %p238
    $region34: #{_lambda_.19} parent=5 // pred_check_branch
      %241 = sbr.rel (%p239) target = $region36
    $region35: #{_lambda_.19} parent=5 // pred_region
      %s242 = ssub.s32 %s8, 2
      // Predicated region
      $region37: #{_lambda_.19} parent=35 // pred_check
        %p243 = pneg %p100
      $region38: #{_lambda_.19} parent=35 // pred_check_branch
        %245 = sbr.rel (%p243) target = $region40
      $region39: #{_lambda_.19} parent=35 // pred_region
        %p246 = scmp.lt.s32.totalorder %s19, 1
        %s247 = scalar_select %p246, %s19, 1
        %p248 = scmp.lt.s32.totalorder %s20, 0
        %s249 = scalar_select %p248, %s20, 0
        %s250 = smul.addr %s247, 4
        %s251 = sadd.s32 %s249, %s250
        %s252 = smul.addr %s251, 8
        %s253 = scalar_lea.vmem %s2, %s252
      $region40: #{_lambda_.19} parent=35 // pred_fallthru
        _
    $region36: #{_lambda_.19} parent=5 // pred_fallthru
      _
  $region6: #{_lambda_.19} parent=0 // loop_footer
    %s12 = sadd.s32 1, %s8
  $region7: #{_lambda_.19} parent=0 // loop_footer_branch
    %7 = sbr.rel target = $region3
  $region8: #{_lambda_.19} parent=0 // loop_exit
    _

</llo_original>
